<compile_context>
chip_gen: v7x
topology: tpu7x:2x2x1
jax: 0.10.0
libtpu: 0.0.40
codegen_flags: <defaults>
</compile_context>

<pallas_src>
import functools

import jax
import jax.numpy as jnp
from jax.experimental import pallas as pl
from jax.experimental.pallas import tpu as pltpu


# ----------------------------------------------------------------------------
# Fused forward (all GRU layers + FC in one pallas_call)
# ----------------------------------------------------------------------------
def lag_gru_forward(lags_vectors, params):
    """Equivalent of LagGRU.forward (eval mode).

    lags_vectors: (B, S, factors), batch_first like the PyTorch module.
    Returns (B, factors).
    """
    x = lags_vectors
    B, S, F = x.shape
    layers = params["gru"]
    n_layers = len(layers)
    H = layers[0]["w_hh"].shape[1]
    G = 3 * H

    # ---- Hoisted, time-parallel input projection for layer 0 ----------------
    # One big contraction over all timesteps (XLA); the batch_first ->
    # time-major relayout is folded into the einsum instead of a separate
    # jnp.transpose.  Result is (S, B, 3H) f32.
    gx0 = (jnp.einsum("bsf,gf->sbg", x, layers[0]["w_ih"],
                      preferred_element_type=jnp.float32)
           + layers[0]["b_ih"]).astype(jnp.float32)

    # ---- Kernel operands (weights pre-transposed for row x col MXU dots) ----
    inputs = [gx0]
    for l in range(n_layers):
        inputs.append(jnp.transpose(layers[l]["w_hh"]))          # (H, 3H)
        inputs.append(layers[l]["b_hh"].reshape(1, G))           # (1, 3H)
    for l in range(1, n_layers):
        inputs.append(jnp.transpose(layers[l]["w_ih"]))          # (H, 3H)
        inputs.append(layers[l]["b_ih"].reshape(1, G))           # (1, 3H)
    inputs.append(jnp.transpose(params["fc_w"]))                 # (H, F)
    inputs.append(params["fc_b"].reshape(1, F))                  # (1, F)

    def kernel(*refs):
        idx = 0
        gx0_ref = refs[idx]; idx += 1
        whh_refs, bhh_refs = [], []
        for _ in range(n_layers):
            whh_refs.append(refs[idx]); idx += 1
            bhh_refs.append(refs[idx]); idx += 1
        wih_refs, bih_refs = [None], [None]
        for _ in range(1, n_layers):
            wih_refs.append(refs[idx]); idx += 1
            bih_refs.append(refs[idx]); idx += 1
        fcw_ref = refs[idx]; idx += 1
        fcb_ref = refs[idx]; idx += 1
        out_ref = refs[idx]; idx += 1
        if n_layers > 1:
            seq_scr = refs[idx]; idx += 1      # (S, B, H)  hidden-seq slab
            gx_scr = refs[idx]; idx += 1       # (S, B, 3H) input-gate slab
        else:
            seq_scr = gx_scr = None

        def run_layer(gx_ref, whh_ref, bhh_ref, store_seq):
            # Recurrent weights loaded once; resident for the whole time loop.
            whh = whh_ref[...]                 # (H, 3H)
            bhh = bhh_ref[...]                 # (1, 3H)

            def step(t, h_prev):
                gx_t = gx_ref[t]               # (B, 3H) precomputed x-gates
                gh_t = jnp.dot(h_prev, whh,
                               preferred_element_type=jnp.float32) + bhh
                # PyTorch GRU: r|z|n, with b_hn inside the reset gate.
                r = jax.nn.sigmoid(gx_t[:, 0:H] + gh_t[:, 0:H])
                z = jax.nn.sigmoid(gx_t[:, H:2 * H] + gh_t[:, H:2 * H])
                n = jnp.tanh(gx_t[:, 2 * H:3 * H] + r * gh_t[:, 2 * H:3 * H])
                h_new = (1.0 - z) * n + z * h_prev
                if store_seq:
                    seq_scr[t] = h_new         # VMEM slab for the next layer
                return h_new

            h0 = jnp.zeros((B, H), jnp.float32)
            return jax.lax.fori_loop(0, S, step, h0, unroll=True)

        # Layer 0: input projection was hoisted outside the kernel.
        h_last = run_layer(gx0_ref, whh_refs[0], bhh_refs[0],
                           store_seq=(n_layers > 1))

        # Layers >= 1: input projection is time-parallel, so compute it off
        # the serial recurrence as a back-to-back matmul sweep over the
        # VMEM-resident hidden sequence, then run the h-only recurrence.
        for l in range(1, n_layers):
            wih = wih_refs[l][...]             # (H, 3H)
            bih = bih_refs[l][...]             # (1, 3H)

            def proj_step(t, _, wih=wih, bih=bih):
                gx_scr[t] = (jnp.dot(seq_scr[t], wih,
                                     preferred_element_type=jnp.float32)
                             + bih)
                return 0

            jax.lax.fori_loop(0, S, proj_step, 0, unroll=True)

            h_last = run_layer(gx_scr, whh_refs[l], bhh_refs[l],
                               store_seq=(l < n_layers - 1))

        # Final fully-connected layer fused into the same kernel.
        out_ref[...] = (
            jnp.dot(h_last, fcw_ref[...], preferred_element_type=jnp.float32)
            + fcb_ref[...]).astype(out_ref.dtype)

    def full_spec(shape):
        nd = len(shape)
        return pl.BlockSpec(shape, lambda i, _nd=nd: (0,) * _nd)

    scratch = []
    if n_layers > 1:
        scratch = [pltpu.VMEM((S, B, H), jnp.float32),
                   pltpu.VMEM((S, B, G), jnp.float32)]

    return pl.pallas_call(
        kernel,
        out_shape=jax.ShapeDtypeStruct((B, F), x.dtype),
        grid=(1,),
        in_specs=[full_spec(a.shape) for a in inputs],
        out_specs=full_spec((B, F)),
        scratch_shapes=scratch,
        compiler_params=pltpu.CompilerParams(
            dimension_semantics=("arbitrary",)),
    )(*inputs)


# ----------------------------------------------------------------------------
# Deterministic parameter init (PyTorch-style uniform(-1/sqrt(H), 1/sqrt(H)))
# ----------------------------------------------------------------------------
def init_params(key, factors, hid_dim, n_layers):
    bound = 1.0 / jnp.sqrt(jnp.float32(hid_dim))

    def u(k, shape):
        return jax.random.uniform(k, shape, jnp.float32, -bound, bound)

    layers = []
    for l in range(n_layers):
        key, k1, k2, k3, k4 = jax.random.split(key, 5)
        in_dim = factors if l == 0 else hid_dim
        layers.append(dict(
            w_ih=u(k1, (3 * hid_dim, in_dim)),     # PyTorch GRU: r|z|n stacked
            w_hh=u(k2, (3 * hid_dim, hid_dim)),
            b_ih=u(k3, (3 * hid_dim,)),
            b_hh=u(k4, (3 * hid_dim,)),
        ))
    key, kfw, kfb = jax.random.split(key, 3)
    fc_w = u(kfw, (factors, hid_dim))
    fc_b = u(kfb, (factors,))
    return dict(gru=layers, fc_w=fc_w, fc_b=fc_b)


# ----------------------------------------------------------------------------
# Pure-JAX reference (lax.scan) for a sanity check
# ----------------------------------------------------------------------------
def reference_forward(lags_vectors, params):
    x_tm = jnp.transpose(lags_vectors, (1, 0, 2))   # (S, B, F)
    h_seq = x_tm
    for layer in params["gru"]:
        H = layer["w_hh"].shape[1]
        B = h_seq.shape[1]
        w_ih, w_hh = layer["w_ih"], layer["w_hh"]
        b_ih, b_hh = layer["b_ih"], layer["b_hh"]

        def step(h, x_t, w_ih=w_ih, w_hh=w_hh, b_ih=b_ih, b_hh=b_hh, H=H):
            gi = x_t @ w_ih.T + b_ih
            gh = h @ w_hh.T + b_hh
            r = jax.nn.sigmoid(gi[:, 0:H] + gh[:, 0:H])
            z = jax.nn.sigmoid(gi[:, H:2 * H] + gh[:, H:2 * H])
            n = jnp.tanh(gi[:, 2 * H:3 * H] + r * gh[:, 2 * H:3 * H])
            h_new = (1.0 - z) * n + z * h
            return h_new, h_new

        h0 = jnp.zeros((B, H), jnp.float32)
        _, h_seq = jax.lax.scan(step, h0, h_seq)
    h_last = h_seq[-1]
    return h_last @ params["fc_w"].T + params["fc_b"]


# ----------------------------------------------------------------------------
if __name__ == "__main__":
    batch, seq, factors, hid_dim, n_layers = 2, 8, 4, 32, 2

    key = jax.random.PRNGKey(0)
    k_params, k_x = jax.random.split(key)
    params = init_params(k_params, factors, hid_dim, n_layers)
    lags_vectors = jax.random.normal(k_x, (batch, seq, factors), jnp.float32)

    fwd = jax.jit(functools.partial(lag_gru_forward, params=params))
    out = fwd(lags_vectors)
    jax.block_until_ready(out)

    ref = reference_forward(lags_vectors, params)
    assert out.shape == (batch, factors), out.shape
    assert jnp.allclose(out, ref, rtol=1e-4, atol=1e-4), (
        float(jnp.max(jnp.abs(out - ref))))

    print("KERNEL_OK")
</pallas_src>

<mosaic_0001>
module attributes {stable_mosaic.version = 11 : i64} {
  func.func @kernel(%arg0: i32, %arg1: memref<8x2x96xf32, #tpu.memory_space<vmem>>, %arg2: memref<32x96xf32, #tpu.memory_space<vmem>>, %arg3: memref<1x96xf32, #tpu.memory_space<vmem>>, %arg4: memref<32x96xf32, #tpu.memory_space<vmem>>, %arg5: memref<1x96xf32, #tpu.memory_space<vmem>>, %arg6: memref<32x96xf32, #tpu.memory_space<vmem>>, %arg7: memref<1x96xf32, #tpu.memory_space<vmem>>, %arg8: memref<32x4xf32, #tpu.memory_space<vmem>>, %arg9: memref<1x4xf32, #tpu.memory_space<vmem>>, %arg10: memref<2x4xf32, #tpu.memory_space<vmem>>, %arg11: memref<8x2x32xf32, #tpu.memory_space<vmem>>, %arg12: memref<8x2x96xf32, #tpu.memory_space<vmem>>) attributes {dimension_semantics = [#tpu.dimension_semantics<arbitrary>], iteration_bounds = array<i64: 1>, scalar_prefetch = 0 : i64, scratch_operands = 2 : i64, tpu.core_type = #tpu.core_type<tc>, window_params = [{pipeline_mode = #tpu.pipeline_mode<synchronous>, transform_indices = @transform_0, window_bounds = array<i64: 8, 2, 96>}, {pipeline_mode = #tpu.pipeline_mode<synchronous>, transform_indices = @transform_1, window_bounds = array<i64: 32, 96>}, {pipeline_mode = #tpu.pipeline_mode<synchronous>, transform_indices = @transform_2, window_bounds = array<i64: 1, 96>}, {pipeline_mode = #tpu.pipeline_mode<synchronous>, transform_indices = @transform_3, window_bounds = array<i64: 32, 96>}, {pipeline_mode = #tpu.pipeline_mode<synchronous>, transform_indices = @transform_4, window_bounds = array<i64: 1, 96>}, {pipeline_mode = #tpu.pipeline_mode<synchronous>, transform_indices = @transform_5, window_bounds = array<i64: 32, 96>}, {pipeline_mode = #tpu.pipeline_mode<synchronous>, transform_indices = @transform_6, window_bounds = array<i64: 1, 96>}, {pipeline_mode = #tpu.pipeline_mode<synchronous>, transform_indices = @transform_7, window_bounds = array<i64: 32, 4>}, {pipeline_mode = #tpu.pipeline_mode<synchronous>, transform_indices = @transform_8, window_bounds = array<i64: 1, 4>}, {pipeline_mode = #tpu.pipeline_mode<synchronous>, transform_indices = @transform_9, window_bounds = array<i64: 2, 4>}]} {
    %c0 = arith.constant 0 : index
    %c0_0 = arith.constant 0 : index
    %0 = vector.load %arg2[%c0, %c0_0] : memref<32x96xf32, #tpu.memory_space<vmem>>, vector<32x96xf32>
    %c0_1 = arith.constant 0 : index
    %c0_2 = arith.constant 0 : index
    %1 = vector.load %arg3[%c0_1, %c0_2] : memref<1x96xf32, #tpu.memory_space<vmem>>, vector<1x96xf32>
    %cst = arith.constant 0.000000e+00 : f32
    %2 = vector.broadcast %cst : f32 to vector<2x32xf32>
    %c0_i32 = arith.constant 0 : i32
    %3 = arith.index_cast %c0_i32 : i32 to index
    %c0_3 = arith.constant 0 : index
    %c0_4 = arith.constant 0 : index
    %4 = vector.load %arg1[%3, %c0_3, %c0_4] : memref<8x2x96xf32, #tpu.memory_space<vmem>>, vector<1x2x96xf32>
    %5 = vector.shape_cast %4 : vector<1x2x96xf32> to vector<2x96xf32>
    %cst_5 = arith.constant dense<0.000000e+00> : vector<2x96xf32>
    %6 = tpu.matmul %2, %0, %cst_5 {dimension_numbers = #tpu.dot_dimension_numbers<[1], [0], [0], [1], [0, 0, 1, 1], [], []>} : vector<2x32xf32>, vector<32x96xf32>, vector<2x96xf32> -> vector<2x96xf32>
    %7 = vector.broadcast %1 : vector<1x96xf32> to vector<2x96xf32>
    %8 = arith.addf %6, %7 : vector<2x96xf32>
    %9 = vector.extract_strided_slice %5 {offsets = [0, 0], sizes = [2, 32], strides = [1, 1]} : vector<2x96xf32> to vector<2x32xf32>
    %10 = vector.extract_strided_slice %8 {offsets = [0, 0], sizes = [2, 32], strides = [1, 1]} : vector<2x96xf32> to vector<2x32xf32>
    %11 = arith.addf %9, %10 : vector<2x32xf32>
    %12 = arith.negf %11 : vector<2x32xf32>
    %13 = math.exp %12 : vector<2x32xf32>
    %cst_6 = arith.constant 1.000000e+00 : f32
    %14 = vector.broadcast %cst_6 : f32 to vector<2x32xf32>
    %15 = arith.addf %14, %13 : vector<2x32xf32>
    %16 = arith.divf %14, %15 : vector<2x32xf32>
    %17 = vector.extract_strided_slice %5 {offsets = [0, 32], sizes = [2, 32], strides = [1, 1]} : vector<2x96xf32> to vector<2x32xf32>
    %18 = vector.extract_strided_slice %8 {offsets = [0, 32], sizes = [2, 32], strides = [1, 1]} : vector<2x96xf32> to vector<2x32xf32>
    %19 = arith.addf %17, %18 : vector<2x32xf32>
    %20 = arith.negf %19 : vector<2x32xf32>
    %21 = math.exp %20 : vector<2x32xf32>
    %cst_7 = arith.constant 1.000000e+00 : f32
    %22 = vector.broadcast %cst_7 : f32 to vector<2x32xf32>
    %23 = arith.addf %22, %21 : vector<2x32xf32>
    %24 = arith.divf %22, %23 : vector<2x32xf32>
    %25 = vector.extract_strided_slice %5 {offsets = [0, 64], sizes = [2, 32], strides = [1, 1]} : vector<2x96xf32> to vector<2x32xf32>
    %26 = vector.extract_strided_slice %8 {offsets = [0, 64], sizes = [2, 32], strides = [1, 1]} : vector<2x96xf32> to vector<2x32xf32>
    %27 = arith.mulf %16, %26 : vector<2x32xf32>
    %28 = arith.addf %25, %27 : vector<2x32xf32>
    %29 = math.tanh %28 : vector<2x32xf32>
    %cst_8 = arith.constant 1.000000e+00 : f32
    %30 = vector.broadcast %cst_8 : f32 to vector<2x32xf32>
    %31 = arith.subf %30, %24 : vector<2x32xf32>
    %32 = arith.mulf %31, %29 : vector<2x32xf32>
    %33 = arith.mulf %24, %2 : vector<2x32xf32>
    %34 = arith.addf %32, %33 : vector<2x32xf32>
    %35 = arith.index_cast %c0_i32 : i32 to index
    %c0_9 = arith.constant 0 : index
    %c0_10 = arith.constant 0 : index
    %36 = vector.load %arg11[%35, %c0_9, %c0_10] : memref<8x2x32xf32, #tpu.memory_space<vmem>>, vector<1x2x32xf32>
    %37 = vector.shape_cast %36 : vector<1x2x32xf32> to vector<2x32xf32>
    %38 = vector.shape_cast %34 : vector<2x32xf32> to vector<1x2x32xf32>
    tpu.vector_store %arg11[%35, %c0_9, %c0_10], %38 {strides = array<i32>} : memref<8x2x32xf32, #tpu.memory_space<vmem>>, vector<1x2x32xf32>,
    %c1_i32 = arith.constant 1 : i32
    %39 = arith.index_cast %c1_i32 : i32 to index
    %c0_11 = arith.constant 0 : index
    %c0_12 = arith.constant 0 : index
    %40 = vector.load %arg1[%39, %c0_11, %c0_12] : memref<8x2x96xf32, #tpu.memory_space<vmem>>, vector<1x2x96xf32>
    %41 = vector.shape_cast %40 : vector<1x2x96xf32> to vector<2x96xf32>
    %cst_13 = arith.constant dense<0.000000e+00> : vector<2x96xf32>
    %42 = tpu.matmul %34, %0, %cst_13 {dimension_numbers = #tpu.dot_dimension_numbers<[1], [0], [0], [1], [0, 0, 1, 1], [], []>} : vector<2x32xf32>, vector<32x96xf32>, vector<2x96xf32> -> vector<2x96xf32>
    %43 = vector.broadcast %1 : vector<1x96xf32> to vector<2x96xf32>
    %44 = arith.addf %42, %43 : vector<2x96xf32>
    %45 = vector.extract_strided_slice %41 {offsets = [0, 0], sizes = [2, 32], strides = [1, 1]} : vector<2x96xf32> to vector<2x32xf32>
    %46 = vector.extract_strided_slice %44 {offsets = [0, 0], sizes = [2, 32], strides = [1, 1]} : vector<2x96xf32> to vector<2x32xf32>
    %47 = arith.addf %45, %46 : vector<2x32xf32>
    %48 = arith.negf %47 : vector<2x32xf32>
    %49 = math.exp %48 : vector<2x32xf32>
    %cst_14 = arith.constant 1.000000e+00 : f32
    %50 = vector.broadcast %cst_14 : f32 to vector<2x32xf32>
    %51 = arith.addf %50, %49 : vector<2x32xf32>
    %52 = arith.divf %50, %51 : vector<2x32xf32>
    %53 = vector.extract_strided_slice %41 {offsets = [0, 32], sizes = [2, 32], strides = [1, 1]} : vector<2x96xf32> to vector<2x32xf32>
    %54 = vector.extract_strided_slice %44 {offsets = [0, 32], sizes = [2, 32], strides = [1, 1]} : vector<2x96xf32> to vector<2x32xf32>
    %55 = arith.addf %53, %54 : vector<2x32xf32>
    %56 = arith.negf %55 : vector<2x32xf32>
    %57 = math.exp %56 : vector<2x32xf32>
    %cst_15 = arith.constant 1.000000e+00 : f32
    %58 = vector.broadcast %cst_15 : f32 to vector<2x32xf32>
    %59 = arith.addf %58, %57 : vector<2x32xf32>
    %60 = arith.divf %58, %59 : vector<2x32xf32>
    %61 = vector.extract_strided_slice %41 {offsets = [0, 64], sizes = [2, 32], strides = [1, 1]} : vector<2x96xf32> to vector<2x32xf32>
    %62 = vector.extract_strided_slice %44 {offsets = [0, 64], sizes = [2, 32], strides = [1, 1]} : vector<2x96xf32> to vector<2x32xf32>
    %63 = arith.mulf %52, %62 : vector<2x32xf32>
    %64 = arith.addf %61, %63 : vector<2x32xf32>
    %65 = math.tanh %64 : vector<2x32xf32>
    %cst_16 = arith.constant 1.000000e+00 : f32
    %66 = vector.broadcast %cst_16 : f32 to vector<2x32xf32>
    %67 = arith.subf %66, %60 : vector<2x32xf32>
    %68 = arith.mulf %67, %65 : vector<2x32xf32>
    %69 = arith.mulf %60, %34 : vector<2x32xf32>
    %70 = arith.addf %68, %69 : vector<2x32xf32>
    %71 = arith.index_cast %c1_i32 : i32 to index
    %c0_17 = arith.constant 0 : index
    %c0_18 = arith.constant 0 : index
    %72 = vector.load %arg11[%71, %c0_17, %c0_18] : memref<8x2x32xf32, #tpu.memory_space<vmem>>, vector<1x2x32xf32>
    %73 = vector.shape_cast %72 : vector<1x2x32xf32> to vector<2x32xf32>
    %74 = vector.shape_cast %70 : vector<2x32xf32> to vector<1x2x32xf32>
    tpu.vector_store %arg11[%71, %c0_17, %c0_18], %74 {strides = array<i32>} : memref<8x2x32xf32, #tpu.memory_space<vmem>>, vector<1x2x32xf32>,
    %c2_i32 = arith.constant 2 : i32
    %75 = arith.index_cast %c2_i32 : i32 to index
    %c0_19 = arith.constant 0 : index
    %c0_20 = arith.constant 0 : index
    %76 = vector.load %arg1[%75, %c0_19, %c0_20] : memref<8x2x96xf32, #tpu.memory_space<vmem>>, vector<1x2x96xf32>
    %77 = vector.shape_cast %76 : vector<1x2x96xf32> to vector<2x96xf32>
    %cst_21 = arith.constant dense<0.000000e+00> : vector<2x96xf32>
    %78 = tpu.matmul %70, %0, %cst_21 {dimension_numbers = #tpu.dot_dimension_numbers<[1], [0], [0], [1], [0, 0, 1, 1], [], []>} : vector<2x32xf32>, vector<32x96xf32>, vector<2x96xf32> -> vector<2x96xf32>
    %79 = vector.broadcast %1 : vector<1x96xf32> to vector<2x96xf32>
    %80 = arith.addf %78, %79 : vector<2x96xf32>
    %81 = vector.extract_strided_slice %77 {offsets = [0, 0], sizes = [2, 32], strides = [1, 1]} : vector<2x96xf32> to vector<2x32xf32>
    %82 = vector.extract_strided_slice %80 {offsets = [0, 0], sizes = [2, 32], strides = [1, 1]} : vector<2x96xf32> to vector<2x32xf32>
    %83 = arith.addf %81, %82 : vector<2x32xf32>
    %84 = arith.negf %83 : vector<2x32xf32>
    %85 = math.exp %84 : vector<2x32xf32>
    %cst_22 = arith.constant 1.000000e+00 : f32
    %86 = vector.broadcast %cst_22 : f32 to vector<2x32xf32>
    %87 = arith.addf %86, %85 : vector<2x32xf32>
    %88 = arith.divf %86, %87 : vector<2x32xf32>
    %89 = vector.extract_strided_slice %77 {offsets = [0, 32], sizes = [2, 32], strides = [1, 1]} : vector<2x96xf32> to vector<2x32xf32>
    %90 = vector.extract_strided_slice %80 {offsets = [0, 32], sizes = [2, 32], strides = [1, 1]} : vector<2x96xf32> to vector<2x32xf32>
    %91 = arith.addf %89, %90 : vector<2x32xf32>
    %92 = arith.negf %91 : vector<2x32xf32>
    %93 = math.exp %92 : vector<2x32xf32>
    %cst_23 = arith.constant 1.000000e+00 : f32
    %94 = vector.broadcast %cst_23 : f32 to vector<2x32xf32>
    %95 = arith.addf %94, %93 : vector<2x32xf32>
    %96 = arith.divf %94, %95 : vector<2x32xf32>
    %97 = vector.extract_strided_slice %77 {offsets = [0, 64], sizes = [2, 32], strides = [1, 1]} : vector<2x96xf32> to vector<2x32xf32>
    %98 = vector.extract_strided_slice %80 {offsets = [0, 64], sizes = [2, 32], strides = [1, 1]} : vector<2x96xf32> to vector<2x32xf32>
    %99 = arith.mulf %88, %98 : vector<2x32xf32>
    %100 = arith.addf %97, %99 : vector<2x32xf32>
    %101 = math.tanh %100 : vector<2x32xf32>
    %cst_24 = arith.constant 1.000000e+00 : f32
    %102 = vector.broadcast %cst_24 : f32 to vector<2x32xf32>
    %103 = arith.subf %102, %96 : vector<2x32xf32>
    %104 = arith.mulf %103, %101 : vector<2x32xf32>
    %105 = arith.mulf %96, %70 : vector<2x32xf32>
    %106 = arith.addf %104, %105 : vector<2x32xf32>
    %107 = arith.index_cast %c2_i32 : i32 to index
    %c0_25 = arith.constant 0 : index
    %c0_26 = arith.constant 0 : index
    %108 = vector.load %arg11[%107, %c0_25, %c0_26] : memref<8x2x32xf32, #tpu.memory_space<vmem>>, vector<1x2x32xf32>
    %109 = vector.shape_cast %108 : vector<1x2x32xf32> to vector<2x32xf32>
    %110 = vector.shape_cast %106 : vector<2x32xf32> to vector<1x2x32xf32>
    tpu.vector_store %arg11[%107, %c0_25, %c0_26], %110 {strides = array<i32>} : memref<8x2x32xf32, #tpu.memory_space<vmem>>, vector<1x2x32xf32>,
    %c3_i32 = arith.constant 3 : i32
    %111 = arith.index_cast %c3_i32 : i32 to index
    %c0_27 = arith.constant 0 : index
    %c0_28 = arith.constant 0 : index
    %112 = vector.load %arg1[%111, %c0_27, %c0_28] : memref<8x2x96xf32, #tpu.memory_space<vmem>>, vector<1x2x96xf32>
    %113 = vector.shape_cast %112 : vector<1x2x96xf32> to vector<2x96xf32>
    %cst_29 = arith.constant dense<0.000000e+00> : vector<2x96xf32>
    %114 = tpu.matmul %106, %0, %cst_29 {dimension_numbers = #tpu.dot_dimension_numbers<[1], [0], [0], [1], [0, 0, 1, 1], [], []>} : vector<2x32xf32>, vector<32x96xf32>, vector<2x96xf32> -> vector<2x96xf32>
    %115 = vector.broadcast %1 : vector<1x96xf32> to vector<2x96xf32>
    %116 = arith.addf %114, %115 : vector<2x96xf32>
    %117 = vector.extract_strided_slice %113 {offsets = [0, 0], sizes = [2, 32], strides = [1, 1]} : vector<2x96xf32> to vector<2x32xf32>
    %118 = vector.extract_strided_slice %116 {offsets = [0, 0], sizes = [2, 32], strides = [1, 1]} : vector<2x96xf32> to vector<2x32xf32>
    %119 = arith.addf %117, %118 : vector<2x32xf32>
    %120 = arith.negf %119 : vector<2x32xf32>
    %121 = math.exp %120 : vector<2x32xf32>
    %cst_30 = arith.constant 1.000000e+00 : f32
    %122 = vector.broadcast %cst_30 : f32 to vector<2x32xf32>
    %123 = arith.addf %122, %121 : vector<2x32xf32>
    %124 = arith.divf %122, %123 : vector<2x32xf32>
    %125 = vector.extract_strided_slice %113 {offsets = [0, 32], sizes = [2, 32], strides = [1, 1]} : vector<2x96xf32> to vector<2x32xf32>
    %126 = vector.extract_strided_slice %116 {offsets = [0, 32], sizes = [2, 32], strides = [1, 1]} : vector<2x96xf32> to vector<2x32xf32>
    %127 = arith.addf %125, %126 : vector<2x32xf32>
    %128 = arith.negf %127 : vector<2x32xf32>
    %129 = math.exp %128 : vector<2x32xf32>
    %cst_31 = arith.constant 1.000000e+00 : f32
    %130 = vector.broadcast %cst_31 : f32 to vector<2x32xf32>
    %131 = arith.addf %130, %129 : vector<2x32xf32>
    %132 = arith.divf %130, %131 : vector<2x32xf32>
    %133 = vector.extract_strided_slice %113 {offsets = [0, 64], sizes = [2, 32], strides = [1, 1]} : vector<2x96xf32> to vector<2x32xf32>
    %134 = vector.extract_strided_slice %116 {offsets = [0, 64], sizes = [2, 32], strides = [1, 1]} : vector<2x96xf32> to vector<2x32xf32>
    %135 = arith.mulf %124, %134 : vector<2x32xf32>
    %136 = arith.addf %133, %135 : vector<2x32xf32>
    %137 = math.tanh %136 : vector<2x32xf32>
    %cst_32 = arith.constant 1.000000e+00 : f32
    %138 = vector.broadcast %cst_32 : f32 to vector<2x32xf32>
    %139 = arith.subf %138, %132 : vector<2x32xf32>
    %140 = arith.mulf %139, %137 : vector<2x32xf32>
    %141 = arith.mulf %132, %106 : vector<2x32xf32>
    %142 = arith.addf %140, %141 : vector<2x32xf32>
    %143 = arith.index_cast %c3_i32 : i32 to index
    %c0_33 = arith.constant 0 : index
    %c0_34 = arith.constant 0 : index
    %144 = vector.load %arg11[%143, %c0_33, %c0_34] : memref<8x2x32xf32, #tpu.memory_space<vmem>>, vector<1x2x32xf32>
    %145 = vector.shape_cast %144 : vector<1x2x32xf32> to vector<2x32xf32>
    %146 = vector.shape_cast %142 : vector<2x32xf32> to vector<1x2x32xf32>
    tpu.vector_store %arg11[%143, %c0_33, %c0_34], %146 {strides = array<i32>} : memref<8x2x32xf32, #tpu.memory_space<vmem>>, vector<1x2x32xf32>,
    %c4_i32 = arith.constant 4 : i32
    %147 = arith.index_cast %c4_i32 : i32 to index
    %c0_35 = arith.constant 0 : index
    %c0_36 = arith.constant 0 : index
    %148 = vector.load %arg1[%147, %c0_35, %c0_36] : memref<8x2x96xf32, #tpu.memory_space<vmem>>, vector<1x2x96xf32>
    %149 = vector.shape_cast %148 : vector<1x2x96xf32> to vector<2x96xf32>
    %cst_37 = arith.constant dense<0.000000e+00> : vector<2x96xf32>
    %150 = tpu.matmul %142, %0, %cst_37 {dimension_numbers = #tpu.dot_dimension_numbers<[1], [0], [0], [1], [0, 0, 1, 1], [], []>} : vector<2x32xf32>, vector<32x96xf32>, vector<2x96xf32> -> vector<2x96xf32>
    %151 = vector.broadcast %1 : vector<1x96xf32> to vector<2x96xf32>
    %152 = arith.addf %150, %151 : vector<2x96xf32>
    %153 = vector.extract_strided_slice %149 {offsets = [0, 0], sizes = [2, 32], strides = [1, 1]} : vector<2x96xf32> to vector<2x32xf32>
    %154 = vector.extract_strided_slice %152 {offsets = [0, 0], sizes = [2, 32], strides = [1, 1]} : vector<2x96xf32> to vector<2x32xf32>
    %155 = arith.addf %153, %154 : vector<2x32xf32>
    %156 = arith.negf %155 : vector<2x32xf32>
    %157 = math.exp %156 : vector<2x32xf32>
    %cst_38 = arith.constant 1.000000e+00 : f32
    %158 = vector.broadcast %cst_38 : f32 to vector<2x32xf32>
    %159 = arith.addf %158, %157 : vector<2x32xf32>
    %160 = arith.divf %158, %159 : vector<2x32xf32>
    %161 = vector.extract_strided_slice %149 {offsets = [0, 32], sizes = [2, 32], strides = [1, 1]} : vector<2x96xf32> to vector<2x32xf32>
    %162 = vector.extract_strided_slice %152 {offsets = [0, 32], sizes = [2, 32], strides = [1, 1]} : vector<2x96xf32> to vector<2x32xf32>
    %163 = arith.addf %161, %162 : vector<2x32xf32>
    %164 = arith.negf %163 : vector<2x32xf32>
    %165 = math.exp %164 : vector<2x32xf32>
    %cst_39 = arith.constant 1.000000e+00 : f32
    %166 = vector.broadcast %cst_39 : f32 to vector<2x32xf32>
    %167 = arith.addf %166, %165 : vector<2x32xf32>
    %168 = arith.divf %166, %167 : vector<2x32xf32>
    %169 = vector.extract_strided_slice %149 {offsets = [0, 64], sizes = [2, 32], strides = [1, 1]} : vector<2x96xf32> to vector<2x32xf32>
    %170 = vector.extract_strided_slice %152 {offsets = [0, 64], sizes = [2, 32], strides = [1, 1]} : vector<2x96xf32> to vector<2x32xf32>
    %171 = arith.mulf %160, %170 : vector<2x32xf32>
    %172 = arith.addf %169, %171 : vector<2x32xf32>
    %173 = math.tanh %172 : vector<2x32xf32>
    %cst_40 = arith.constant 1.000000e+00 : f32
    %174 = vector.broadcast %cst_40 : f32 to vector<2x32xf32>
    %175 = arith.subf %174, %168 : vector<2x32xf32>
    %176 = arith.mulf %175, %173 : vector<2x32xf32>
    %177 = arith.mulf %168, %142 : vector<2x32xf32>
    %178 = arith.addf %176, %177 : vector<2x32xf32>
    %179 = arith.index_cast %c4_i32 : i32 to index
    %c0_41 = arith.constant 0 : index
    %c0_42 = arith.constant 0 : index
    %180 = vector.load %arg11[%179, %c0_41, %c0_42] : memref<8x2x32xf32, #tpu.memory_space<vmem>>, vector<1x2x32xf32>
    %181 = vector.shape_cast %180 : vector<1x2x32xf32> to vector<2x32xf32>
    %182 = vector.shape_cast %178 : vector<2x32xf32> to vector<1x2x32xf32>
    tpu.vector_store %arg11[%179, %c0_41, %c0_42], %182 {strides = array<i32>} : memref<8x2x32xf32, #tpu.memory_space<vmem>>, vector<1x2x32xf32>,
    %c5_i32 = arith.constant 5 : i32
    %183 = arith.index_cast %c5_i32 : i32 to index
    %c0_43 = arith.constant 0 : index
    %c0_44 = arith.constant 0 : index
    %184 = vector.load %arg1[%183, %c0_43, %c0_44] : memref<8x2x96xf32, #tpu.memory_space<vmem>>, vector<1x2x96xf32>
    %185 = vector.shape_cast %184 : vector<1x2x96xf32> to vector<2x96xf32>
    %cst_45 = arith.constant dense<0.000000e+00> : vector<2x96xf32>
    %186 = tpu.matmul %178, %0, %cst_45 {dimension_numbers = #tpu.dot_dimension_numbers<[1], [0], [0], [1], [0, 0, 1, 1], [], []>} : vector<2x32xf32>, vector<32x96xf32>, vector<2x96xf32> -> vector<2x96xf32>
    %187 = vector.broadcast %1 : vector<1x96xf32> to vector<2x96xf32>
    %188 = arith.addf %186, %187 : vector<2x96xf32>
    %189 = vector.extract_strided_slice %185 {offsets = [0, 0], sizes = [2, 32], strides = [1, 1]} : vector<2x96xf32> to vector<2x32xf32>
    %190 = vector.extract_strided_slice %188 {offsets = [0, 0], sizes = [2, 32], strides = [1, 1]} : vector<2x96xf32> to vector<2x32xf32>
    %191 = arith.addf %189, %190 : vector<2x32xf32>
    %192 = arith.negf %191 : vector<2x32xf32>
    %193 = math.exp %192 : vector<2x32xf32>
    %cst_46 = arith.constant 1.000000e+00 : f32
    %194 = vector.broadcast %cst_46 : f32 to vector<2x32xf32>
    %195 = arith.addf %194, %193 : vector<2x32xf32>
    %196 = arith.divf %194, %195 : vector<2x32xf32>
    %197 = vector.extract_strided_slice %185 {offsets = [0, 32], sizes = [2, 32], strides = [1, 1]} : vector<2x96xf32> to vector<2x32xf32>
    %198 = vector.extract_strided_slice %188 {offsets = [0, 32], sizes = [2, 32], strides = [1, 1]} : vector<2x96xf32> to vector<2x32xf32>
    %199 = arith.addf %197, %198 : vector<2x32xf32>
    %200 = arith.negf %199 : vector<2x32xf32>
    %201 = math.exp %200 : vector<2x32xf32>
    %cst_47 = arith.constant 1.000000e+00 : f32
    %202 = vector.broadcast %cst_47 : f32 to vector<2x32xf32>
    %203 = arith.addf %202, %201 : vector<2x32xf32>
    %204 = arith.divf %202, %203 : vector<2x32xf32>
    %205 = vector.extract_strided_slice %185 {offsets = [0, 64], sizes = [2, 32], strides = [1, 1]} : vector<2x96xf32> to vector<2x32xf32>
    %206 = vector.extract_strided_slice %188 {offsets = [0, 64], sizes = [2, 32], strides = [1, 1]} : vector<2x96xf32> to vector<2x32xf32>
    %207 = arith.mulf %196, %206 : vector<2x32xf32>
    %208 = arith.addf %205, %207 : vector<2x32xf32>
    %209 = math.tanh %208 : vector<2x32xf32>
    %cst_48 = arith.constant 1.000000e+00 : f32
    %210 = vector.broadcast %cst_48 : f32 to vector<2x32xf32>
    %211 = arith.subf %210, %204 : vector<2x32xf32>
    %212 = arith.mulf %211, %209 : vector<2x32xf32>
    %213 = arith.mulf %204, %178 : vector<2x32xf32>
    %214 = arith.addf %212, %213 : vector<2x32xf32>
    %215 = arith.index_cast %c5_i32 : i32 to index
    %c0_49 = arith.constant 0 : index
    %c0_50 = arith.constant 0 : index
    %216 = vector.load %arg11[%215, %c0_49, %c0_50] : memref<8x2x32xf32, #tpu.memory_space<vmem>>, vector<1x2x32xf32>
    %217 = vector.shape_cast %216 : vector<1x2x32xf32> to vector<2x32xf32>
    %218 = vector.shape_cast %214 : vector<2x32xf32> to vector<1x2x32xf32>
    tpu.vector_store %arg11[%215, %c0_49, %c0_50], %218 {strides = array<i32>} : memref<8x2x32xf32, #tpu.memory_space<vmem>>, vector<1x2x32xf32>,
    %c6_i32 = arith.constant 6 : i32
    %219 = arith.index_cast %c6_i32 : i32 to index
    %c0_51 = arith.constant 0 : index
    %c0_52 = arith.constant 0 : index
    %220 = vector.load %arg1[%219, %c0_51, %c0_52] : memref<8x2x96xf32, #tpu.memory_space<vmem>>, vector<1x2x96xf32>
    %221 = vector.shape_cast %220 : vector<1x2x96xf32> to vector<2x96xf32>
    %cst_53 = arith.constant dense<0.000000e+00> : vector<2x96xf32>
    %222 = tpu.matmul %214, %0, %cst_53 {dimension_numbers = #tpu.dot_dimension_numbers<[1], [0], [0], [1], [0, 0, 1, 1], [], []>} : vector<2x32xf32>, vector<32x96xf32>, vector<2x96xf32> -> vector<2x96xf32>
    %223 = vector.broadcast %1 : vector<1x96xf32> to vector<2x96xf32>
    %224 = arith.addf %222, %223 : vector<2x96xf32>
    %225 = vector.extract_strided_slice %221 {offsets = [0, 0], sizes = [2, 32], strides = [1, 1]} : vector<2x96xf32> to vector<2x32xf32>
    %226 = vector.extract_strided_slice %224 {offsets = [0, 0], sizes = [2, 32], strides = [1, 1]} : vector<2x96xf32> to vector<2x32xf32>
    %227 = arith.addf %225, %226 : vector<2x32xf32>
    %228 = arith.negf %227 : vector<2x32xf32>
    %229 = math.exp %228 : vector<2x32xf32>
    %cst_54 = arith.constant 1.000000e+00 : f32
    %230 = vector.broadcast %cst_54 : f32 to vector<2x32xf32>
    %231 = arith.addf %230, %229 : vector<2x32xf32>
    %232 = arith.divf %230, %231 : vector<2x32xf32>
    %233 = vector.extract_strided_slice %221 {offsets = [0, 32], sizes = [2, 32], strides = [1, 1]} : vector<2x96xf32> to vector<2x32xf32>
    %234 = vector.extract_strided_slice %224 {offsets = [0, 32], sizes = [2, 32], strides = [1, 1]} : vector<2x96xf32> to vector<2x32xf32>
    %235 = arith.addf %233, %234 : vector<2x32xf32>
    %236 = arith.negf %235 : vector<2x32xf32>
    %237 = math.exp %236 : vector<2x32xf32>
    %cst_55 = arith.constant 1.000000e+00 : f32
    %238 = vector.broadcast %cst_55 : f32 to vector<2x32xf32>
    %239 = arith.addf %238, %237 : vector<2x32xf32>
    %240 = arith.divf %238, %239 : vector<2x32xf32>
    %241 = vector.extract_strided_slice %221 {offsets = [0, 64], sizes = [2, 32], strides = [1, 1]} : vector<2x96xf32> to vector<2x32xf32>
    %242 = vector.extract_strided_slice %224 {offsets = [0, 64], sizes = [2, 32], strides = [1, 1]} : vector<2x96xf32> to vector<2x32xf32>
    %243 = arith.mulf %232, %242 : vector<2x32xf32>
    %244 = arith.addf %241, %243 : vector<2x32xf32>
    %245 = math.tanh %244 : vector<2x32xf32>
    %cst_56 = arith.constant 1.000000e+00 : f32
    %246 = vector.broadcast %cst_56 : f32 to vector<2x32xf32>
    %247 = arith.subf %246, %240 : vector<2x32xf32>
    %248 = arith.mulf %247, %245 : vector<2x32xf32>
    %249 = arith.mulf %240, %214 : vector<2x32xf32>
    %250 = arith.addf %248, %249 : vector<2x32xf32>
    %251 = arith.index_cast %c6_i32 : i32 to index
    %c0_57 = arith.constant 0 : index
    %c0_58 = arith.constant 0 : index
    %252 = vector.load %arg11[%251, %c0_57, %c0_58] : memref<8x2x32xf32, #tpu.memory_space<vmem>>, vector<1x2x32xf32>
    %253 = vector.shape_cast %252 : vector<1x2x32xf32> to vector<2x32xf32>
    %254 = vector.shape_cast %250 : vector<2x32xf32> to vector<1x2x32xf32>
    tpu.vector_store %arg11[%251, %c0_57, %c0_58], %254 {strides = array<i32>} : memref<8x2x32xf32, #tpu.memory_space<vmem>>, vector<1x2x32xf32>,
    %c7_i32 = arith.constant 7 : i32
    %255 = arith.index_cast %c7_i32 : i32 to index
    %c0_59 = arith.constant 0 : index
    %c0_60 = arith.constant 0 : index
    %256 = vector.load %arg1[%255, %c0_59, %c0_60] : memref<8x2x96xf32, #tpu.memory_space<vmem>>, vector<1x2x96xf32>
    %257 = vector.shape_cast %256 : vector<1x2x96xf32> to vector<2x96xf32>
    %cst_61 = arith.constant dense<0.000000e+00> : vector<2x96xf32>
    %258 = tpu.matmul %250, %0, %cst_61 {dimension_numbers = #tpu.dot_dimension_numbers<[1], [0], [0], [1], [0, 0, 1, 1], [], []>} : vector<2x32xf32>, vector<32x96xf32>, vector<2x96xf32> -> vector<2x96xf32>
    %259 = vector.broadcast %1 : vector<1x96xf32> to vector<2x96xf32>
    %260 = arith.addf %258, %259 : vector<2x96xf32>
    %261 = vector.extract_strided_slice %257 {offsets = [0, 0], sizes = [2, 32], strides = [1, 1]} : vector<2x96xf32> to vector<2x32xf32>
    %262 = vector.extract_strided_slice %260 {offsets = [0, 0], sizes = [2, 32], strides = [1, 1]} : vector<2x96xf32> to vector<2x32xf32>
    %263 = arith.addf %261, %262 : vector<2x32xf32>
    %264 = arith.negf %263 : vector<2x32xf32>
    %265 = math.exp %264 : vector<2x32xf32>
    %cst_62 = arith.constant 1.000000e+00 : f32
    %266 = vector.broadcast %cst_62 : f32 to vector<2x32xf32>
    %267 = arith.addf %266, %265 : vector<2x32xf32>
    %268 = arith.divf %266, %267 : vector<2x32xf32>
    %269 = vector.extract_strided_slice %257 {offsets = [0, 32], sizes = [2, 32], strides = [1, 1]} : vector<2x96xf32> to vector<2x32xf32>
    %270 = vector.extract_strided_slice %260 {offsets = [0, 32], sizes = [2, 32], strides = [1, 1]} : vector<2x96xf32> to vector<2x32xf32>
    %271 = arith.addf %269, %270 : vector<2x32xf32>
    %272 = arith.negf %271 : vector<2x32xf32>
    %273 = math.exp %272 : vector<2x32xf32>
    %cst_63 = arith.constant 1.000000e+00 : f32
    %274 = vector.broadcast %cst_63 : f32 to vector<2x32xf32>
    %275 = arith.addf %274, %273 : vector<2x32xf32>
    %276 = arith.divf %274, %275 : vector<2x32xf32>
    %277 = vector.extract_strided_slice %257 {offsets = [0, 64], sizes = [2, 32], strides = [1, 1]} : vector<2x96xf32> to vector<2x32xf32>
    %278 = vector.extract_strided_slice %260 {offsets = [0, 64], sizes = [2, 32], strides = [1, 1]} : vector<2x96xf32> to vector<2x32xf32>
    %279 = arith.mulf %268, %278 : vector<2x32xf32>
    %280 = arith.addf %277, %279 : vector<2x32xf32>
    %281 = math.tanh %280 : vector<2x32xf32>
    %cst_64 = arith.constant 1.000000e+00 : f32
    %282 = vector.broadcast %cst_64 : f32 to vector<2x32xf32>
    %283 = arith.subf %282, %276 : vector<2x32xf32>
    %284 = arith.mulf %283, %281 : vector<2x32xf32>
    %285 = arith.mulf %276, %250 : vector<2x32xf32>
    %286 = arith.addf %284, %285 : vector<2x32xf32>
    %287 = arith.index_cast %c7_i32 : i32 to index
    %c0_65 = arith.constant 0 : index
    %c0_66 = arith.constant 0 : index
    %288 = vector.load %arg11[%287, %c0_65, %c0_66] : memref<8x2x32xf32, #tpu.memory_space<vmem>>, vector<1x2x32xf32>
    %289 = vector.shape_cast %288 : vector<1x2x32xf32> to vector<2x32xf32>
    %290 = vector.shape_cast %286 : vector<2x32xf32> to vector<1x2x32xf32>
    tpu.vector_store %arg11[%287, %c0_65, %c0_66], %290 {strides = array<i32>} : memref<8x2x32xf32, #tpu.memory_space<vmem>>, vector<1x2x32xf32>,
    %c8_i32 = arith.constant 8 : i32
    %c0_67 = arith.constant 0 : index
    %c0_68 = arith.constant 0 : index
    %291 = vector.load %arg6[%c0_67, %c0_68] : memref<32x96xf32, #tpu.memory_space<vmem>>, vector<32x96xf32>
    %c0_69 = arith.constant 0 : index
    %c0_70 = arith.constant 0 : index
    %292 = vector.load %arg7[%c0_69, %c0_70] : memref<1x96xf32, #tpu.memory_space<vmem>>, vector<1x96xf32>
    %c0_i32_71 = arith.constant 0 : i32
    %293 = arith.index_cast %c0_i32_71 : i32 to index
    %c0_72 = arith.constant 0 : index
    %c0_73 = arith.constant 0 : index
    %294 = vector.load %arg11[%293, %c0_72, %c0_73] : memref<8x2x32xf32, #tpu.memory_space<vmem>>, vector<1x2x32xf32>
    %295 = vector.shape_cast %294 : vector<1x2x32xf32> to vector<2x32xf32>
    %cst_74 = arith.constant dense<0.000000e+00> : vector<2x96xf32>
    %296 = tpu.matmul %295, %291, %cst_74 {dimension_numbers = #tpu.dot_dimension_numbers<[1], [0], [0], [1], [0, 0, 1, 1], [], []>} : vector<2x32xf32>, vector<32x96xf32>, vector<2x96xf32> -> vector<2x96xf32>
    %297 = vector.broadcast %292 : vector<1x96xf32> to vector<2x96xf32>
    %298 = arith.addf %296, %297 : vector<2x96xf32>
    %299 = arith.index_cast %c0_i32_71 : i32 to index
    %c0_75 = arith.constant 0 : index
    %c0_76 = arith.constant 0 : index
    %300 = vector.load %arg12[%299, %c0_75, %c0_76] : memref<8x2x96xf32, #tpu.memory_space<vmem>>, vector<1x2x96xf32>
    %301 = vector.shape_cast %300 : vector<1x2x96xf32> to vector<2x96xf32>
    %302 = vector.shape_cast %298 : vector<2x96xf32> to vector<1x2x96xf32>
    tpu.vector_store %arg12[%299, %c0_75, %c0_76], %302 {strides = array<i32>} : memref<8x2x96xf32, #tpu.memory_space<vmem>>, vector<1x2x96xf32>,
    %c1_i32_77 = arith.constant 1 : i32
    %303 = arith.index_cast %c1_i32_77 : i32 to index
    %c0_78 = arith.constant 0 : index
    %c0_79 = arith.constant 0 : index
    %304 = vector.load %arg11[%303, %c0_78, %c0_79] : memref<8x2x32xf32, #tpu.memory_space<vmem>>, vector<1x2x32xf32>
    %305 = vector.shape_cast %304 : vector<1x2x32xf32> to vector<2x32xf32>
    %cst_80 = arith.constant dense<0.000000e+00> : vector<2x96xf32>
    %306 = tpu.matmul %305, %291, %cst_80 {dimension_numbers = #tpu.dot_dimension_numbers<[1], [0], [0], [1], [0, 0, 1, 1], [], []>} : vector<2x32xf32>, vector<32x96xf32>, vector<2x96xf32> -> vector<2x96xf32>
    %307 = vector.broadcast %292 : vector<1x96xf32> to vector<2x96xf32>
    %308 = arith.addf %306, %307 : vector<2x96xf32>
    %309 = arith.index_cast %c1_i32_77 : i32 to index
    %c0_81 = arith.constant 0 : index
    %c0_82 = arith.constant 0 : index
    %310 = vector.load %arg12[%309, %c0_81, %c0_82] : memref<8x2x96xf32, #tpu.memory_space<vmem>>, vector<1x2x96xf32>
    %311 = vector.shape_cast %310 : vector<1x2x96xf32> to vector<2x96xf32>
    %312 = vector.shape_cast %308 : vector<2x96xf32> to vector<1x2x96xf32>
    tpu.vector_store %arg12[%309, %c0_81, %c0_82], %312 {strides = array<i32>} : memref<8x2x96xf32, #tpu.memory_space<vmem>>, vector<1x2x96xf32>,
    %c2_i32_83 = arith.constant 2 : i32
    %313 = arith.index_cast %c2_i32_83 : i32 to index
    %c0_84 = arith.constant 0 : index
    %c0_85 = arith.constant 0 : index
    %314 = vector.load %arg11[%313, %c0_84, %c0_85] : memref<8x2x32xf32, #tpu.memory_space<vmem>>, vector<1x2x32xf32>
    %315 = vector.shape_cast %314 : vector<1x2x32xf32> to vector<2x32xf32>
    %cst_86 = arith.constant dense<0.000000e+00> : vector<2x96xf32>
    %316 = tpu.matmul %315, %291, %cst_86 {dimension_numbers = #tpu.dot_dimension_numbers<[1], [0], [0], [1], [0, 0, 1, 1], [], []>} : vector<2x32xf32>, vector<32x96xf32>, vector<2x96xf32> -> vector<2x96xf32>
    %317 = vector.broadcast %292 : vector<1x96xf32> to vector<2x96xf32>
    %318 = arith.addf %316, %317 : vector<2x96xf32>
    %319 = arith.index_cast %c2_i32_83 : i32 to index
    %c0_87 = arith.constant 0 : index
    %c0_88 = arith.constant 0 : index
    %320 = vector.load %arg12[%319, %c0_87, %c0_88] : memref<8x2x96xf32, #tpu.memory_space<vmem>>, vector<1x2x96xf32>
    %321 = vector.shape_cast %320 : vector<1x2x96xf32> to vector<2x96xf32>
    %322 = vector.shape_cast %318 : vector<2x96xf32> to vector<1x2x96xf32>
    tpu.vector_store %arg12[%319, %c0_87, %c0_88], %322 {strides = array<i32>} : memref<8x2x96xf32, #tpu.memory_space<vmem>>, vector<1x2x96xf32>,
    %c3_i32_89 = arith.constant 3 : i32
    %323 = arith.index_cast %c3_i32_89 : i32 to index
    %c0_90 = arith.constant 0 : index
    %c0_91 = arith.constant 0 : index
    %324 = vector.load %arg11[%323, %c0_90, %c0_91] : memref<8x2x32xf32, #tpu.memory_space<vmem>>, vector<1x2x32xf32>
    %325 = vector.shape_cast %324 : vector<1x2x32xf32> to vector<2x32xf32>
    %cst_92 = arith.constant dense<0.000000e+00> : vector<2x96xf32>
    %326 = tpu.matmul %325, %291, %cst_92 {dimension_numbers = #tpu.dot_dimension_numbers<[1], [0], [0], [1], [0, 0, 1, 1], [], []>} : vector<2x32xf32>, vector<32x96xf32>, vector<2x96xf32> -> vector<2x96xf32>
    %327 = vector.broadcast %292 : vector<1x96xf32> to vector<2x96xf32>
    %328 = arith.addf %326, %327 : vector<2x96xf32>
    %329 = arith.index_cast %c3_i32_89 : i32 to index
    %c0_93 = arith.constant 0 : index
    %c0_94 = arith.constant 0 : index
    %330 = vector.load %arg12[%329, %c0_93, %c0_94] : memref<8x2x96xf32, #tpu.memory_space<vmem>>, vector<1x2x96xf32>
    %331 = vector.shape_cast %330 : vector<1x2x96xf32> to vector<2x96xf32>
    %332 = vector.shape_cast %328 : vector<2x96xf32> to vector<1x2x96xf32>
    tpu.vector_store %arg12[%329, %c0_93, %c0_94], %332 {strides = array<i32>} : memref<8x2x96xf32, #tpu.memory_space<vmem>>, vector<1x2x96xf32>,
    %c4_i32_95 = arith.constant 4 : i32
    %333 = arith.index_cast %c4_i32_95 : i32 to index
    %c0_96 = arith.constant 0 : index
    %c0_97 = arith.constant 0 : index
    %334 = vector.load %arg11[%333, %c0_96, %c0_97] : memref<8x2x32xf32, #tpu.memory_space<vmem>>, vector<1x2x32xf32>
    %335 = vector.shape_cast %334 : vector<1x2x32xf32> to vector<2x32xf32>
    %cst_98 = arith.constant dense<0.000000e+00> : vector<2x96xf32>
    %336 = tpu.matmul %335, %291, %cst_98 {dimension_numbers = #tpu.dot_dimension_numbers<[1], [0], [0], [1], [0, 0, 1, 1], [], []>} : vector<2x32xf32>, vector<32x96xf32>, vector<2x96xf32> -> vector<2x96xf32>
    %337 = vector.broadcast %292 : vector<1x96xf32> to vector<2x96xf32>
    %338 = arith.addf %336, %337 : vector<2x96xf32>
    %339 = arith.index_cast %c4_i32_95 : i32 to index
    %c0_99 = arith.constant 0 : index
    %c0_100 = arith.constant 0 : index
    %340 = vector.load %arg12[%339, %c0_99, %c0_100] : memref<8x2x96xf32, #tpu.memory_space<vmem>>, vector<1x2x96xf32>
    %341 = vector.shape_cast %340 : vector<1x2x96xf32> to vector<2x96xf32>
    %342 = vector.shape_cast %338 : vector<2x96xf32> to vector<1x2x96xf32>
    tpu.vector_store %arg12[%339, %c0_99, %c0_100], %342 {strides = array<i32>} : memref<8x2x96xf32, #tpu.memory_space<vmem>>, vector<1x2x96xf32>,
    %c5_i32_101 = arith.constant 5 : i32
    %343 = arith.index_cast %c5_i32_101 : i32 to index
    %c0_102 = arith.constant 0 : index
    %c0_103 = arith.constant 0 : index
    %344 = vector.load %arg11[%343, %c0_102, %c0_103] : memref<8x2x32xf32, #tpu.memory_space<vmem>>, vector<1x2x32xf32>
    %345 = vector.shape_cast %344 : vector<1x2x32xf32> to vector<2x32xf32>
    %cst_104 = arith.constant dense<0.000000e+00> : vector<2x96xf32>
    %346 = tpu.matmul %345, %291, %cst_104 {dimension_numbers = #tpu.dot_dimension_numbers<[1], [0], [0], [1], [0, 0, 1, 1], [], []>} : vector<2x32xf32>, vector<32x96xf32>, vector<2x96xf32> -> vector<2x96xf32>
    %347 = vector.broadcast %292 : vector<1x96xf32> to vector<2x96xf32>
    %348 = arith.addf %346, %347 : vector<2x96xf32>
    %349 = arith.index_cast %c5_i32_101 : i32 to index
    %c0_105 = arith.constant 0 : index
    %c0_106 = arith.constant 0 : index
    %350 = vector.load %arg12[%349, %c0_105, %c0_106] : memref<8x2x96xf32, #tpu.memory_space<vmem>>, vector<1x2x96xf32>
    %351 = vector.shape_cast %350 : vector<1x2x96xf32> to vector<2x96xf32>
    %352 = vector.shape_cast %348 : vector<2x96xf32> to vector<1x2x96xf32>
    tpu.vector_store %arg12[%349, %c0_105, %c0_106], %352 {strides = array<i32>} : memref<8x2x96xf32, #tpu.memory_space<vmem>>, vector<1x2x96xf32>,
    %c6_i32_107 = arith.constant 6 : i32
    %353 = arith.index_cast %c6_i32_107 : i32 to index
    %c0_108 = arith.constant 0 : index
    %c0_109 = arith.constant 0 : index
    %354 = vector.load %arg11[%353, %c0_108, %c0_109] : memref<8x2x32xf32, #tpu.memory_space<vmem>>, vector<1x2x32xf32>
    %355 = vector.shape_cast %354 : vector<1x2x32xf32> to vector<2x32xf32>
    %cst_110 = arith.constant dense<0.000000e+00> : vector<2x96xf32>
    %356 = tpu.matmul %355, %291, %cst_110 {dimension_numbers = #tpu.dot_dimension_numbers<[1], [0], [0], [1], [0, 0, 1, 1], [], []>} : vector<2x32xf32>, vector<32x96xf32>, vector<2x96xf32> -> vector<2x96xf32>
    %357 = vector.broadcast %292 : vector<1x96xf32> to vector<2x96xf32>
    %358 = arith.addf %356, %357 : vector<2x96xf32>
    %359 = arith.index_cast %c6_i32_107 : i32 to index
    %c0_111 = arith.constant 0 : index
    %c0_112 = arith.constant 0 : index
    %360 = vector.load %arg12[%359, %c0_111, %c0_112] : memref<8x2x96xf32, #tpu.memory_space<vmem>>, vector<1x2x96xf32>
    %361 = vector.shape_cast %360 : vector<1x2x96xf32> to vector<2x96xf32>
    %362 = vector.shape_cast %358 : vector<2x96xf32> to vector<1x2x96xf32>
    tpu.vector_store %arg12[%359, %c0_111, %c0_112], %362 {strides = array<i32>} : memref<8x2x96xf32, #tpu.memory_space<vmem>>, vector<1x2x96xf32>,
    %c7_i32_113 = arith.constant 7 : i32
    %363 = arith.index_cast %c7_i32_113 : i32 to index
    %c0_114 = arith.constant 0 : index
    %c0_115 = arith.constant 0 : index
    %364 = vector.load %arg11[%363, %c0_114, %c0_115] : memref<8x2x32xf32, #tpu.memory_space<vmem>>, vector<1x2x32xf32>
    %365 = vector.shape_cast %364 : vector<1x2x32xf32> to vector<2x32xf32>
    %cst_116 = arith.constant dense<0.000000e+00> : vector<2x96xf32>
    %366 = tpu.matmul %365, %291, %cst_116 {dimension_numbers = #tpu.dot_dimension_numbers<[1], [0], [0], [1], [0, 0, 1, 1], [], []>} : vector<2x32xf32>, vector<32x96xf32>, vector<2x96xf32> -> vector<2x96xf32>
    %367 = vector.broadcast %292 : vector<1x96xf32> to vector<2x96xf32>
    %368 = arith.addf %366, %367 : vector<2x96xf32>
    %369 = arith.index_cast %c7_i32_113 : i32 to index
    %c0_117 = arith.constant 0 : index
    %c0_118 = arith.constant 0 : index
    %370 = vector.load %arg12[%369, %c0_117, %c0_118] : memref<8x2x96xf32, #tpu.memory_space<vmem>>, vector<1x2x96xf32>
    %371 = vector.shape_cast %370 : vector<1x2x96xf32> to vector<2x96xf32>
    %372 = vector.shape_cast %368 : vector<2x96xf32> to vector<1x2x96xf32>
    tpu.vector_store %arg12[%369, %c0_117, %c0_118], %372 {strides = array<i32>} : memref<8x2x96xf32, #tpu.memory_space<vmem>>, vector<1x2x96xf32>,
    %c8_i32_119 = arith.constant 8 : i32
    %c0_120 = arith.constant 0 : index
    %c0_121 = arith.constant 0 : index
    %373 = vector.load %arg4[%c0_120, %c0_121] : memref<32x96xf32, #tpu.memory_space<vmem>>, vector<32x96xf32>
    %c0_122 = arith.constant 0 : index
    %c0_123 = arith.constant 0 : index
    %374 = vector.load %arg5[%c0_122, %c0_123] : memref<1x96xf32, #tpu.memory_space<vmem>>, vector<1x96xf32>
    %cst_124 = arith.constant 0.000000e+00 : f32
    %375 = vector.broadcast %cst_124 : f32 to vector<2x32xf32>
    %c0_i32_125 = arith.constant 0 : i32
    %376 = arith.index_cast %c0_i32_125 : i32 to index
    %c0_126 = arith.constant 0 : index
    %c0_127 = arith.constant 0 : index
    %377 = vector.load %arg12[%376, %c0_126, %c0_127] : memref<8x2x96xf32, #tpu.memory_space<vmem>>, vector<1x2x96xf32>
    %378 = vector.shape_cast %377 : vector<1x2x96xf32> to vector<2x96xf32>
    %cst_128 = arith.constant dense<0.000000e+00> : vector<2x96xf32>
    %379 = tpu.matmul %375, %373, %cst_128 {dimension_numbers = #tpu.dot_dimension_numbers<[1], [0], [0], [1], [0, 0, 1, 1], [], []>} : vector<2x32xf32>, vector<32x96xf32>, vector<2x96xf32> -> vector<2x96xf32>
    %380 = vector.broadcast %374 : vector<1x96xf32> to vector<2x96xf32>
    %381 = arith.addf %379, %380 : vector<2x96xf32>
    %382 = vector.extract_strided_slice %378 {offsets = [0, 0], sizes = [2, 32], strides = [1, 1]} : vector<2x96xf32> to vector<2x32xf32>
    %383 = vector.extract_strided_slice %381 {offsets = [0, 0], sizes = [2, 32], strides = [1, 1]} : vector<2x96xf32> to vector<2x32xf32>
    %384 = arith.addf %382, %383 : vector<2x32xf32>
    %385 = arith.negf %384 : vector<2x32xf32>
    %386 = math.exp %385 : vector<2x32xf32>
    %cst_129 = arith.constant 1.000000e+00 : f32
    %387 = vector.broadcast %cst_129 : f32 to vector<2x32xf32>
    %388 = arith.addf %387, %386 : vector<2x32xf32>
    %389 = arith.divf %387, %388 : vector<2x32xf32>
    %390 = vector.extract_strided_slice %378 {offsets = [0, 32], sizes = [2, 32], strides = [1, 1]} : vector<2x96xf32> to vector<2x32xf32>
    %391 = vector.extract_strided_slice %381 {offsets = [0, 32], sizes = [2, 32], strides = [1, 1]} : vector<2x96xf32> to vector<2x32xf32>
    %392 = arith.addf %390, %391 : vector<2x32xf32>
    %393 = arith.negf %392 : vector<2x32xf32>
    %394 = math.exp %393 : vector<2x32xf32>
    %cst_130 = arith.constant 1.000000e+00 : f32
    %395 = vector.broadcast %cst_130 : f32 to vector<2x32xf32>
    %396 = arith.addf %395, %394 : vector<2x32xf32>
    %397 = arith.divf %395, %396 : vector<2x32xf32>
    %398 = vector.extract_strided_slice %378 {offsets = [0, 64], sizes = [2, 32], strides = [1, 1]} : vector<2x96xf32> to vector<2x32xf32>
    %399 = vector.extract_strided_slice %381 {offsets = [0, 64], sizes = [2, 32], strides = [1, 1]} : vector<2x96xf32> to vector<2x32xf32>
    %400 = arith.mulf %389, %399 : vector<2x32xf32>
    %401 = arith.addf %398, %400 : vector<2x32xf32>
    %402 = math.tanh %401 : vector<2x32xf32>
    %cst_131 = arith.constant 1.000000e+00 : f32
    %403 = vector.broadcast %cst_131 : f32 to vector<2x32xf32>
    %404 = arith.subf %403, %397 : vector<2x32xf32>
    %405 = arith.mulf %404, %402 : vector<2x32xf32>
    %406 = arith.mulf %397, %375 : vector<2x32xf32>
    %407 = arith.addf %405, %406 : vector<2x32xf32>
    %c1_i32_132 = arith.constant 1 : i32
    %408 = arith.index_cast %c1_i32_132 : i32 to index
    %c0_133 = arith.constant 0 : index
    %c0_134 = arith.constant 0 : index
    %409 = vector.load %arg12[%408, %c0_133, %c0_134] : memref<8x2x96xf32, #tpu.memory_space<vmem>>, vector<1x2x96xf32>
    %410 = vector.shape_cast %409 : vector<1x2x96xf32> to vector<2x96xf32>
    %cst_135 = arith.constant dense<0.000000e+00> : vector<2x96xf32>
    %411 = tpu.matmul %407, %373, %cst_135 {dimension_numbers = #tpu.dot_dimension_numbers<[1], [0], [0], [1], [0, 0, 1, 1], [], []>} : vector<2x32xf32>, vector<32x96xf32>, vector<2x96xf32> -> vector<2x96xf32>
    %412 = vector.broadcast %374 : vector<1x96xf32> to vector<2x96xf32>
    %413 = arith.addf %411, %412 : vector<2x96xf32>
    %414 = vector.extract_strided_slice %410 {offsets = [0, 0], sizes = [2, 32], strides = [1, 1]} : vector<2x96xf32> to vector<2x32xf32>
    %415 = vector.extract_strided_slice %413 {offsets = [0, 0], sizes = [2, 32], strides = [1, 1]} : vector<2x96xf32> to vector<2x32xf32>
    %416 = arith.addf %414, %415 : vector<2x32xf32>
    %417 = arith.negf %416 : vector<2x32xf32>
    %418 = math.exp %417 : vector<2x32xf32>
    %cst_136 = arith.constant 1.000000e+00 : f32
    %419 = vector.broadcast %cst_136 : f32 to vector<2x32xf32>
    %420 = arith.addf %419, %418 : vector<2x32xf32>
    %421 = arith.divf %419, %420 : vector<2x32xf32>
    %422 = vector.extract_strided_slice %410 {offsets = [0, 32], sizes = [2, 32], strides = [1, 1]} : vector<2x96xf32> to vector<2x32xf32>
    %423 = vector.extract_strided_slice %413 {offsets = [0, 32], sizes = [2, 32], strides = [1, 1]} : vector<2x96xf32> to vector<2x32xf32>
    %424 = arith.addf %422, %423 : vector<2x32xf32>
    %425 = arith.negf %424 : vector<2x32xf32>
    %426 = math.exp %425 : vector<2x32xf32>
    %cst_137 = arith.constant 1.000000e+00 : f32
    %427 = vector.broadcast %cst_137 : f32 to vector<2x32xf32>
    %428 = arith.addf %427, %426 : vector<2x32xf32>
    %429 = arith.divf %427, %428 : vector<2x32xf32>
    %430 = vector.extract_strided_slice %410 {offsets = [0, 64], sizes = [2, 32], strides = [1, 1]} : vector<2x96xf32> to vector<2x32xf32>
    %431 = vector.extract_strided_slice %413 {offsets = [0, 64], sizes = [2, 32], strides = [1, 1]} : vector<2x96xf32> to vector<2x32xf32>
    %432 = arith.mulf %421, %431 : vector<2x32xf32>
    %433 = arith.addf %430, %432 : vector<2x32xf32>
    %434 = math.tanh %433 : vector<2x32xf32>
    %cst_138 = arith.constant 1.000000e+00 : f32
    %435 = vector.broadcast %cst_138 : f32 to vector<2x32xf32>
    %436 = arith.subf %435, %429 : vector<2x32xf32>
    %437 = arith.mulf %436, %434 : vector<2x32xf32>
    %438 = arith.mulf %429, %407 : vector<2x32xf32>
    %439 = arith.addf %437, %438 : vector<2x32xf32>
    %c2_i32_139 = arith.constant 2 : i32
    %440 = arith.index_cast %c2_i32_139 : i32 to index
    %c0_140 = arith.constant 0 : index
    %c0_141 = arith.constant 0 : index
    %441 = vector.load %arg12[%440, %c0_140, %c0_141] : memref<8x2x96xf32, #tpu.memory_space<vmem>>, vector<1x2x96xf32>
    %442 = vector.shape_cast %441 : vector<1x2x96xf32> to vector<2x96xf32>
    %cst_142 = arith.constant dense<0.000000e+00> : vector<2x96xf32>
    %443 = tpu.matmul %439, %373, %cst_142 {dimension_numbers = #tpu.dot_dimension_numbers<[1], [0], [0], [1], [0, 0, 1, 1], [], []>} : vector<2x32xf32>, vector<32x96xf32>, vector<2x96xf32> -> vector<2x96xf32>
    %444 = vector.broadcast %374 : vector<1x96xf32> to vector<2x96xf32>
    %445 = arith.addf %443, %444 : vector<2x96xf32>
    %446 = vector.extract_strided_slice %442 {offsets = [0, 0], sizes = [2, 32], strides = [1, 1]} : vector<2x96xf32> to vector<2x32xf32>
    %447 = vector.extract_strided_slice %445 {offsets = [0, 0], sizes = [2, 32], strides = [1, 1]} : vector<2x96xf32> to vector<2x32xf32>
    %448 = arith.addf %446, %447 : vector<2x32xf32>
    %449 = arith.negf %448 : vector<2x32xf32>
    %450 = math.exp %449 : vector<2x32xf32>
    %cst_143 = arith.constant 1.000000e+00 : f32
    %451 = vector.broadcast %cst_143 : f32 to vector<2x32xf32>
    %452 = arith.addf %451, %450 : vector<2x32xf32>
    %453 = arith.divf %451, %452 : vector<2x32xf32>
    %454 = vector.extract_strided_slice %442 {offsets = [0, 32], sizes = [2, 32], strides = [1, 1]} : vector<2x96xf32> to vector<2x32xf32>
    %455 = vector.extract_strided_slice %445 {offsets = [0, 32], sizes = [2, 32], strides = [1, 1]} : vector<2x96xf32> to vector<2x32xf32>
    %456 = arith.addf %454, %455 : vector<2x32xf32>
    %457 = arith.negf %456 : vector<2x32xf32>
    %458 = math.exp %457 : vector<2x32xf32>
    %cst_144 = arith.constant 1.000000e+00 : f32
    %459 = vector.broadcast %cst_144 : f32 to vector<2x32xf32>
    %460 = arith.addf %459, %458 : vector<2x32xf32>
    %461 = arith.divf %459, %460 : vector<2x32xf32>
    %462 = vector.extract_strided_slice %442 {offsets = [0, 64], sizes = [2, 32], strides = [1, 1]} : vector<2x96xf32> to vector<2x32xf32>
    %463 = vector.extract_strided_slice %445 {offsets = [0, 64], sizes = [2, 32], strides = [1, 1]} : vector<2x96xf32> to vector<2x32xf32>
    %464 = arith.mulf %453, %463 : vector<2x32xf32>
    %465 = arith.addf %462, %464 : vector<2x32xf32>
    %466 = math.tanh %465 : vector<2x32xf32>
    %cst_145 = arith.constant 1.000000e+00 : f32
    %467 = vector.broadcast %cst_145 : f32 to vector<2x32xf32>
    %468 = arith.subf %467, %461 : vector<2x32xf32>
    %469 = arith.mulf %468, %466 : vector<2x32xf32>
    %470 = arith.mulf %461, %439 : vector<2x32xf32>
    %471 = arith.addf %469, %470 : vector<2x32xf32>
    %c3_i32_146 = arith.constant 3 : i32
    %472 = arith.index_cast %c3_i32_146 : i32 to index
    %c0_147 = arith.constant 0 : index
    %c0_148 = arith.constant 0 : index
    %473 = vector.load %arg12[%472, %c0_147, %c0_148] : memref<8x2x96xf32, #tpu.memory_space<vmem>>, vector<1x2x96xf32>
    %474 = vector.shape_cast %473 : vector<1x2x96xf32> to vector<2x96xf32>
    %cst_149 = arith.constant dense<0.000000e+00> : vector<2x96xf32>
    %475 = tpu.matmul %471, %373, %cst_149 {dimension_numbers = #tpu.dot_dimension_numbers<[1], [0], [0], [1], [0, 0, 1, 1], [], []>} : vector<2x32xf32>, vector<32x96xf32>, vector<2x96xf32> -> vector<2x96xf32>
    %476 = vector.broadcast %374 : vector<1x96xf32> to vector<2x96xf32>
    %477 = arith.addf %475, %476 : vector<2x96xf32>
    %478 = vector.extract_strided_slice %474 {offsets = [0, 0], sizes = [2, 32], strides = [1, 1]} : vector<2x96xf32> to vector<2x32xf32>
    %479 = vector.extract_strided_slice %477 {offsets = [0, 0], sizes = [2, 32], strides = [1, 1]} : vector<2x96xf32> to vector<2x32xf32>
    %480 = arith.addf %478, %479 : vector<2x32xf32>
    %481 = arith.negf %480 : vector<2x32xf32>
    %482 = math.exp %481 : vector<2x32xf32>
    %cst_150 = arith.constant 1.000000e+00 : f32
    %483 = vector.broadcast %cst_150 : f32 to vector<2x32xf32>
    %484 = arith.addf %483, %482 : vector<2x32xf32>
    %485 = arith.divf %483, %484 : vector<2x32xf32>
    %486 = vector.extract_strided_slice %474 {offsets = [0, 32], sizes = [2, 32], strides = [1, 1]} : vector<2x96xf32> to vector<2x32xf32>
    %487 = vector.extract_strided_slice %477 {offsets = [0, 32], sizes = [2, 32], strides = [1, 1]} : vector<2x96xf32> to vector<2x32xf32>
    %488 = arith.addf %486, %487 : vector<2x32xf32>
    %489 = arith.negf %488 : vector<2x32xf32>
    %490 = math.exp %489 : vector<2x32xf32>
    %cst_151 = arith.constant 1.000000e+00 : f32
    %491 = vector.broadcast %cst_151 : f32 to vector<2x32xf32>
    %492 = arith.addf %491, %490 : vector<2x32xf32>
    %493 = arith.divf %491, %492 : vector<2x32xf32>
    %494 = vector.extract_strided_slice %474 {offsets = [0, 64], sizes = [2, 32], strides = [1, 1]} : vector<2x96xf32> to vector<2x32xf32>
    %495 = vector.extract_strided_slice %477 {offsets = [0, 64], sizes = [2, 32], strides = [1, 1]} : vector<2x96xf32> to vector<2x32xf32>
    %496 = arith.mulf %485, %495 : vector<2x32xf32>
    %497 = arith.addf %494, %496 : vector<2x32xf32>
    %498 = math.tanh %497 : vector<2x32xf32>
    %cst_152 = arith.constant 1.000000e+00 : f32
    %499 = vector.broadcast %cst_152 : f32 to vector<2x32xf32>
    %500 = arith.subf %499, %493 : vector<2x32xf32>
    %501 = arith.mulf %500, %498 : vector<2x32xf32>
    %502 = arith.mulf %493, %471 : vector<2x32xf32>
    %503 = arith.addf %501, %502 : vector<2x32xf32>
    %c4_i32_153 = arith.constant 4 : i32
    %504 = arith.index_cast %c4_i32_153 : i32 to index
    %c0_154 = arith.constant 0 : index
    %c0_155 = arith.constant 0 : index
    %505 = vector.load %arg12[%504, %c0_154, %c0_155] : memref<8x2x96xf32, #tpu.memory_space<vmem>>, vector<1x2x96xf32>
    %506 = vector.shape_cast %505 : vector<1x2x96xf32> to vector<2x96xf32>
    %cst_156 = arith.constant dense<0.000000e+00> : vector<2x96xf32>
    %507 = tpu.matmul %503, %373, %cst_156 {dimension_numbers = #tpu.dot_dimension_numbers<[1], [0], [0], [1], [0, 0, 1, 1], [], []>} : vector<2x32xf32>, vector<32x96xf32>, vector<2x96xf32> -> vector<2x96xf32>
    %508 = vector.broadcast %374 : vector<1x96xf32> to vector<2x96xf32>
    %509 = arith.addf %507, %508 : vector<2x96xf32>
    %510 = vector.extract_strided_slice %506 {offsets = [0, 0], sizes = [2, 32], strides = [1, 1]} : vector<2x96xf32> to vector<2x32xf32>
    %511 = vector.extract_strided_slice %509 {offsets = [0, 0], sizes = [2, 32], strides = [1, 1]} : vector<2x96xf32> to vector<2x32xf32>
    %512 = arith.addf %510, %511 : vector<2x32xf32>
    %513 = arith.negf %512 : vector<2x32xf32>
    %514 = math.exp %513 : vector<2x32xf32>
    %cst_157 = arith.constant 1.000000e+00 : f32
    %515 = vector.broadcast %cst_157 : f32 to vector<2x32xf32>
    %516 = arith.addf %515, %514 : vector<2x32xf32>
    %517 = arith.divf %515, %516 : vector<2x32xf32>
    %518 = vector.extract_strided_slice %506 {offsets = [0, 32], sizes = [2, 32], strides = [1, 1]} : vector<2x96xf32> to vector<2x32xf32>
    %519 = vector.extract_strided_slice %509 {offsets = [0, 32], sizes = [2, 32], strides = [1, 1]} : vector<2x96xf32> to vector<2x32xf32>
    %520 = arith.addf %518, %519 : vector<2x32xf32>
    %521 = arith.negf %520 : vector<2x32xf32>
    %522 = math.exp %521 : vector<2x32xf32>
    %cst_158 = arith.constant 1.000000e+00 : f32
    %523 = vector.broadcast %cst_158 : f32 to vector<2x32xf32>
    %524 = arith.addf %523, %522 : vector<2x32xf32>
    %525 = arith.divf %523, %524 : vector<2x32xf32>
    %526 = vector.extract_strided_slice %506 {offsets = [0, 64], sizes = [2, 32], strides = [1, 1]} : vector<2x96xf32> to vector<2x32xf32>
    %527 = vector.extract_strided_slice %509 {offsets = [0, 64], sizes = [2, 32], strides = [1, 1]} : vector<2x96xf32> to vector<2x32xf32>
    %528 = arith.mulf %517, %527 : vector<2x32xf32>
    %529 = arith.addf %526, %528 : vector<2x32xf32>
    %530 = math.tanh %529 : vector<2x32xf32>
    %cst_159 = arith.constant 1.000000e+00 : f32
    %531 = vector.broadcast %cst_159 : f32 to vector<2x32xf32>
    %532 = arith.subf %531, %525 : vector<2x32xf32>
    %533 = arith.mulf %532, %530 : vector<2x32xf32>
    %534 = arith.mulf %525, %503 : vector<2x32xf32>
    %535 = arith.addf %533, %534 : vector<2x32xf32>
    %c5_i32_160 = arith.constant 5 : i32
    %536 = arith.index_cast %c5_i32_160 : i32 to index
    %c0_161 = arith.constant 0 : index
    %c0_162 = arith.constant 0 : index
    %537 = vector.load %arg12[%536, %c0_161, %c0_162] : memref<8x2x96xf32, #tpu.memory_space<vmem>>, vector<1x2x96xf32>
    %538 = vector.shape_cast %537 : vector<1x2x96xf32> to vector<2x96xf32>
    %cst_163 = arith.constant dense<0.000000e+00> : vector<2x96xf32>
    %539 = tpu.matmul %535, %373, %cst_163 {dimension_numbers = #tpu.dot_dimension_numbers<[1], [0], [0], [1], [0, 0, 1, 1], [], []>} : vector<2x32xf32>, vector<32x96xf32>, vector<2x96xf32> -> vector<2x96xf32>
    %540 = vector.broadcast %374 : vector<1x96xf32> to vector<2x96xf32>
    %541 = arith.addf %539, %540 : vector<2x96xf32>
    %542 = vector.extract_strided_slice %538 {offsets = [0, 0], sizes = [2, 32], strides = [1, 1]} : vector<2x96xf32> to vector<2x32xf32>
    %543 = vector.extract_strided_slice %541 {offsets = [0, 0], sizes = [2, 32], strides = [1, 1]} : vector<2x96xf32> to vector<2x32xf32>
    %544 = arith.addf %542, %543 : vector<2x32xf32>
    %545 = arith.negf %544 : vector<2x32xf32>
    %546 = math.exp %545 : vector<2x32xf32>
    %cst_164 = arith.constant 1.000000e+00 : f32
    %547 = vector.broadcast %cst_164 : f32 to vector<2x32xf32>
    %548 = arith.addf %547, %546 : vector<2x32xf32>
    %549 = arith.divf %547, %548 : vector<2x32xf32>
    %550 = vector.extract_strided_slice %538 {offsets = [0, 32], sizes = [2, 32], strides = [1, 1]} : vector<2x96xf32> to vector<2x32xf32>
    %551 = vector.extract_strided_slice %541 {offsets = [0, 32], sizes = [2, 32], strides = [1, 1]} : vector<2x96xf32> to vector<2x32xf32>
    %552 = arith.addf %550, %551 : vector<2x32xf32>
    %553 = arith.negf %552 : vector<2x32xf32>
    %554 = math.exp %553 : vector<2x32xf32>
    %cst_165 = arith.constant 1.000000e+00 : f32
    %555 = vector.broadcast %cst_165 : f32 to vector<2x32xf32>
    %556 = arith.addf %555, %554 : vector<2x32xf32>
    %557 = arith.divf %555, %556 : vector<2x32xf32>
    %558 = vector.extract_strided_slice %538 {offsets = [0, 64], sizes = [2, 32], strides = [1, 1]} : vector<2x96xf32> to vector<2x32xf32>
    %559 = vector.extract_strided_slice %541 {offsets = [0, 64], sizes = [2, 32], strides = [1, 1]} : vector<2x96xf32> to vector<2x32xf32>
    %560 = arith.mulf %549, %559 : vector<2x32xf32>
    %561 = arith.addf %558, %560 : vector<2x32xf32>
    %562 = math.tanh %561 : vector<2x32xf32>
    %cst_166 = arith.constant 1.000000e+00 : f32
    %563 = vector.broadcast %cst_166 : f32 to vector<2x32xf32>
    %564 = arith.subf %563, %557 : vector<2x32xf32>
    %565 = arith.mulf %564, %562 : vector<2x32xf32>
    %566 = arith.mulf %557, %535 : vector<2x32xf32>
    %567 = arith.addf %565, %566 : vector<2x32xf32>
    %c6_i32_167 = arith.constant 6 : i32
    %568 = arith.index_cast %c6_i32_167 : i32 to index
    %c0_168 = arith.constant 0 : index
    %c0_169 = arith.constant 0 : index
    %569 = vector.load %arg12[%568, %c0_168, %c0_169] : memref<8x2x96xf32, #tpu.memory_space<vmem>>, vector<1x2x96xf32>
    %570 = vector.shape_cast %569 : vector<1x2x96xf32> to vector<2x96xf32>
    %cst_170 = arith.constant dense<0.000000e+00> : vector<2x96xf32>
    %571 = tpu.matmul %567, %373, %cst_170 {dimension_numbers = #tpu.dot_dimension_numbers<[1], [0], [0], [1], [0, 0, 1, 1], [], []>} : vector<2x32xf32>, vector<32x96xf32>, vector<2x96xf32> -> vector<2x96xf32>
    %572 = vector.broadcast %374 : vector<1x96xf32> to vector<2x96xf32>
    %573 = arith.addf %571, %572 : vector<2x96xf32>
    %574 = vector.extract_strided_slice %570 {offsets = [0, 0], sizes = [2, 32], strides = [1, 1]} : vector<2x96xf32> to vector<2x32xf32>
    %575 = vector.extract_strided_slice %573 {offsets = [0, 0], sizes = [2, 32], strides = [1, 1]} : vector<2x96xf32> to vector<2x32xf32>
    %576 = arith.addf %574, %575 : vector<2x32xf32>
    %577 = arith.negf %576 : vector<2x32xf32>
    %578 = math.exp %577 : vector<2x32xf32>
    %cst_171 = arith.constant 1.000000e+00 : f32
    %579 = vector.broadcast %cst_171 : f32 to vector<2x32xf32>
    %580 = arith.addf %579, %578 : vector<2x32xf32>
    %581 = arith.divf %579, %580 : vector<2x32xf32>
    %582 = vector.extract_strided_slice %570 {offsets = [0, 32], sizes = [2, 32], strides = [1, 1]} : vector<2x96xf32> to vector<2x32xf32>
    %583 = vector.extract_strided_slice %573 {offsets = [0, 32], sizes = [2, 32], strides = [1, 1]} : vector<2x96xf32> to vector<2x32xf32>
    %584 = arith.addf %582, %583 : vector<2x32xf32>
    %585 = arith.negf %584 : vector<2x32xf32>
    %586 = math.exp %585 : vector<2x32xf32>
    %cst_172 = arith.constant 1.000000e+00 : f32
    %587 = vector.broadcast %cst_172 : f32 to vector<2x32xf32>
    %588 = arith.addf %587, %586 : vector<2x32xf32>
    %589 = arith.divf %587, %588 : vector<2x32xf32>
    %590 = vector.extract_strided_slice %570 {offsets = [0, 64], sizes = [2, 32], strides = [1, 1]} : vector<2x96xf32> to vector<2x32xf32>
    %591 = vector.extract_strided_slice %573 {offsets = [0, 64], sizes = [2, 32], strides = [1, 1]} : vector<2x96xf32> to vector<2x32xf32>
    %592 = arith.mulf %581, %591 : vector<2x32xf32>
    %593 = arith.addf %590, %592 : vector<2x32xf32>
    %594 = math.tanh %593 : vector<2x32xf32>
    %cst_173 = arith.constant 1.000000e+00 : f32
    %595 = vector.broadcast %cst_173 : f32 to vector<2x32xf32>
    %596 = arith.subf %595, %589 : vector<2x32xf32>
    %597 = arith.mulf %596, %594 : vector<2x32xf32>
    %598 = arith.mulf %589, %567 : vector<2x32xf32>
    %599 = arith.addf %597, %598 : vector<2x32xf32>
    %c7_i32_174 = arith.constant 7 : i32
    %600 = arith.index_cast %c7_i32_174 : i32 to index
    %c0_175 = arith.constant 0 : index
    %c0_176 = arith.constant 0 : index
    %601 = vector.load %arg12[%600, %c0_175, %c0_176] : memref<8x2x96xf32, #tpu.memory_space<vmem>>, vector<1x2x96xf32>
    %602 = vector.shape_cast %601 : vector<1x2x96xf32> to vector<2x96xf32>
    %cst_177 = arith.constant dense<0.000000e+00> : vector<2x96xf32>
    %603 = tpu.matmul %599, %373, %cst_177 {dimension_numbers = #tpu.dot_dimension_numbers<[1], [0], [0], [1], [0, 0, 1, 1], [], []>} : vector<2x32xf32>, vector<32x96xf32>, vector<2x96xf32> -> vector<2x96xf32>
    %604 = vector.broadcast %374 : vector<1x96xf32> to vector<2x96xf32>
    %605 = arith.addf %603, %604 : vector<2x96xf32>
    %606 = vector.extract_strided_slice %602 {offsets = [0, 0], sizes = [2, 32], strides = [1, 1]} : vector<2x96xf32> to vector<2x32xf32>
    %607 = vector.extract_strided_slice %605 {offsets = [0, 0], sizes = [2, 32], strides = [1, 1]} : vector<2x96xf32> to vector<2x32xf32>
    %608 = arith.addf %606, %607 : vector<2x32xf32>
    %609 = arith.negf %608 : vector<2x32xf32>
    %610 = math.exp %609 : vector<2x32xf32>
    %cst_178 = arith.constant 1.000000e+00 : f32
    %611 = vector.broadcast %cst_178 : f32 to vector<2x32xf32>
    %612 = arith.addf %611, %610 : vector<2x32xf32>
    %613 = arith.divf %611, %612 : vector<2x32xf32>
    %614 = vector.extract_strided_slice %602 {offsets = [0, 32], sizes = [2, 32], strides = [1, 1]} : vector<2x96xf32> to vector<2x32xf32>
    %615 = vector.extract_strided_slice %605 {offsets = [0, 32], sizes = [2, 32], strides = [1, 1]} : vector<2x96xf32> to vector<2x32xf32>
    %616 = arith.addf %614, %615 : vector<2x32xf32>
    %617 = arith.negf %616 : vector<2x32xf32>
    %618 = math.exp %617 : vector<2x32xf32>
    %cst_179 = arith.constant 1.000000e+00 : f32
    %619 = vector.broadcast %cst_179 : f32 to vector<2x32xf32>
    %620 = arith.addf %619, %618 : vector<2x32xf32>
    %621 = arith.divf %619, %620 : vector<2x32xf32>
    %622 = vector.extract_strided_slice %602 {offsets = [0, 64], sizes = [2, 32], strides = [1, 1]} : vector<2x96xf32> to vector<2x32xf32>
    %623 = vector.extract_strided_slice %605 {offsets = [0, 64], sizes = [2, 32], strides = [1, 1]} : vector<2x96xf32> to vector<2x32xf32>
    %624 = arith.mulf %613, %623 : vector<2x32xf32>
    %625 = arith.addf %622, %624 : vector<2x32xf32>
    %626 = math.tanh %625 : vector<2x32xf32>
    %cst_180 = arith.constant 1.000000e+00 : f32
    %627 = vector.broadcast %cst_180 : f32 to vector<2x32xf32>
    %628 = arith.subf %627, %621 : vector<2x32xf32>
    %629 = arith.mulf %628, %626 : vector<2x32xf32>
    %630 = arith.mulf %621, %599 : vector<2x32xf32>
    %631 = arith.addf %629, %630 : vector<2x32xf32>
    %c8_i32_181 = arith.constant 8 : i32
    %c0_182 = arith.constant 0 : index
    %c0_183 = arith.constant 0 : index
    %632 = vector.load %arg8[%c0_182, %c0_183] : memref<32x4xf32, #tpu.memory_space<vmem>>, vector<32x4xf32>
    %cst_184 = arith.constant dense<0.000000e+00> : vector<2x4xf32>
    %633 = tpu.matmul %631, %632, %cst_184 {dimension_numbers = #tpu.dot_dimension_numbers<[1], [0], [0], [1], [0, 0, 1, 1], [], []>} : vector<2x32xf32>, vector<32x4xf32>, vector<2x4xf32> -> vector<2x4xf32>
    %c0_185 = arith.constant 0 : index
    %c0_186 = arith.constant 0 : index
    %634 = vector.load %arg9[%c0_185, %c0_186] : memref<1x4xf32, #tpu.memory_space<vmem>>, vector<1x4xf32>
    %635 = vector.broadcast %634 : vector<1x4xf32> to vector<2x4xf32>
    %636 = arith.addf %633, %635 : vector<2x4xf32>
    %c0_187 = arith.constant 0 : index
    %c0_188 = arith.constant 0 : index
    %637 = vector.load %arg10[%c0_187, %c0_188] : memref<2x4xf32, #tpu.memory_space<vmem>>, vector<2x4xf32>
    tpu.vector_store %arg10[%c0_187, %c0_188], %636 {strides = array<i32>} : memref<2x4xf32, #tpu.memory_space<vmem>>, vector<2x4xf32>,
    return
  }
  func.func @transform_0(%arg0: i32) -> (i32, i32, i32) {
    %c0_i32 = arith.constant 0 : i32
    %c0_i32_0 = arith.constant 0 : i32
    %c0_i32_1 = arith.constant 0 : i32
    %c0_i32_2 = arith.constant 0 : i32
    return %c0_i32, %c0_i32_0, %c0_i32_1 : i32, i32, i32
  }
  func.func @transform_1(%arg0: i32) -> (i32, i32) {
    %c0_i32 = arith.constant 0 : i32
    %c0_i32_0 = arith.constant 0 : i32
    %c0_i32_1 = arith.constant 0 : i32
    return %c0_i32, %c0_i32_0 : i32, i32
  }
  func.func @transform_2(%arg0: i32) -> (i32, i32) {
    %c0_i32 = arith.constant 0 : i32
    %c0_i32_0 = arith.constant 0 : i32
    %c0_i32_1 = arith.constant 0 : i32
    return %c0_i32, %c0_i32_0 : i32, i32
  }
  func.func @transform_3(%arg0: i32) -> (i32, i32) {
    %c0_i32 = arith.constant 0 : i32
    %c0_i32_0 = arith.constant 0 : i32
    %c0_i32_1 = arith.constant 0 : i32
    return %c0_i32, %c0_i32_0 : i32, i32
  }
  func.func @transform_4(%arg0: i32) -> (i32, i32) {
    %c0_i32 = arith.constant 0 : i32
    %c0_i32_0 = arith.constant 0 : i32
    %c0_i32_1 = arith.constant 0 : i32
    return %c0_i32, %c0_i32_0 : i32, i32
  }
  func.func @transform_5(%arg0: i32) -> (i32, i32) {
    %c0_i32 = arith.constant 0 : i32
    %c0_i32_0 = arith.constant 0 : i32
    %c0_i32_1 = arith.constant 0 : i32
    return %c0_i32, %c0_i32_0 : i32, i32
  }
  func.func @transform_6(%arg0: i32) -> (i32, i32) {
    %c0_i32 = arith.constant 0 : i32
    %c0_i32_0 = arith.constant 0 : i32
    %c0_i32_1 = arith.constant 0 : i32
    return %c0_i32, %c0_i32_0 : i32, i32
  }
  func.func @transform_7(%arg0: i32) -> (i32, i32) {
    %c0_i32 = arith.constant 0 : i32
    %c0_i32_0 = arith.constant 0 : i32
    %c0_i32_1 = arith.constant 0 : i32
    return %c0_i32, %c0_i32_0 : i32, i32
  }
  func.func @transform_8(%arg0: i32) -> (i32, i32) {
    %c0_i32 = arith.constant 0 : i32
    %c0_i32_0 = arith.constant 0 : i32
    %c0_i32_1 = arith.constant 0 : i32
    return %c0_i32, %c0_i32_0 : i32, i32
  }
  func.func @transform_9(%arg0: i32) -> (i32, i32) {
    %c0_i32 = arith.constant 0 : i32
    %c0_i32_0 = arith.constant 0 : i32
    %c0_i32_1 = arith.constant 0 : i32
    return %c0_i32, %c0_i32_0 : i32, i32
  }
}

</mosaic_0001>

<llo_original>
// kernel: lag_gru_forward.1
$region0: #{lag_gru_forward.1}
  #allocation0 [shape = 'u32[]', space=smem, size = 0x4, offset = 0x4, fixed_abs, tag = 'smem constant byte address 0x4 - core index']
  #allocation1 [shape = 'u32[144,128]{1,0:T(1,128)}', space=vmem, size = 0x12000, scoped, tag = 'internal scratch']
  #allocation2 [shape = 'f32[8,2,32]{2,1,0:T(2,128)}', space=vmem, size = 0x2000, scoped, tag = 'scratch operand']
  #allocation3 [shape = 'f32[8,2,96]{2,1,0:T(2,128)}', space=vmem, size = 0x2000, scoped, tag = 'scratch operand']
  %s0 = inlined_call_operand.vmem [shape: f32[8,2,96], index: 0, kind: input, shape index: {}]
  %s1 = inlined_call_operand.vmem [shape: f32[32,96], index: 1, kind: input, shape index: {}]
  %s2 = inlined_call_operand.vmem [shape: f32[1,96], index: 2, kind: input, shape index: {}]
  %s3 = inlined_call_operand.vmem [shape: f32[32,96], index: 3, kind: input, shape index: {}]
  %s4 = inlined_call_operand.vmem [shape: f32[1,96], index: 4, kind: input, shape index: {}]
  %s5 = inlined_call_operand.vmem [shape: f32[32,96], index: 5, kind: input, shape index: {}]
  %s6 = inlined_call_operand.vmem [shape: f32[1,96], index: 6, kind: input, shape index: {}]
  %s7 = inlined_call_operand.vmem [shape: f32[32,4], index: 7, kind: input, shape index: {}]
  %s8 = inlined_call_operand.vmem [shape: f32[1,4], index: 8, kind: input, shape index: {}]
  %s9 = inlined_call_operand.hbm [shape: f32[2,4], index: 9, kind: output, shape index: {}]
  %s10 = sld [smem:[#allocation0]]
  $region46: #{lag_gru_forward.1} parent=0
    _
  %s12 = ssub.s32 1, %s10
  %s13 = scalar_select 0, %s12, %s10
  $region1: #{lag_gru_forward.1} parent=0
    #allocation4 [shape = 'u8[1024]{0}', space=vmem, size = 0x400, scoped, tag = 'output window, operand 0, single buffered']
    #allocation5 [shape = 's32[1]{0}', space=sflag, size = 0x4, scoped, tag = 'scoped memory for lag_gru_forward.1']
    %14 = vsyncpa [#allocation5], 0
    // Predicated region
    $region2: #{lag_gru_forward.1} parent=1 // pred_check
      _
    $region3: #{lag_gru_forward.1} parent=1 // pred_check_branch
      %16 = sbr.rel (0) target = $region5
    $region4: #{lag_gru_forward.1} parent=1 // pred_region
      _
    $region5: #{lag_gru_forward.1} parent=1 // pred_fallthru
      _
    // Predicated region
    $region6: #{lag_gru_forward.1} parent=1 // pred_check
      _
    $region7: #{lag_gru_forward.1} parent=1 // pred_check_branch
      %18 = sbr.rel (0) target = $region9
    $region8: #{lag_gru_forward.1} parent=1 // pred_region
      _
    $region9: #{lag_gru_forward.1} parent=1 // pred_fallthru
      _
    // Predicated region
    $region10: #{lag_gru_forward.1} parent=1 // pred_check
      _
    $region11: #{lag_gru_forward.1} parent=1 // pred_check_branch
      %20 = sbr.rel (0) target = $region13
    $region12: #{lag_gru_forward.1} parent=1 // pred_region
      _
    $region13: #{lag_gru_forward.1} parent=1 // pred_fallthru
      _
    // Predicated region
    $region14: #{lag_gru_forward.1} parent=1 // pred_check
      _
    $region15: #{lag_gru_forward.1} parent=1 // pred_check_branch
      %22 = sbr.rel (0) target = $region17
    $region16: #{lag_gru_forward.1} parent=1 // pred_region
      _
    $region17: #{lag_gru_forward.1} parent=1 // pred_fallthru
      _
    // Predicated region
    $region18: #{lag_gru_forward.1} parent=1 // pred_check
      _
    $region19: #{lag_gru_forward.1} parent=1 // pred_check_branch
      %24 = sbr.rel (0) target = $region21
    $region20: #{lag_gru_forward.1} parent=1 // pred_region
      _
    $region21: #{lag_gru_forward.1} parent=1 // pred_fallthru
      _
    // Predicated region
    $region22: #{lag_gru_forward.1} parent=1 // pred_check
      _
    $region23: #{lag_gru_forward.1} parent=1 // pred_check_branch
      %26 = sbr.rel (0) target = $region25
    $region24: #{lag_gru_forward.1} parent=1 // pred_region
      _
    $region25: #{lag_gru_forward.1} parent=1 // pred_fallthru
      _
    // Predicated region
    $region26: #{lag_gru_forward.1} parent=1 // pred_check
      _
    $region27: #{lag_gru_forward.1} parent=1 // pred_check_branch
      %28 = sbr.rel (0) target = $region29
    $region28: #{lag_gru_forward.1} parent=1 // pred_region
      _
    $region29: #{lag_gru_forward.1} parent=1 // pred_fallthru
      _
    // Predicated region
    $region30: #{lag_gru_forward.1} parent=1 // pred_check
      _
    $region31: #{lag_gru_forward.1} parent=1 // pred_check_branch
      %30 = sbr.rel (0) target = $region33
    $region32: #{lag_gru_forward.1} parent=1 // pred_region
      _
    $region33: #{lag_gru_forward.1} parent=1 // pred_fallthru
      _
    // Predicated region
    $region34: #{lag_gru_forward.1} parent=1 // pred_check
      _
    $region35: #{lag_gru_forward.1} parent=1 // pred_check_branch
      %32 = sbr.rel (0) target = $region37
    $region36: #{lag_gru_forward.1} parent=1 // pred_region
      _
    $region37: #{lag_gru_forward.1} parent=1 // pred_fallthru
      _
    %v33 = vld [vmem:[%s1] sm:$0xff]
    %v34 = vld [vmem:[%s1 + $0x8] sm:$0xff]
    %v35 = vld [vmem:[%s1 + $0x10] sm:$0xff]
    %v36 = vld [vmem:[%s1 + $0x18] sm:$0xff]
    %v37 = vld [vmem:[%s2] sm:$0x1]
    %v38 = vld [vmem:[%s0] sm:$0x3]
    %v40 = vlaneseq
    %v41 = vshrl.u32 %v40, 7
    %v42 = vsub.s32 0, %v41
    %v43 = vrot.slane %v37, %v42
    %vm45 = vcmask 261120
    %v47 = vsel %vm45, 0.0, 0
    %49 = vmatprep.subr.mxu0 0.0
    %50 = vmatpush1.msra.mxu0 %v33
    %51 = vmatprep.subr.mxu0 0.0
    %52 = vmatpush1.msra.mxu0 %v34
    %53 = vmatprep.subr.mxu0 0.0
    %54 = vmatpush1.msra.mxu0 %v35
    %55 = vmatprep.subr.mxu0 0.0
    %56 = vmatpush1.msra.mxu0 %v36
    %57 = vmatprep.subr.mxu0 0.0
    %58 = vmatpush1.msra.mxu0 0.0
    %59 = vmatprep.subr.mxu0 0.0
    %60 = vmatpush1.msra.mxu0 0.0
    %61 = vmatprep.subr.mxu0 0.0
    %62 = vmatpush1.msra.mxu0 0.0
    %63 = vmatprep.subr.mxu0 0.0
    %64 = vmatpush1.msra.mxu0 0.0
    %65 = vmatprep.subr.mxu0 0.0
    %66 = vmatpush1.msra.mxu0 0.0
    %67 = vmatprep.subr.mxu0 0.0
    %68 = vmatpush1.msra.mxu0 0.0
    %69 = vmatprep.subr.mxu0 0.0
    %70 = vmatpush1.msra.mxu0 0.0
    %71 = vmatprep.subr.mxu0 0.0
    %72 = vmatpush1.msra.mxu0 0.0
    %73 = vmatprep.subr.mxu0 0.0
    %74 = vmatpush1.msra.mxu0 0.0
    %75 = vmatprep.subr.mxu0 0.0
    %76 = vmatpush1.msra.mxu0 0.0
    %77 = vmatprep.subr.mxu0 0.0
    %78 = vmatpush1.msra.mxu0 0.0
    %79 = vmatprep.subr.mxu0 0.0
    %80 = vmatpush1.msra.mxu0 0.0
    %81 = vmatprep.subr.mxu0 0.0
    %82 = vmatpush1.msra.mxu0 0.0
    %83 = vmatprep.subr.mxu0 0.0
    %84 = vmatpush1.msra.mxu0 0.0
    %85 = vmatprep.subr.mxu0 0.0
    %86 = vmatpush1.msra.mxu0 0.0
    %87 = vmatprep.subr.mxu0 0.0
    %88 = vmatpush1.msra.mxu0 0.0
    %89 = vmatprep.subr.mxu0 0.0
    %90 = vmatpush1.msra.mxu0 0.0
    %91 = vmatprep.subr.mxu0 0.0
    %92 = vmatpush1.msra.mxu0 0.0
    %93 = vmatprep.subr.mxu0 0.0
    %94 = vmatpush1.msra.mxu0 0.0
    %95 = vmatprep.subr.mxu0 0.0
    %96 = vmatpush1.msra.mxu0 0.0
    %97 = vmatprep.subr.mxu0 0.0
    %98 = vmatpush1.msra.mxu0 0.0
    %99 = vmatprep.subr.mxu0 0.0
    %100 = vmatpush1.msra.mxu0 0.0
    %101 = vmatprep.subr.mxu0 0.0
    %102 = vmatpush1.msra.mxu0 0.0
    %103 = vmatprep.subr.mxu0 0.0
    %104 = vmatpush1.msra.mxu0 0.0
    %105 = vmatprep.subr.mxu0 0.0
    %106 = vmatpush1.msra.mxu0 0.0
    %107 = vmatprep.subr.mxu0 0.0
    %108 = vmatpush1.msra.mxu0 0.0
    %109 = vmatprep.subr.mxu0 0.0
    %110 = vmatpush1.msra.mxu0 0.0
    %111 = vmatprep.subr.mxu0 0.0
    %112 = vmatpush1.msra.mxu0 0.0
    %113 = vmatprep.mubr.f32.mxu0 0.0
    %114 = vmatmul.mubr.f32.gmra.mrb[0].mxu0 %v47
    %v115 = vpop.f32.mrb[0].mxu0
    %v116 = vadd.f32 %v43, %v115
    %v117 = vpop.f32.mrb[0].mxu0
    %118 = vdwg.mxu0
    %v119 = vadd.f32 %v38, %v116
    %v120 = vxor.u32 %v119, 2147483648
    %v121 = vmul.f32 %v120, 1.442695
    %v122 = vpow.pop %v121
    %v123 = vadd.f32 %v122, 1.0
    %v124 = vrcp.pop %v123
    %v125 = vmul.f32 1.0, %v124
    %127 = vrot.lane.b32.xlu0 %v116, 64
    %v128 = vpop.permute.xlu0 %127
    %v130 = vmul.f32 %v125, %v128
    %132 = vrot.lane.b32.xlu0 %v130, 64
    %v133 = vpop.permute.xlu0 %132
    %v135 = vadd.f32 %v38, %v133
    %v136 = vtanh.pop %v135
    %v137 = vsub.f32 1.0, %v125
    %139 = vrot.lane.b32.xlu0 %v136, 96
    %v140 = vpop.permute.xlu0 %139
    %v142 = vmul.f32 %v137, %v140
    %v143 = vmul.f32 %v125, 0.0
    %v144 = vadd.f32 %v142, %v143
    %146 = vrot.lane.b32.xlu0 %v144, 96
    %v147 = vpop.permute.xlu0 %146
    %vm149 = vcmask 254976
    %150 = vst.msk [vmem:[#allocation2] sm:$0x3] %vm149, %v147
    %s151 = scalar_lea.vmem %s0, 2
    %v152 = vld [vmem:[%s151] sm:$0x3]
    %v153 = vsel %vm45, %v147, 0
    %155 = vmatprep.subr.mxu0 0.0
    %156 = vmatpush1.msra.mxu0 %v33
    %157 = vmatprep.subr.mxu0 0.0
    %158 = vmatpush1.msra.mxu0 %v34
    %159 = vmatprep.subr.mxu0 0.0
    %160 = vmatpush1.msra.mxu0 %v35
    %161 = vmatprep.subr.mxu0 0.0
    %162 = vmatpush1.msra.mxu0 %v36
    %163 = vmatprep.subr.mxu0 0.0
    %164 = vmatpush1.msra.mxu0 0.0
    %165 = vmatprep.subr.mxu0 0.0
    %166 = vmatpush1.msra.mxu0 0.0
    %167 = vmatprep.subr.mxu0 0.0
    %168 = vmatpush1.msra.mxu0 0.0
    %169 = vmatprep.subr.mxu0 0.0
    %170 = vmatpush1.msra.mxu0 0.0
    %171 = vmatprep.subr.mxu0 0.0
    %172 = vmatpush1.msra.mxu0 0.0
    %173 = vmatprep.subr.mxu0 0.0
    %174 = vmatpush1.msra.mxu0 0.0
    %175 = vmatprep.subr.mxu0 0.0
    %176 = vmatpush1.msra.mxu0 0.0
    %177 = vmatprep.subr.mxu0 0.0
    %178 = vmatpush1.msra.mxu0 0.0
    %179 = vmatprep.subr.mxu0 0.0
    %180 = vmatpush1.msra.mxu0 0.0
    %181 = vmatprep.subr.mxu0 0.0
    %182 = vmatpush1.msra.mxu0 0.0
    %183 = vmatprep.subr.mxu0 0.0
    %184 = vmatpush1.msra.mxu0 0.0
    %185 = vmatprep.subr.mxu0 0.0
    %186 = vmatpush1.msra.mxu0 0.0
    %187 = vmatprep.subr.mxu0 0.0
    %188 = vmatpush1.msra.mxu0 0.0
    %189 = vmatprep.subr.mxu0 0.0
    %190 = vmatpush1.msra.mxu0 0.0
    %191 = vmatprep.subr.mxu0 0.0
    %192 = vmatpush1.msra.mxu0 0.0
    %193 = vmatprep.subr.mxu0 0.0
    %194 = vmatpush1.msra.mxu0 0.0
    %195 = vmatprep.subr.mxu0 0.0
    %196 = vmatpush1.msra.mxu0 0.0
    %197 = vmatprep.subr.mxu0 0.0
    %198 = vmatpush1.msra.mxu0 0.0
    %199 = vmatprep.subr.mxu0 0.0
    %200 = vmatpush1.msra.mxu0 0.0
    %201 = vmatprep.subr.mxu0 0.0
    %202 = vmatpush1.msra.mxu0 0.0
    %203 = vmatprep.subr.mxu0 0.0
    %204 = vmatpush1.msra.mxu0 0.0
    %205 = vmatprep.subr.mxu0 0.0
    %206 = vmatpush1.msra.mxu0 0.0
    %207 = vmatprep.subr.mxu0 0.0
    %208 = vmatpush1.msra.mxu0 0.0
    %209 = vmatprep.subr.mxu0 0.0
    %210 = vmatpush1.msra.mxu0 0.0
    %211 = vmatprep.subr.mxu0 0.0
    %212 = vmatpush1.msra.mxu0 0.0
    %213 = vmatprep.subr.mxu0 0.0
    %214 = vmatpush1.msra.mxu0 0.0
    %215 = vmatprep.subr.mxu0 0.0
    %216 = vmatpush1.msra.mxu0 0.0
    %217 = vmatprep.subr.mxu0 0.0
    %218 = vmatpush1.msra.mxu0 0.0
    %219 = vmatprep.mubr.f32.mxu0 0.0
    %220 = vmatmul.mubr.f32.gmra.mrb[0].mxu0 %v153
    %v221 = vpop.f32.mrb[0].mxu0
    %v222 = vadd.f32 %v43, %v221
    %v223 = vpop.f32.mrb[0].mxu0
    %224 = vdwg.mxu0
    %v225 = vadd.f32 %v152, %v222
    %v226 = vxor.u32 %v225, 2147483648
    %v227 = vmul.f32 %v226, 1.442695
    %v228 = vpow.pop %v227
    %v229 = vadd.f32 %v228, 1.0
    %v230 = vrcp.pop %v229
    %v231 = vmul.f32 1.0, %v230
    %233 = vrot.lane.b32.xlu0 %v222, 64
    %v234 = vpop.permute.xlu0 %233
    %v236 = vmul.f32 %v231, %v234
    %238 = vrot.lane.b32.xlu0 %v236, 64
    %v239 = vpop.permute.xlu0 %238
    %v241 = vadd.f32 %v152, %v239
    %v242 = vtanh.pop %v241
    %v243 = vsub.f32 1.0, %v231
    %245 = vrot.lane.b32.xlu0 %v242, 96
    %v246 = vpop.permute.xlu0 %245
    %v248 = vmul.f32 %v243, %v246
    %v249 = vmul.f32 %v231, %v144
    %v250 = vadd.f32 %v248, %v249
    %252 = vrot.lane.b32.xlu0 %v250, 96
    %v253 = vpop.permute.xlu0 %252
    %s255 = scalar_lea.vmem [#allocation2], 2
    %256 = vst.msk [vmem:[%s255] sm:$0x3] %vm149, %v253
    %s257 = scalar_lea.vmem %s0, 4
    %v258 = vld [vmem:[%s257] sm:$0x3]
    %v259 = vsel %vm45, %v253, 0
    %261 = vmatprep.subr.mxu0 0.0
    %262 = vmatpush1.msra.mxu0 %v33
    %263 = vmatprep.subr.mxu0 0.0
    %264 = vmatpush1.msra.mxu0 %v34
    %265 = vmatprep.subr.mxu0 0.0
    %266 = vmatpush1.msra.mxu0 %v35
    %267 = vmatprep.subr.mxu0 0.0
    %268 = vmatpush1.msra.mxu0 %v36
    %269 = vmatprep.subr.mxu0 0.0
    %270 = vmatpush1.msra.mxu0 0.0
    %271 = vmatprep.subr.mxu0 0.0
    %272 = vmatpush1.msra.mxu0 0.0
    %273 = vmatprep.subr.mxu0 0.0
    %274 = vmatpush1.msra.mxu0 0.0
    %275 = vmatprep.subr.mxu0 0.0
    %276 = vmatpush1.msra.mxu0 0.0
    %277 = vmatprep.subr.mxu0 0.0
    %278 = vmatpush1.msra.mxu0 0.0
    %279 = vmatprep.subr.mxu0 0.0
    %280 = vmatpush1.msra.mxu0 0.0
    %281 = vmatprep.subr.mxu0 0.0
    %282 = vmatpush1.msra.mxu0 0.0
    %283 = vmatprep.subr.mxu0 0.0
    %284 = vmatpush1.msra.mxu0 0.0
    %285 = vmatprep.subr.mxu0 0.0
    %286 = vmatpush1.msra.mxu0 0.0
    %287 = vmatprep.subr.mxu0 0.0
    %288 = vmatpush1.msra.mxu0 0.0
    %289 = vmatprep.subr.mxu0 0.0
    %290 = vmatpush1.msra.mxu0 0.0
    %291 = vmatprep.subr.mxu0 0.0
    %292 = vmatpush1.msra.mxu0 0.0
    %293 = vmatprep.subr.mxu0 0.0
    %294 = vmatpush1.msra.mxu0 0.0
    %295 = vmatprep.subr.mxu0 0.0
    %296 = vmatpush1.msra.mxu0 0.0
    %297 = vmatprep.subr.mxu0 0.0
    %298 = vmatpush1.msra.mxu0 0.0
    %299 = vmatprep.subr.mxu0 0.0
    %300 = vmatpush1.msra.mxu0 0.0
    %301 = vmatprep.subr.mxu0 0.0
    %302 = vmatpush1.msra.mxu0 0.0
    %303 = vmatprep.subr.mxu0 0.0
    %304 = vmatpush1.msra.mxu0 0.0
    %305 = vmatprep.subr.mxu0 0.0
    %306 = vmatpush1.msra.mxu0 0.0
    %307 = vmatprep.subr.mxu0 0.0
    %308 = vmatpush1.msra.mxu0 0.0
    %309 = vmatprep.subr.mxu0 0.0
    %310 = vmatpush1.msra.mxu0 0.0
    %311 = vmatprep.subr.mxu0 0.0
    %312 = vmatpush1.msra.mxu0 0.0
    %313 = vmatprep.subr.mxu0 0.0
    %314 = vmatpush1.msra.mxu0 0.0
    %315 = vmatprep.subr.mxu0 0.0
    %316 = vmatpush1.msra.mxu0 0.0
    %317 = vmatprep.subr.mxu0 0.0
    %318 = vmatpush1.msra.mxu0 0.0
    %319 = vmatprep.subr.mxu0 0.0
    %320 = vmatpush1.msra.mxu0 0.0
    %321 = vmatprep.subr.mxu0 0.0
    %322 = vmatpush1.msra.mxu0 0.0
    %323 = vmatprep.subr.mxu0 0.0
    %324 = vmatpush1.msra.mxu0 0.0
    %325 = vmatprep.mubr.f32.mxu0 0.0
    %326 = vmatmul.mubr.f32.gmra.mrb[0].mxu0 %v259
    %v327 = vpop.f32.mrb[0].mxu0
    %v328 = vadd.f32 %v43, %v327
    %v329 = vpop.f32.mrb[0].mxu0
    %330 = vdwg.mxu0
    %v331 = vadd.f32 %v258, %v328
    %v332 = vxor.u32 %v331, 2147483648
    %v333 = vmul.f32 %v332, 1.442695
    %v334 = vpow.pop %v333
    %v335 = vadd.f32 %v334, 1.0
    %v336 = vrcp.pop %v335
    %v337 = vmul.f32 1.0, %v336
    %339 = vrot.lane.b32.xlu0 %v328, 64
    %v340 = vpop.permute.xlu0 %339
    %v342 = vmul.f32 %v337, %v340
    %344 = vrot.lane.b32.xlu0 %v342, 64
    %v345 = vpop.permute.xlu0 %344
    %v347 = vadd.f32 %v258, %v345
    %v348 = vtanh.pop %v347
    %v349 = vsub.f32 1.0, %v337
    %351 = vrot.lane.b32.xlu0 %v348, 96
    %v352 = vpop.permute.xlu0 %351
    %v354 = vmul.f32 %v349, %v352
    %v355 = vmul.f32 %v337, %v250
    %v356 = vadd.f32 %v354, %v355
    %358 = vrot.lane.b32.xlu0 %v356, 96
    %v359 = vpop.permute.xlu0 %358
    %s361 = scalar_lea.vmem [#allocation2], 4
    %362 = vst.msk [vmem:[%s361] sm:$0x3] %vm149, %v359
    %s363 = scalar_lea.vmem %s0, 6
    %v364 = vld [vmem:[%s363] sm:$0x3]
    %v365 = vsel %vm45, %v359, 0
    %367 = vmatprep.subr.mxu0 0.0
    %368 = vmatpush1.msra.mxu0 %v33
    %369 = vmatprep.subr.mxu0 0.0
    %370 = vmatpush1.msra.mxu0 %v34
    %371 = vmatprep.subr.mxu0 0.0
    %372 = vmatpush1.msra.mxu0 %v35
    %373 = vmatprep.subr.mxu0 0.0
    %374 = vmatpush1.msra.mxu0 %v36
    %375 = vmatprep.subr.mxu0 0.0
    %376 = vmatpush1.msra.mxu0 0.0
    %377 = vmatprep.subr.mxu0 0.0
    %378 = vmatpush1.msra.mxu0 0.0
    %379 = vmatprep.subr.mxu0 0.0
    %380 = vmatpush1.msra.mxu0 0.0
    %381 = vmatprep.subr.mxu0 0.0
    %382 = vmatpush1.msra.mxu0 0.0
    %383 = vmatprep.subr.mxu0 0.0
    %384 = vmatpush1.msra.mxu0 0.0
    %385 = vmatprep.subr.mxu0 0.0
    %386 = vmatpush1.msra.mxu0 0.0
    %387 = vmatprep.subr.mxu0 0.0
    %388 = vmatpush1.msra.mxu0 0.0
    %389 = vmatprep.subr.mxu0 0.0
    %390 = vmatpush1.msra.mxu0 0.0
    %391 = vmatprep.subr.mxu0 0.0
    %392 = vmatpush1.msra.mxu0 0.0
    %393 = vmatprep.subr.mxu0 0.0
    %394 = vmatpush1.msra.mxu0 0.0
    %395 = vmatprep.subr.mxu0 0.0
    %396 = vmatpush1.msra.mxu0 0.0
    %397 = vmatprep.subr.mxu0 0.0
    %398 = vmatpush1.msra.mxu0 0.0
    %399 = vmatprep.subr.mxu0 0.0
    %400 = vmatpush1.msra.mxu0 0.0
    %401 = vmatprep.subr.mxu0 0.0
    %402 = vmatpush1.msra.mxu0 0.0
    %403 = vmatprep.subr.mxu0 0.0
    %404 = vmatpush1.msra.mxu0 0.0
    %405 = vmatprep.subr.mxu0 0.0
    %406 = vmatpush1.msra.mxu0 0.0
    %407 = vmatprep.subr.mxu0 0.0
    %408 = vmatpush1.msra.mxu0 0.0
    %409 = vmatprep.subr.mxu0 0.0
    %410 = vmatpush1.msra.mxu0 0.0
    %411 = vmatprep.subr.mxu0 0.0
    %412 = vmatpush1.msra.mxu0 0.0
    %413 = vmatprep.subr.mxu0 0.0
    %414 = vmatpush1.msra.mxu0 0.0
    %415 = vmatprep.subr.mxu0 0.0
    %416 = vmatpush1.msra.mxu0 0.0
    %417 = vmatprep.subr.mxu0 0.0
    %418 = vmatpush1.msra.mxu0 0.0
    %419 = vmatprep.subr.mxu0 0.0
    %420 = vmatpush1.msra.mxu0 0.0
    %421 = vmatprep.subr.mxu0 0.0
    %422 = vmatpush1.msra.mxu0 0.0
    %423 = vmatprep.subr.mxu0 0.0
    %424 = vmatpush1.msra.mxu0 0.0
    %425 = vmatprep.subr.mxu0 0.0
    %426 = vmatpush1.msra.mxu0 0.0
    %427 = vmatprep.subr.mxu0 0.0
    %428 = vmatpush1.msra.mxu0 0.0
    %429 = vmatprep.subr.mxu0 0.0
    %430 = vmatpush1.msra.mxu0 0.0
    %431 = vmatprep.mubr.f32.mxu0 0.0
    %432 = vmatmul.mubr.f32.gmra.mrb[0].mxu0 %v365
    %v433 = vpop.f32.mrb[0].mxu0
    %v434 = vadd.f32 %v43, %v433
    %v435 = vpop.f32.mrb[0].mxu0
    %436 = vdwg.mxu0
    %v437 = vadd.f32 %v364, %v434
    %v438 = vxor.u32 %v437, 2147483648
    %v439 = vmul.f32 %v438, 1.442695
    %v440 = vpow.pop %v439
    %v441 = vadd.f32 %v440, 1.0
    %v442 = vrcp.pop %v441
    %v443 = vmul.f32 1.0, %v442
    %445 = vrot.lane.b32.xlu0 %v434, 64
    %v446 = vpop.permute.xlu0 %445
    %v448 = vmul.f32 %v443, %v446
    %450 = vrot.lane.b32.xlu0 %v448, 64
    %v451 = vpop.permute.xlu0 %450
    %v453 = vadd.f32 %v364, %v451
    %v454 = vtanh.pop %v453
    %v455 = vsub.f32 1.0, %v443
    %457 = vrot.lane.b32.xlu0 %v454, 96
    %v458 = vpop.permute.xlu0 %457
    %v460 = vmul.f32 %v455, %v458
    %v461 = vmul.f32 %v443, %v356
    %v462 = vadd.f32 %v460, %v461
    %464 = vrot.lane.b32.xlu0 %v462, 96
    %v465 = vpop.permute.xlu0 %464
    %s467 = scalar_lea.vmem [#allocation2], 6
    %468 = vst.msk [vmem:[%s467] sm:$0x3] %vm149, %v465
    %s469 = scalar_lea.vmem %s0, 8
    %v470 = vld [vmem:[%s469] sm:$0x3]
    %v471 = vsel %vm45, %v465, 0
    %473 = vmatprep.subr.mxu0 0.0
    %474 = vmatpush1.msra.mxu0 %v33
    %475 = vmatprep.subr.mxu0 0.0
    %476 = vmatpush1.msra.mxu0 %v34
    %477 = vmatprep.subr.mxu0 0.0
    %478 = vmatpush1.msra.mxu0 %v35
    %479 = vmatprep.subr.mxu0 0.0
    %480 = vmatpush1.msra.mxu0 %v36
    %481 = vmatprep.subr.mxu0 0.0
    %482 = vmatpush1.msra.mxu0 0.0
    %483 = vmatprep.subr.mxu0 0.0
    %484 = vmatpush1.msra.mxu0 0.0
    %485 = vmatprep.subr.mxu0 0.0
    %486 = vmatpush1.msra.mxu0 0.0
    %487 = vmatprep.subr.mxu0 0.0
    %488 = vmatpush1.msra.mxu0 0.0
    %489 = vmatprep.subr.mxu0 0.0
    %490 = vmatpush1.msra.mxu0 0.0
    %491 = vmatprep.subr.mxu0 0.0
    %492 = vmatpush1.msra.mxu0 0.0
    %493 = vmatprep.subr.mxu0 0.0
    %494 = vmatpush1.msra.mxu0 0.0
    %495 = vmatprep.subr.mxu0 0.0
    %496 = vmatpush1.msra.mxu0 0.0
    %497 = vmatprep.subr.mxu0 0.0
    %498 = vmatpush1.msra.mxu0 0.0
    %499 = vmatprep.subr.mxu0 0.0
    %500 = vmatpush1.msra.mxu0 0.0
    %501 = vmatprep.subr.mxu0 0.0
    %502 = vmatpush1.msra.mxu0 0.0
    %503 = vmatprep.subr.mxu0 0.0
    %504 = vmatpush1.msra.mxu0 0.0
    %505 = vmatprep.subr.mxu0 0.0
    %506 = vmatpush1.msra.mxu0 0.0
    %507 = vmatprep.subr.mxu0 0.0
    %508 = vmatpush1.msra.mxu0 0.0
    %509 = vmatprep.subr.mxu0 0.0
    %510 = vmatpush1.msra.mxu0 0.0
    %511 = vmatprep.subr.mxu0 0.0
    %512 = vmatpush1.msra.mxu0 0.0
    %513 = vmatprep.subr.mxu0 0.0
    %514 = vmatpush1.msra.mxu0 0.0
    %515 = vmatprep.subr.mxu0 0.0
    %516 = vmatpush1.msra.mxu0 0.0
    %517 = vmatprep.subr.mxu0 0.0
    %518 = vmatpush1.msra.mxu0 0.0
    %519 = vmatprep.subr.mxu0 0.0
    %520 = vmatpush1.msra.mxu0 0.0
    %521 = vmatprep.subr.mxu0 0.0
    %522 = vmatpush1.msra.mxu0 0.0
    %523 = vmatprep.subr.mxu0 0.0
    %524 = vmatpush1.msra.mxu0 0.0
    %525 = vmatprep.subr.mxu0 0.0
    %526 = vmatpush1.msra.mxu0 0.0
    %527 = vmatprep.subr.mxu0 0.0
    %528 = vmatpush1.msra.mxu0 0.0
    %529 = vmatprep.subr.mxu0 0.0
    %530 = vmatpush1.msra.mxu0 0.0
    %531 = vmatprep.subr.mxu0 0.0
    %532 = vmatpush1.msra.mxu0 0.0
    %533 = vmatprep.subr.mxu0 0.0
    %534 = vmatpush1.msra.mxu0 0.0
    %535 = vmatprep.subr.mxu0 0.0
    %536 = vmatpush1.msra.mxu0 0.0
    %537 = vmatprep.mubr.f32.mxu0 0.0
    %538 = vmatmul.mubr.f32.gmra.mrb[0].mxu0 %v471
    %v539 = vpop.f32.mrb[0].mxu0
    %v540 = vadd.f32 %v43, %v539
    %v541 = vpop.f32.mrb[0].mxu0
    %542 = vdwg.mxu0
    %v543 = vadd.f32 %v470, %v540
    %v544 = vxor.u32 %v543, 2147483648
    %v545 = vmul.f32 %v544, 1.442695
    %v546 = vpow.pop %v545
    %v547 = vadd.f32 %v546, 1.0
    %v548 = vrcp.pop %v547
    %v549 = vmul.f32 1.0, %v548
    %551 = vrot.lane.b32.xlu0 %v540, 64
    %v552 = vpop.permute.xlu0 %551
    %v554 = vmul.f32 %v549, %v552
    %556 = vrot.lane.b32.xlu0 %v554, 64
    %v557 = vpop.permute.xlu0 %556
    %v559 = vadd.f32 %v470, %v557
    %v560 = vtanh.pop %v559
    %v561 = vsub.f32 1.0, %v549
    %563 = vrot.lane.b32.xlu0 %v560, 96
    %v564 = vpop.permute.xlu0 %563
    %v566 = vmul.f32 %v561, %v564
    %v567 = vmul.f32 %v549, %v462
    %v568 = vadd.f32 %v566, %v567
    %570 = vrot.lane.b32.xlu0 %v568, 96
    %v571 = vpop.permute.xlu0 %570
    %s573 = scalar_lea.vmem [#allocation2], 8
    %574 = vst.msk [vmem:[%s573] sm:$0x3] %vm149, %v571
    %s575 = scalar_lea.vmem %s0, 10
    %v576 = vld [vmem:[%s575] sm:$0x3]
    %v577 = vsel %vm45, %v571, 0
    %579 = vmatprep.subr.mxu0 0.0
    %580 = vmatpush1.msra.mxu0 %v33
    %581 = vmatprep.subr.mxu0 0.0
    %582 = vmatpush1.msra.mxu0 %v34
    %583 = vmatprep.subr.mxu0 0.0
    %584 = vmatpush1.msra.mxu0 %v35
    %585 = vmatprep.subr.mxu0 0.0
    %586 = vmatpush1.msra.mxu0 %v36
    %587 = vmatprep.subr.mxu0 0.0
    %588 = vmatpush1.msra.mxu0 0.0
    %589 = vmatprep.subr.mxu0 0.0
    %590 = vmatpush1.msra.mxu0 0.0
    %591 = vmatprep.subr.mxu0 0.0
    %592 = vmatpush1.msra.mxu0 0.0
    %593 = vmatprep.subr.mxu0 0.0
    %594 = vmatpush1.msra.mxu0 0.0
    %595 = vmatprep.subr.mxu0 0.0
    %596 = vmatpush1.msra.mxu0 0.0
    %597 = vmatprep.subr.mxu0 0.0
    %598 = vmatpush1.msra.mxu0 0.0
    %599 = vmatprep.subr.mxu0 0.0
    %600 = vmatpush1.msra.mxu0 0.0
    %601 = vmatprep.subr.mxu0 0.0
    %602 = vmatpush1.msra.mxu0 0.0
    %603 = vmatprep.subr.mxu0 0.0
    %604 = vmatpush1.msra.mxu0 0.0
    %605 = vmatprep.subr.mxu0 0.0
    %606 = vmatpush1.msra.mxu0 0.0
    %607 = vmatprep.subr.mxu0 0.0
    %608 = vmatpush1.msra.mxu0 0.0
    %609 = vmatprep.subr.mxu0 0.0
    %610 = vmatpush1.msra.mxu0 0.0
    %611 = vmatprep.subr.mxu0 0.0
    %612 = vmatpush1.msra.mxu0 0.0
    %613 = vmatprep.subr.mxu0 0.0
    %614 = vmatpush1.msra.mxu0 0.0
    %615 = vmatprep.subr.mxu0 0.0
    %616 = vmatpush1.msra.mxu0 0.0
    %617 = vmatprep.subr.mxu0 0.0
    %618 = vmatpush1.msra.mxu0 0.0
    %619 = vmatprep.subr.mxu0 0.0
    %620 = vmatpush1.msra.mxu0 0.0
    %621 = vmatprep.subr.mxu0 0.0
    %622 = vmatpush1.msra.mxu0 0.0
    %623 = vmatprep.subr.mxu0 0.0
    %624 = vmatpush1.msra.mxu0 0.0
    %625 = vmatprep.subr.mxu0 0.0
    %626 = vmatpush1.msra.mxu0 0.0
    %627 = vmatprep.subr.mxu0 0.0
    %628 = vmatpush1.msra.mxu0 0.0
    %629 = vmatprep.subr.mxu0 0.0
    %630 = vmatpush1.msra.mxu0 0.0
    %631 = vmatprep.subr.mxu0 0.0
    %632 = vmatpush1.msra.mxu0 0.0
    %633 = vmatprep.subr.mxu0 0.0
    %634 = vmatpush1.msra.mxu0 0.0
    %635 = vmatprep.subr.mxu0 0.0
    %636 = vmatpush1.msra.mxu0 0.0
    %637 = vmatprep.subr.mxu0 0.0
    %638 = vmatpush1.msra.mxu0 0.0
    %639 = vmatprep.subr.mxu0 0.0
    %640 = vmatpush1.msra.mxu0 0.0
    %641 = vmatprep.subr.mxu0 0.0
    %642 = vmatpush1.msra.mxu0 0.0
    %643 = vmatprep.mubr.f32.mxu0 0.0
    %644 = vmatmul.mubr.f32.gmra.mrb[0].mxu0 %v577
    %v645 = vpop.f32.mrb[0].mxu0
    %v646 = vadd.f32 %v43, %v645
    %v647 = vpop.f32.mrb[0].mxu0
    %648 = vdwg.mxu0
    %v649 = vadd.f32 %v576, %v646
    %v650 = vxor.u32 %v649, 2147483648
    %v651 = vmul.f32 %v650, 1.442695
    %v652 = vpow.pop %v651
    %v653 = vadd.f32 %v652, 1.0
    %v654 = vrcp.pop %v653
    %v655 = vmul.f32 1.0, %v654
    %657 = vrot.lane.b32.xlu0 %v646, 64
    %v658 = vpop.permute.xlu0 %657
    %v660 = vmul.f32 %v655, %v658
    %662 = vrot.lane.b32.xlu0 %v660, 64
    %v663 = vpop.permute.xlu0 %662
    %v665 = vadd.f32 %v576, %v663
    %v666 = vtanh.pop %v665
    %v667 = vsub.f32 1.0, %v655
    %669 = vrot.lane.b32.xlu0 %v666, 96
    %v670 = vpop.permute.xlu0 %669
    %v672 = vmul.f32 %v667, %v670
    %v673 = vmul.f32 %v655, %v568
    %v674 = vadd.f32 %v672, %v673
    %676 = vrot.lane.b32.xlu0 %v674, 96
    %v677 = vpop.permute.xlu0 %676
    %s679 = scalar_lea.vmem [#allocation2], 10
    %680 = vst.msk [vmem:[%s679] sm:$0x3] %vm149, %v677
    %s681 = scalar_lea.vmem %s0, 12
    %v682 = vld [vmem:[%s681] sm:$0x3]
    %v683 = vsel %vm45, %v677, 0
    %685 = vmatprep.subr.mxu0 0.0
    %686 = vmatpush1.msra.mxu0 %v33
    %687 = vmatprep.subr.mxu0 0.0
    %688 = vmatpush1.msra.mxu0 %v34
    %689 = vmatprep.subr.mxu0 0.0
    %690 = vmatpush1.msra.mxu0 %v35
    %691 = vmatprep.subr.mxu0 0.0
    %692 = vmatpush1.msra.mxu0 %v36
    %693 = vmatprep.subr.mxu0 0.0
    %694 = vmatpush1.msra.mxu0 0.0
    %695 = vmatprep.subr.mxu0 0.0
    %696 = vmatpush1.msra.mxu0 0.0
    %697 = vmatprep.subr.mxu0 0.0
    %698 = vmatpush1.msra.mxu0 0.0
    %699 = vmatprep.subr.mxu0 0.0
    %700 = vmatpush1.msra.mxu0 0.0
    %701 = vmatprep.subr.mxu0 0.0
    %702 = vmatpush1.msra.mxu0 0.0
    %703 = vmatprep.subr.mxu0 0.0
    %704 = vmatpush1.msra.mxu0 0.0
    %705 = vmatprep.subr.mxu0 0.0
    %706 = vmatpush1.msra.mxu0 0.0
    %707 = vmatprep.subr.mxu0 0.0
    %708 = vmatpush1.msra.mxu0 0.0
    %709 = vmatprep.subr.mxu0 0.0
    %710 = vmatpush1.msra.mxu0 0.0
    %711 = vmatprep.subr.mxu0 0.0
    %712 = vmatpush1.msra.mxu0 0.0
    %713 = vmatprep.subr.mxu0 0.0
    %714 = vmatpush1.msra.mxu0 0.0
    %715 = vmatprep.subr.mxu0 0.0
    %716 = vmatpush1.msra.mxu0 0.0
    %717 = vmatprep.subr.mxu0 0.0
    %718 = vmatpush1.msra.mxu0 0.0
    %719 = vmatprep.subr.mxu0 0.0
    %720 = vmatpush1.msra.mxu0 0.0
    %721 = vmatprep.subr.mxu0 0.0
    %722 = vmatpush1.msra.mxu0 0.0
    %723 = vmatprep.subr.mxu0 0.0
    %724 = vmatpush1.msra.mxu0 0.0
    %725 = vmatprep.subr.mxu0 0.0
    %726 = vmatpush1.msra.mxu0 0.0
    %727 = vmatprep.subr.mxu0 0.0
    %728 = vmatpush1.msra.mxu0 0.0
    %729 = vmatprep.subr.mxu0 0.0
    %730 = vmatpush1.msra.mxu0 0.0
    %731 = vmatprep.subr.mxu0 0.0
    %732 = vmatpush1.msra.mxu0 0.0
    %733 = vmatprep.subr.mxu0 0.0
    %734 = vmatpush1.msra.mxu0 0.0
    %735 = vmatprep.subr.mxu0 0.0
    %736 = vmatpush1.msra.mxu0 0.0
    %737 = vmatprep.subr.mxu0 0.0
    %738 = vmatpush1.msra.mxu0 0.0
    %739 = vmatprep.subr.mxu0 0.0
    %740 = vmatpush1.msra.mxu0 0.0
    %741 = vmatprep.subr.mxu0 0.0
    %742 = vmatpush1.msra.mxu0 0.0
    %743 = vmatprep.subr.mxu0 0.0
    %744 = vmatpush1.msra.mxu0 0.0
    %745 = vmatprep.subr.mxu0 0.0
    %746 = vmatpush1.msra.mxu0 0.0
    %747 = vmatprep.subr.mxu0 0.0
    %748 = vmatpush1.msra.mxu0 0.0
    %749 = vmatprep.mubr.f32.mxu0 0.0
    %750 = vmatmul.mubr.f32.gmra.mrb[0].mxu0 %v683
    %v751 = vpop.f32.mrb[0].mxu0
    %v752 = vadd.f32 %v43, %v751
    %v753 = vpop.f32.mrb[0].mxu0
    %754 = vdwg.mxu0
    %v755 = vadd.f32 %v682, %v752
    %v756 = vxor.u32 %v755, 2147483648
    %v757 = vmul.f32 %v756, 1.442695
    %v758 = vpow.pop %v757
    %v759 = vadd.f32 %v758, 1.0
    %v760 = vrcp.pop %v759
    %v761 = vmul.f32 1.0, %v760
    %763 = vrot.lane.b32.xlu0 %v752, 64
    %v764 = vpop.permute.xlu0 %763
    %v766 = vmul.f32 %v761, %v764
    %768 = vrot.lane.b32.xlu0 %v766, 64
    %v769 = vpop.permute.xlu0 %768
    %v771 = vadd.f32 %v682, %v769
    %v772 = vtanh.pop %v771
    %v773 = vsub.f32 1.0, %v761
    %775 = vrot.lane.b32.xlu0 %v772, 96
    %v776 = vpop.permute.xlu0 %775
    %v778 = vmul.f32 %v773, %v776
    %v779 = vmul.f32 %v761, %v674
    %v780 = vadd.f32 %v778, %v779
    %782 = vrot.lane.b32.xlu0 %v780, 96
    %v783 = vpop.permute.xlu0 %782
    %s785 = scalar_lea.vmem [#allocation2], 12
    %786 = vst.msk [vmem:[%s785] sm:$0x3] %vm149, %v783
    %s787 = scalar_lea.vmem %s0, 14
    %v788 = vld [vmem:[%s787] sm:$0x3]
    %v789 = vsel %vm45, %v783, 0
    %791 = vmatprep.subr.mxu0 0.0
    %792 = vmatpush1.msra.mxu0 %v33
    %793 = vmatprep.subr.mxu0 0.0
    %794 = vmatpush1.msra.mxu0 %v34
    %795 = vmatprep.subr.mxu0 0.0
    %796 = vmatpush1.msra.mxu0 %v35
    %797 = vmatprep.subr.mxu0 0.0
    %798 = vmatpush1.msra.mxu0 %v36
    %799 = vmatprep.subr.mxu0 0.0
    %800 = vmatpush1.msra.mxu0 0.0
    %801 = vmatprep.subr.mxu0 0.0
    %802 = vmatpush1.msra.mxu0 0.0
    %803 = vmatprep.subr.mxu0 0.0
    %804 = vmatpush1.msra.mxu0 0.0
    %805 = vmatprep.subr.mxu0 0.0
    %806 = vmatpush1.msra.mxu0 0.0
    %807 = vmatprep.subr.mxu0 0.0
    %808 = vmatpush1.msra.mxu0 0.0
    %809 = vmatprep.subr.mxu0 0.0
    %810 = vmatpush1.msra.mxu0 0.0
    %811 = vmatprep.subr.mxu0 0.0
    %812 = vmatpush1.msra.mxu0 0.0
    %813 = vmatprep.subr.mxu0 0.0
    %814 = vmatpush1.msra.mxu0 0.0
    %815 = vmatprep.subr.mxu0 0.0
    %816 = vmatpush1.msra.mxu0 0.0
    %817 = vmatprep.subr.mxu0 0.0
    %818 = vmatpush1.msra.mxu0 0.0
    %819 = vmatprep.subr.mxu0 0.0
    %820 = vmatpush1.msra.mxu0 0.0
    %821 = vmatprep.subr.mxu0 0.0
    %822 = vmatpush1.msra.mxu0 0.0
    %823 = vmatprep.subr.mxu0 0.0
    %824 = vmatpush1.msra.mxu0 0.0
    %825 = vmatprep.subr.mxu0 0.0
    %826 = vmatpush1.msra.mxu0 0.0
    %827 = vmatprep.subr.mxu0 0.0
    %828 = vmatpush1.msra.mxu0 0.0
    %829 = vmatprep.subr.mxu0 0.0
    %830 = vmatpush1.msra.mxu0 0.0
    %831 = vmatprep.subr.mxu0 0.0
    %832 = vmatpush1.msra.mxu0 0.0
    %833 = vmatprep.subr.mxu0 0.0
    %834 = vmatpush1.msra.mxu0 0.0
    %835 = vmatprep.subr.mxu0 0.0
    %836 = vmatpush1.msra.mxu0 0.0
    %837 = vmatprep.subr.mxu0 0.0
    %838 = vmatpush1.msra.mxu0 0.0
    %839 = vmatprep.subr.mxu0 0.0
    %840 = vmatpush1.msra.mxu0 0.0
    %841 = vmatprep.subr.mxu0 0.0
    %842 = vmatpush1.msra.mxu0 0.0
    %843 = vmatprep.subr.mxu0 0.0
    %844 = vmatpush1.msra.mxu0 0.0
    %845 = vmatprep.subr.mxu0 0.0
    %846 = vmatpush1.msra.mxu0 0.0
    %847 = vmatprep.subr.mxu0 0.0
    %848 = vmatpush1.msra.mxu0 0.0
    %849 = vmatprep.subr.mxu0 0.0
    %850 = vmatpush1.msra.mxu0 0.0
    %851 = vmatprep.subr.mxu0 0.0
    %852 = vmatpush1.msra.mxu0 0.0
    %853 = vmatprep.subr.mxu0 0.0
    %854 = vmatpush1.msra.mxu0 0.0
    %855 = vmatprep.mubr.f32.mxu0 0.0
    %856 = vmatmul.mubr.f32.gmra.mrb[0].mxu0 %v789
    %v857 = vpop.f32.mrb[0].mxu0
    %v858 = vadd.f32 %v43, %v857
    %v859 = vpop.f32.mrb[0].mxu0
    %860 = vdwg.mxu0
    %v861 = vadd.f32 %v788, %v858
    %v862 = vxor.u32 %v861, 2147483648
    %v863 = vmul.f32 %v862, 1.442695
    %v864 = vpow.pop %v863
    %v865 = vadd.f32 %v864, 1.0
    %v866 = vrcp.pop %v865
    %v867 = vmul.f32 1.0, %v866
    %869 = vrot.lane.b32.xlu0 %v858, 64
    %v870 = vpop.permute.xlu0 %869
    %v872 = vmul.f32 %v867, %v870
    %874 = vrot.lane.b32.xlu0 %v872, 64
    %v875 = vpop.permute.xlu0 %874
    %v877 = vadd.f32 %v788, %v875
    %v878 = vtanh.pop %v877
    %v879 = vsub.f32 1.0, %v867
    %881 = vrot.lane.b32.xlu0 %v878, 96
    %v882 = vpop.permute.xlu0 %881
    %v884 = vmul.f32 %v879, %v882
    %v885 = vmul.f32 %v867, %v780
    %v886 = vadd.f32 %v884, %v885
    %888 = vrot.lane.b32.xlu0 %v886, 96
    %v889 = vpop.permute.xlu0 %888
    %s891 = scalar_lea.vmem [#allocation2], 14
    %892 = vst.msk [vmem:[%s891] sm:$0x3] %vm149, %v889
    %v893 = vld [vmem:[%s5] sm:$0xff]
    %v894 = vld [vmem:[%s5 + $0x8] sm:$0xff]
    %v895 = vld [vmem:[%s5 + $0x10] sm:$0xff]
    %v896 = vld [vmem:[%s5 + $0x18] sm:$0xff]
    %v897 = vld [vmem:[%s6] sm:$0x1]
    %v898 = vld [vmem:[#allocation2] sm:$0x3]
    %v900 = vlaneseq
    %v901 = vshrl.u32 %v900, 7
    %v902 = vsub.s32 0, %v901
    %v903 = vrot.slane %v897, %v902
    %v906 = vsel %vm45, %v898, 0
    %908 = vmatprep.subr.mxu0 0.0
    %909 = vmatpush1.msra.mxu0 %v893
    %910 = vmatprep.subr.mxu0 0.0
    %911 = vmatpush1.msra.mxu0 %v894
    %912 = vmatprep.subr.mxu0 0.0
    %913 = vmatpush1.msra.mxu0 %v895
    %914 = vmatprep.subr.mxu0 0.0
    %915 = vmatpush1.msra.mxu0 %v896
    %916 = vmatprep.subr.mxu0 0.0
    %917 = vmatpush1.msra.mxu0 0.0
    %918 = vmatprep.subr.mxu0 0.0
    %919 = vmatpush1.msra.mxu0 0.0
    %920 = vmatprep.subr.mxu0 0.0
    %921 = vmatpush1.msra.mxu0 0.0
    %922 = vmatprep.subr.mxu0 0.0
    %923 = vmatpush1.msra.mxu0 0.0
    %924 = vmatprep.subr.mxu0 0.0
    %925 = vmatpush1.msra.mxu0 0.0
    %926 = vmatprep.subr.mxu0 0.0
    %927 = vmatpush1.msra.mxu0 0.0
    %928 = vmatprep.subr.mxu0 0.0
    %929 = vmatpush1.msra.mxu0 0.0
    %930 = vmatprep.subr.mxu0 0.0
    %931 = vmatpush1.msra.mxu0 0.0
    %932 = vmatprep.subr.mxu0 0.0
    %933 = vmatpush1.msra.mxu0 0.0
    %934 = vmatprep.subr.mxu0 0.0
    %935 = vmatpush1.msra.mxu0 0.0
    %936 = vmatprep.subr.mxu0 0.0
    %937 = vmatpush1.msra.mxu0 0.0
    %938 = vmatprep.subr.mxu0 0.0
    %939 = vmatpush1.msra.mxu0 0.0
    %940 = vmatprep.subr.mxu0 0.0
    %941 = vmatpush1.msra.mxu0 0.0
    %942 = vmatprep.subr.mxu0 0.0
    %943 = vmatpush1.msra.mxu0 0.0
    %944 = vmatprep.subr.mxu0 0.0
    %945 = vmatpush1.msra.mxu0 0.0
    %946 = vmatprep.subr.mxu0 0.0
    %947 = vmatpush1.msra.mxu0 0.0
    %948 = vmatprep.subr.mxu0 0.0
    %949 = vmatpush1.msra.mxu0 0.0
    %950 = vmatprep.subr.mxu0 0.0
    %951 = vmatpush1.msra.mxu0 0.0
    %952 = vmatprep.subr.mxu0 0.0
    %953 = vmatpush1.msra.mxu0 0.0
    %954 = vmatprep.subr.mxu0 0.0
    %955 = vmatpush1.msra.mxu0 0.0
    %956 = vmatprep.subr.mxu0 0.0
    %957 = vmatpush1.msra.mxu0 0.0
    %958 = vmatprep.subr.mxu0 0.0
    %959 = vmatpush1.msra.mxu0 0.0
    %960 = vmatprep.subr.mxu0 0.0
    %961 = vmatpush1.msra.mxu0 0.0
    %962 = vmatprep.subr.mxu0 0.0
    %963 = vmatpush1.msra.mxu0 0.0
    %964 = vmatprep.subr.mxu0 0.0
    %965 = vmatpush1.msra.mxu0 0.0
    %966 = vmatprep.subr.mxu0 0.0
    %967 = vmatpush1.msra.mxu0 0.0
    %968 = vmatprep.subr.mxu0 0.0
    %969 = vmatpush1.msra.mxu0 0.0
    %970 = vmatprep.subr.mxu0 0.0
    %971 = vmatpush1.msra.mxu0 0.0
    %972 = vmatprep.mubr.f32.mxu0 0.0
    %973 = vmatmul.mubr.f32.gmra.mrb[0].mxu0 %v906
    %v974 = vpop.f32.mrb[0].mxu0
    %v975 = vadd.f32 %v903, %v974
    %v976 = vpop.f32.mrb[0].mxu0
    %977 = vdwg.mxu0
    %vm978 = vcmask 779264
    %979 = vst.msk [vmem:[#allocation3] sm:$0x3] %vm978, %v975
    %v980 = vld [vmem:[%s255] sm:$0x3]
    %v982 = vsel %vm45, %v980, 0
    %984 = vmatprep.subr.mxu0 0.0
    %985 = vmatpush1.msra.mxu0 %v893
    %986 = vmatprep.subr.mxu0 0.0
    %987 = vmatpush1.msra.mxu0 %v894
    %988 = vmatprep.subr.mxu0 0.0
    %989 = vmatpush1.msra.mxu0 %v895
    %990 = vmatprep.subr.mxu0 0.0
    %991 = vmatpush1.msra.mxu0 %v896
    %992 = vmatprep.subr.mxu0 0.0
    %993 = vmatpush1.msra.mxu0 0.0
    %994 = vmatprep.subr.mxu0 0.0
    %995 = vmatpush1.msra.mxu0 0.0
    %996 = vmatprep.subr.mxu0 0.0
    %997 = vmatpush1.msra.mxu0 0.0
    %998 = vmatprep.subr.mxu0 0.0
    %999 = vmatpush1.msra.mxu0 0.0
    %1000 = vmatprep.subr.mxu0 0.0
    %1001 = vmatpush1.msra.mxu0 0.0
    %1002 = vmatprep.subr.mxu0 0.0
    %1003 = vmatpush1.msra.mxu0 0.0
    %1004 = vmatprep.subr.mxu0 0.0
    %1005 = vmatpush1.msra.mxu0 0.0
    %1006 = vmatprep.subr.mxu0 0.0
    %1007 = vmatpush1.msra.mxu0 0.0
    %1008 = vmatprep.subr.mxu0 0.0
    %1009 = vmatpush1.msra.mxu0 0.0
    %1010 = vmatprep.subr.mxu0 0.0
    %1011 = vmatpush1.msra.mxu0 0.0
    %1012 = vmatprep.subr.mxu0 0.0
    %1013 = vmatpush1.msra.mxu0 0.0
    %1014 = vmatprep.subr.mxu0 0.0
    %1015 = vmatpush1.msra.mxu0 0.0
    %1016 = vmatprep.subr.mxu0 0.0
    %1017 = vmatpush1.msra.mxu0 0.0
    %1018 = vmatprep.subr.mxu0 0.0
    %1019 = vmatpush1.msra.mxu0 0.0
    %1020 = vmatprep.subr.mxu0 0.0
    %1021 = vmatpush1.msra.mxu0 0.0
    %1022 = vmatprep.subr.mxu0 0.0
    %1023 = vmatpush1.msra.mxu0 0.0
    %1024 = vmatprep.subr.mxu0 0.0
    %1025 = vmatpush1.msra.mxu0 0.0
    %1026 = vmatprep.subr.mxu0 0.0
    %1027 = vmatpush1.msra.mxu0 0.0
    %1028 = vmatprep.subr.mxu0 0.0
    %1029 = vmatpush1.msra.mxu0 0.0
    %1030 = vmatprep.subr.mxu0 0.0
    %1031 = vmatpush1.msra.mxu0 0.0
    %1032 = vmatprep.subr.mxu0 0.0
    %1033 = vmatpush1.msra.mxu0 0.0
    %1034 = vmatprep.subr.mxu0 0.0
    %1035 = vmatpush1.msra.mxu0 0.0
    %1036 = vmatprep.subr.mxu0 0.0
    %1037 = vmatpush1.msra.mxu0 0.0
    %1038 = vmatprep.subr.mxu0 0.0
    %1039 = vmatpush1.msra.mxu0 0.0
    %1040 = vmatprep.subr.mxu0 0.0
    %1041 = vmatpush1.msra.mxu0 0.0
    %1042 = vmatprep.subr.mxu0 0.0
    %1043 = vmatpush1.msra.mxu0 0.0
    %1044 = vmatprep.subr.mxu0 0.0
    %1045 = vmatpush1.msra.mxu0 0.0
    %1046 = vmatprep.subr.mxu0 0.0
    %1047 = vmatpush1.msra.mxu0 0.0
    %1048 = vmatprep.mubr.f32.mxu0 0.0
    %1049 = vmatmul.mubr.f32.gmra.mrb[0].mxu0 %v982
    %v1050 = vpop.f32.mrb[0].mxu0
    %v1051 = vadd.f32 %v903, %v1050
    %v1052 = vpop.f32.mrb[0].mxu0
    %1053 = vdwg.mxu0
    %s1054 = scalar_lea.vmem [#allocation3], 2
    %1055 = vst.msk [vmem:[%s1054] sm:$0x3] %vm978, %v1051
    %v1056 = vld [vmem:[%s361] sm:$0x3]
    %v1058 = vsel %vm45, %v1056, 0
    %1060 = vmatprep.subr.mxu0 0.0
    %1061 = vmatpush1.msra.mxu0 %v893
    %1062 = vmatprep.subr.mxu0 0.0
    %1063 = vmatpush1.msra.mxu0 %v894
    %1064 = vmatprep.subr.mxu0 0.0
    %1065 = vmatpush1.msra.mxu0 %v895
    %1066 = vmatprep.subr.mxu0 0.0
    %1067 = vmatpush1.msra.mxu0 %v896
    %1068 = vmatprep.subr.mxu0 0.0
    %1069 = vmatpush1.msra.mxu0 0.0
    %1070 = vmatprep.subr.mxu0 0.0
    %1071 = vmatpush1.msra.mxu0 0.0
    %1072 = vmatprep.subr.mxu0 0.0
    %1073 = vmatpush1.msra.mxu0 0.0
    %1074 = vmatprep.subr.mxu0 0.0
    %1075 = vmatpush1.msra.mxu0 0.0
    %1076 = vmatprep.subr.mxu0 0.0
    %1077 = vmatpush1.msra.mxu0 0.0
    %1078 = vmatprep.subr.mxu0 0.0
    %1079 = vmatpush1.msra.mxu0 0.0
    %1080 = vmatprep.subr.mxu0 0.0
    %1081 = vmatpush1.msra.mxu0 0.0
    %1082 = vmatprep.subr.mxu0 0.0
    %1083 = vmatpush1.msra.mxu0 0.0
    %1084 = vmatprep.subr.mxu0 0.0
    %1085 = vmatpush1.msra.mxu0 0.0
    %1086 = vmatprep.subr.mxu0 0.0
    %1087 = vmatpush1.msra.mxu0 0.0
    %1088 = vmatprep.subr.mxu0 0.0
    %1089 = vmatpush1.msra.mxu0 0.0
    %1090 = vmatprep.subr.mxu0 0.0
    %1091 = vmatpush1.msra.mxu0 0.0
    %1092 = vmatprep.subr.mxu0 0.0
    %1093 = vmatpush1.msra.mxu0 0.0
    %1094 = vmatprep.subr.mxu0 0.0
    %1095 = vmatpush1.msra.mxu0 0.0
    %1096 = vmatprep.subr.mxu0 0.0
    %1097 = vmatpush1.msra.mxu0 0.0
    %1098 = vmatprep.subr.mxu0 0.0
    %1099 = vmatpush1.msra.mxu0 0.0
    %1100 = vmatprep.subr.mxu0 0.0
    %1101 = vmatpush1.msra.mxu0 0.0
    %1102 = vmatprep.subr.mxu0 0.0
    %1103 = vmatpush1.msra.mxu0 0.0
    %1104 = vmatprep.subr.mxu0 0.0
    %1105 = vmatpush1.msra.mxu0 0.0
    %1106 = vmatprep.subr.mxu0 0.0
    %1107 = vmatpush1.msra.mxu0 0.0
    %1108 = vmatprep.subr.mxu0 0.0
    %1109 = vmatpush1.msra.mxu0 0.0
    %1110 = vmatprep.subr.mxu0 0.0
    %1111 = vmatpush1.msra.mxu0 0.0
    %1112 = vmatprep.subr.mxu0 0.0
    %1113 = vmatpush1.msra.mxu0 0.0
    %1114 = vmatprep.subr.mxu0 0.0
    %1115 = vmatpush1.msra.mxu0 0.0
    %1116 = vmatprep.subr.mxu0 0.0
    %1117 = vmatpush1.msra.mxu0 0.0
    %1118 = vmatprep.subr.mxu0 0.0
    %1119 = vmatpush1.msra.mxu0 0.0
    %1120 = vmatprep.subr.mxu0 0.0
    %1121 = vmatpush1.msra.mxu0 0.0
    %1122 = vmatprep.subr.mxu0 0.0
    %1123 = vmatpush1.msra.mxu0 0.0
    %1124 = vmatprep.mubr.f32.mxu0 0.0
    %1125 = vmatmul.mubr.f32.gmra.mrb[0].mxu0 %v1058
    %v1126 = vpop.f32.mrb[0].mxu0
    %v1127 = vadd.f32 %v903, %v1126
    %v1128 = vpop.f32.mrb[0].mxu0
    %1129 = vdwg.mxu0
    %s1130 = scalar_lea.vmem [#allocation3], 4
    %1131 = vst.msk [vmem:[%s1130] sm:$0x3] %vm978, %v1127
    %v1132 = vld [vmem:[%s467] sm:$0x3]
    %v1134 = vsel %vm45, %v1132, 0
    %1136 = vmatprep.subr.mxu0 0.0
    %1137 = vmatpush1.msra.mxu0 %v893
    %1138 = vmatprep.subr.mxu0 0.0
    %1139 = vmatpush1.msra.mxu0 %v894
    %1140 = vmatprep.subr.mxu0 0.0
    %1141 = vmatpush1.msra.mxu0 %v895
    %1142 = vmatprep.subr.mxu0 0.0
    %1143 = vmatpush1.msra.mxu0 %v896
    %1144 = vmatprep.subr.mxu0 0.0
    %1145 = vmatpush1.msra.mxu0 0.0
    %1146 = vmatprep.subr.mxu0 0.0
    %1147 = vmatpush1.msra.mxu0 0.0
    %1148 = vmatprep.subr.mxu0 0.0
    %1149 = vmatpush1.msra.mxu0 0.0
    %1150 = vmatprep.subr.mxu0 0.0
    %1151 = vmatpush1.msra.mxu0 0.0
    %1152 = vmatprep.subr.mxu0 0.0
    %1153 = vmatpush1.msra.mxu0 0.0
    %1154 = vmatprep.subr.mxu0 0.0
    %1155 = vmatpush1.msra.mxu0 0.0
    %1156 = vmatprep.subr.mxu0 0.0
    %1157 = vmatpush1.msra.mxu0 0.0
    %1158 = vmatprep.subr.mxu0 0.0
    %1159 = vmatpush1.msra.mxu0 0.0
    %1160 = vmatprep.subr.mxu0 0.0
    %1161 = vmatpush1.msra.mxu0 0.0
    %1162 = vmatprep.subr.mxu0 0.0
    %1163 = vmatpush1.msra.mxu0 0.0
    %1164 = vmatprep.subr.mxu0 0.0
    %1165 = vmatpush1.msra.mxu0 0.0
    %1166 = vmatprep.subr.mxu0 0.0
    %1167 = vmatpush1.msra.mxu0 0.0
    %1168 = vmatprep.subr.mxu0 0.0
    %1169 = vmatpush1.msra.mxu0 0.0
    %1170 = vmatprep.subr.mxu0 0.0
    %1171 = vmatpush1.msra.mxu0 0.0
    %1172 = vmatprep.subr.mxu0 0.0
    %1173 = vmatpush1.msra.mxu0 0.0
    %1174 = vmatprep.subr.mxu0 0.0
    %1175 = vmatpush1.msra.mxu0 0.0
    %1176 = vmatprep.subr.mxu0 0.0
    %1177 = vmatpush1.msra.mxu0 0.0
    %1178 = vmatprep.subr.mxu0 0.0
    %1179 = vmatpush1.msra.mxu0 0.0
    %1180 = vmatprep.subr.mxu0 0.0
    %1181 = vmatpush1.msra.mxu0 0.0
    %1182 = vmatprep.subr.mxu0 0.0
    %1183 = vmatpush1.msra.mxu0 0.0
    %1184 = vmatprep.subr.mxu0 0.0
    %1185 = vmatpush1.msra.mxu0 0.0
    %1186 = vmatprep.subr.mxu0 0.0
    %1187 = vmatpush1.msra.mxu0 0.0
    %1188 = vmatprep.subr.mxu0 0.0
    %1189 = vmatpush1.msra.mxu0 0.0
    %1190 = vmatprep.subr.mxu0 0.0
    %1191 = vmatpush1.msra.mxu0 0.0
    %1192 = vmatprep.subr.mxu0 0.0
    %1193 = vmatpush1.msra.mxu0 0.0
    %1194 = vmatprep.subr.mxu0 0.0
    %1195 = vmatpush1.msra.mxu0 0.0
    %1196 = vmatprep.subr.mxu0 0.0
    %1197 = vmatpush1.msra.mxu0 0.0
    %1198 = vmatprep.subr.mxu0 0.0
    %1199 = vmatpush1.msra.mxu0 0.0
    %1200 = vmatprep.mubr.f32.mxu0 0.0
    %1201 = vmatmul.mubr.f32.gmra.mrb[0].mxu0 %v1134
    %v1202 = vpop.f32.mrb[0].mxu0
    %v1203 = vadd.f32 %v903, %v1202
    %v1204 = vpop.f32.mrb[0].mxu0
    %1205 = vdwg.mxu0
    %s1206 = scalar_lea.vmem [#allocation3], 6
    %1207 = vst.msk [vmem:[%s1206] sm:$0x3] %vm978, %v1203
    %v1208 = vld [vmem:[%s573] sm:$0x3]
    %v1210 = vsel %vm45, %v1208, 0
    %1212 = vmatprep.subr.mxu0 0.0
    %1213 = vmatpush1.msra.mxu0 %v893
    %1214 = vmatprep.subr.mxu0 0.0
    %1215 = vmatpush1.msra.mxu0 %v894
    %1216 = vmatprep.subr.mxu0 0.0
    %1217 = vmatpush1.msra.mxu0 %v895
    %1218 = vmatprep.subr.mxu0 0.0
    %1219 = vmatpush1.msra.mxu0 %v896
    %1220 = vmatprep.subr.mxu0 0.0
    %1221 = vmatpush1.msra.mxu0 0.0
    %1222 = vmatprep.subr.mxu0 0.0
    %1223 = vmatpush1.msra.mxu0 0.0
    %1224 = vmatprep.subr.mxu0 0.0
    %1225 = vmatpush1.msra.mxu0 0.0
    %1226 = vmatprep.subr.mxu0 0.0
    %1227 = vmatpush1.msra.mxu0 0.0
    %1228 = vmatprep.subr.mxu0 0.0
    %1229 = vmatpush1.msra.mxu0 0.0
    %1230 = vmatprep.subr.mxu0 0.0
    %1231 = vmatpush1.msra.mxu0 0.0
    %1232 = vmatprep.subr.mxu0 0.0
    %1233 = vmatpush1.msra.mxu0 0.0
    %1234 = vmatprep.subr.mxu0 0.0
    %1235 = vmatpush1.msra.mxu0 0.0
    %1236 = vmatprep.subr.mxu0 0.0
    %1237 = vmatpush1.msra.mxu0 0.0
    %1238 = vmatprep.subr.mxu0 0.0
    %1239 = vmatpush1.msra.mxu0 0.0
    %1240 = vmatprep.subr.mxu0 0.0
    %1241 = vmatpush1.msra.mxu0 0.0
    %1242 = vmatprep.subr.mxu0 0.0
    %1243 = vmatpush1.msra.mxu0 0.0
    %1244 = vmatprep.subr.mxu0 0.0
    %1245 = vmatpush1.msra.mxu0 0.0
    %1246 = vmatprep.subr.mxu0 0.0
    %1247 = vmatpush1.msra.mxu0 0.0
    %1248 = vmatprep.subr.mxu0 0.0
    %1249 = vmatpush1.msra.mxu0 0.0
    %1250 = vmatprep.subr.mxu0 0.0
    %1251 = vmatpush1.msra.mxu0 0.0
    %1252 = vmatprep.subr.mxu0 0.0
    %1253 = vmatpush1.msra.mxu0 0.0
    %1254 = vmatprep.subr.mxu0 0.0
    %1255 = vmatpush1.msra.mxu0 0.0
    %1256 = vmatprep.subr.mxu0 0.0
    %1257 = vmatpush1.msra.mxu0 0.0
    %1258 = vmatprep.subr.mxu0 0.0
    %1259 = vmatpush1.msra.mxu0 0.0
    %1260 = vmatprep.subr.mxu0 0.0
    %1261 = vmatpush1.msra.mxu0 0.0
    %1262 = vmatprep.subr.mxu0 0.0
    %1263 = vmatpush1.msra.mxu0 0.0
    %1264 = vmatprep.subr.mxu0 0.0
    %1265 = vmatpush1.msra.mxu0 0.0
    %1266 = vmatprep.subr.mxu0 0.0
    %1267 = vmatpush1.msra.mxu0 0.0
    %1268 = vmatprep.subr.mxu0 0.0
    %1269 = vmatpush1.msra.mxu0 0.0
    %1270 = vmatprep.subr.mxu0 0.0
    %1271 = vmatpush1.msra.mxu0 0.0
    %1272 = vmatprep.subr.mxu0 0.0
    %1273 = vmatpush1.msra.mxu0 0.0
    %1274 = vmatprep.subr.mxu0 0.0
    %1275 = vmatpush1.msra.mxu0 0.0
    %1276 = vmatprep.mubr.f32.mxu0 0.0
    %1277 = vmatmul.mubr.f32.gmra.mrb[0].mxu0 %v1210
    %v1278 = vpop.f32.mrb[0].mxu0
    %v1279 = vadd.f32 %v903, %v1278
    %v1280 = vpop.f32.mrb[0].mxu0
    %1281 = vdwg.mxu0
    %s1282 = scalar_lea.vmem [#allocation3], 8
    %1283 = vst.msk [vmem:[%s1282] sm:$0x3] %vm978, %v1279
    %v1284 = vld [vmem:[%s679] sm:$0x3]
    %v1286 = vsel %vm45, %v1284, 0
    %1288 = vmatprep.subr.mxu0 0.0
    %1289 = vmatpush1.msra.mxu0 %v893
    %1290 = vmatprep.subr.mxu0 0.0
    %1291 = vmatpush1.msra.mxu0 %v894
    %1292 = vmatprep.subr.mxu0 0.0
    %1293 = vmatpush1.msra.mxu0 %v895
    %1294 = vmatprep.subr.mxu0 0.0
    %1295 = vmatpush1.msra.mxu0 %v896
    %1296 = vmatprep.subr.mxu0 0.0
    %1297 = vmatpush1.msra.mxu0 0.0
    %1298 = vmatprep.subr.mxu0 0.0
    %1299 = vmatpush1.msra.mxu0 0.0
    %1300 = vmatprep.subr.mxu0 0.0
    %1301 = vmatpush1.msra.mxu0 0.0
    %1302 = vmatprep.subr.mxu0 0.0
    %1303 = vmatpush1.msra.mxu0 0.0
    %1304 = vmatprep.subr.mxu0 0.0
    %1305 = vmatpush1.msra.mxu0 0.0
    %1306 = vmatprep.subr.mxu0 0.0
    %1307 = vmatpush1.msra.mxu0 0.0
    %1308 = vmatprep.subr.mxu0 0.0
    %1309 = vmatpush1.msra.mxu0 0.0
    %1310 = vmatprep.subr.mxu0 0.0
    %1311 = vmatpush1.msra.mxu0 0.0
    %1312 = vmatprep.subr.mxu0 0.0
    %1313 = vmatpush1.msra.mxu0 0.0
    %1314 = vmatprep.subr.mxu0 0.0
    %1315 = vmatpush1.msra.mxu0 0.0
    %1316 = vmatprep.subr.mxu0 0.0
    %1317 = vmatpush1.msra.mxu0 0.0
    %1318 = vmatprep.subr.mxu0 0.0
    %1319 = vmatpush1.msra.mxu0 0.0
    %1320 = vmatprep.subr.mxu0 0.0
    %1321 = vmatpush1.msra.mxu0 0.0
    %1322 = vmatprep.subr.mxu0 0.0
    %1323 = vmatpush1.msra.mxu0 0.0
    %1324 = vmatprep.subr.mxu0 0.0
    %1325 = vmatpush1.msra.mxu0 0.0
    %1326 = vmatprep.subr.mxu0 0.0
    %1327 = vmatpush1.msra.mxu0 0.0
    %1328 = vmatprep.subr.mxu0 0.0
    %1329 = vmatpush1.msra.mxu0 0.0
    %1330 = vmatprep.subr.mxu0 0.0
    %1331 = vmatpush1.msra.mxu0 0.0
    %1332 = vmatprep.subr.mxu0 0.0
    %1333 = vmatpush1.msra.mxu0 0.0
    %1334 = vmatprep.subr.mxu0 0.0
    %1335 = vmatpush1.msra.mxu0 0.0
    %1336 = vmatprep.subr.mxu0 0.0
    %1337 = vmatpush1.msra.mxu0 0.0
    %1338 = vmatprep.subr.mxu0 0.0
    %1339 = vmatpush1.msra.mxu0 0.0
    %1340 = vmatprep.subr.mxu0 0.0
    %1341 = vmatpush1.msra.mxu0 0.0
    %1342 = vmatprep.subr.mxu0 0.0
    %1343 = vmatpush1.msra.mxu0 0.0
    %1344 = vmatprep.subr.mxu0 0.0
    %1345 = vmatpush1.msra.mxu0 0.0
    %1346 = vmatprep.subr.mxu0 0.0
    %1347 = vmatpush1.msra.mxu0 0.0
    %1348 = vmatprep.subr.mxu0 0.0
    %1349 = vmatpush1.msra.mxu0 0.0
    %1350 = vmatprep.subr.mxu0 0.0
    %1351 = vmatpush1.msra.mxu0 0.0
    %1352 = vmatprep.mubr.f32.mxu0 0.0
    %1353 = vmatmul.mubr.f32.gmra.mrb[0].mxu0 %v1286
    %v1354 = vpop.f32.mrb[0].mxu0
    %v1355 = vadd.f32 %v903, %v1354
    %v1356 = vpop.f32.mrb[0].mxu0
    %1357 = vdwg.mxu0
    %s1358 = scalar_lea.vmem [#allocation3], 10
    %1359 = vst.msk [vmem:[%s1358] sm:$0x3] %vm978, %v1355
    %v1360 = vld [vmem:[%s785] sm:$0x3]
    %v1362 = vsel %vm45, %v1360, 0
    %1364 = vmatprep.subr.mxu0 0.0
    %1365 = vmatpush1.msra.mxu0 %v893
    %1366 = vmatprep.subr.mxu0 0.0
    %1367 = vmatpush1.msra.mxu0 %v894
    %1368 = vmatprep.subr.mxu0 0.0
    %1369 = vmatpush1.msra.mxu0 %v895
    %1370 = vmatprep.subr.mxu0 0.0
    %1371 = vmatpush1.msra.mxu0 %v896
    %1372 = vmatprep.subr.mxu0 0.0
    %1373 = vmatpush1.msra.mxu0 0.0
    %1374 = vmatprep.subr.mxu0 0.0
    %1375 = vmatpush1.msra.mxu0 0.0
    %1376 = vmatprep.subr.mxu0 0.0
    %1377 = vmatpush1.msra.mxu0 0.0
    %1378 = vmatprep.subr.mxu0 0.0
    %1379 = vmatpush1.msra.mxu0 0.0
    %1380 = vmatprep.subr.mxu0 0.0
    %1381 = vmatpush1.msra.mxu0 0.0
    %1382 = vmatprep.subr.mxu0 0.0
    %1383 = vmatpush1.msra.mxu0 0.0
    %1384 = vmatprep.subr.mxu0 0.0
    %1385 = vmatpush1.msra.mxu0 0.0
    %1386 = vmatprep.subr.mxu0 0.0
    %1387 = vmatpush1.msra.mxu0 0.0
    %1388 = vmatprep.subr.mxu0 0.0
    %1389 = vmatpush1.msra.mxu0 0.0
    %1390 = vmatprep.subr.mxu0 0.0
    %1391 = vmatpush1.msra.mxu0 0.0
    %1392 = vmatprep.subr.mxu0 0.0
    %1393 = vmatpush1.msra.mxu0 0.0
    %1394 = vmatprep.subr.mxu0 0.0
    %1395 = vmatpush1.msra.mxu0 0.0
    %1396 = vmatprep.subr.mxu0 0.0
    %1397 = vmatpush1.msra.mxu0 0.0
    %1398 = vmatprep.subr.mxu0 0.0
    %1399 = vmatpush1.msra.mxu0 0.0
    %1400 = vmatprep.subr.mxu0 0.0
    %1401 = vmatpush1.msra.mxu0 0.0
    %1402 = vmatprep.subr.mxu0 0.0
    %1403 = vmatpush1.msra.mxu0 0.0
    %1404 = vmatprep.subr.mxu0 0.0
    %1405 = vmatpush1.msra.mxu0 0.0
    %1406 = vmatprep.subr.mxu0 0.0
    %1407 = vmatpush1.msra.mxu0 0.0
    %1408 = vmatprep.subr.mxu0 0.0
    %1409 = vmatpush1.msra.mxu0 0.0
    %1410 = vmatprep.subr.mxu0 0.0
    %1411 = vmatpush1.msra.mxu0 0.0
    %1412 = vmatprep.subr.mxu0 0.0
    %1413 = vmatpush1.msra.mxu0 0.0
    %1414 = vmatprep.subr.mxu0 0.0
    %1415 = vmatpush1.msra.mxu0 0.0
    %1416 = vmatprep.subr.mxu0 0.0
    %1417 = vmatpush1.msra.mxu0 0.0
    %1418 = vmatprep.subr.mxu0 0.0
    %1419 = vmatpush1.msra.mxu0 0.0
    %1420 = vmatprep.subr.mxu0 0.0
    %1421 = vmatpush1.msra.mxu0 0.0
    %1422 = vmatprep.subr.mxu0 0.0
    %1423 = vmatpush1.msra.mxu0 0.0
    %1424 = vmatprep.subr.mxu0 0.0
    %1425 = vmatpush1.msra.mxu0 0.0
    %1426 = vmatprep.subr.mxu0 0.0
    %1427 = vmatpush1.msra.mxu0 0.0
    %1428 = vmatprep.mubr.f32.mxu0 0.0
    %1429 = vmatmul.mubr.f32.gmra.mrb[0].mxu0 %v1362
    %v1430 = vpop.f32.mrb[0].mxu0
    %v1431 = vadd.f32 %v903, %v1430
    %v1432 = vpop.f32.mrb[0].mxu0
    %1433 = vdwg.mxu0
    %s1434 = scalar_lea.vmem [#allocation3], 12
    %1435 = vst.msk [vmem:[%s1434] sm:$0x3] %vm978, %v1431
    %v1436 = vld [vmem:[%s891] sm:$0x3]
    %v1438 = vsel %vm45, %v1436, 0
    %1440 = vmatprep.subr.mxu0 0.0
    %1441 = vmatpush1.msra.mxu0 %v893
    %1442 = vmatprep.subr.mxu0 0.0
    %1443 = vmatpush1.msra.mxu0 %v894
    %1444 = vmatprep.subr.mxu0 0.0
    %1445 = vmatpush1.msra.mxu0 %v895
    %1446 = vmatprep.subr.mxu0 0.0
    %1447 = vmatpush1.msra.mxu0 %v896
    %1448 = vmatprep.subr.mxu0 0.0
    %1449 = vmatpush1.msra.mxu0 0.0
    %1450 = vmatprep.subr.mxu0 0.0
    %1451 = vmatpush1.msra.mxu0 0.0
    %1452 = vmatprep.subr.mxu0 0.0
    %1453 = vmatpush1.msra.mxu0 0.0
    %1454 = vmatprep.subr.mxu0 0.0
    %1455 = vmatpush1.msra.mxu0 0.0
    %1456 = vmatprep.subr.mxu0 0.0
    %1457 = vmatpush1.msra.mxu0 0.0
    %1458 = vmatprep.subr.mxu0 0.0
    %1459 = vmatpush1.msra.mxu0 0.0
    %1460 = vmatprep.subr.mxu0 0.0
    %1461 = vmatpush1.msra.mxu0 0.0
    %1462 = vmatprep.subr.mxu0 0.0
    %1463 = vmatpush1.msra.mxu0 0.0
    %1464 = vmatprep.subr.mxu0 0.0
    %1465 = vmatpush1.msra.mxu0 0.0
    %1466 = vmatprep.subr.mxu0 0.0
    %1467 = vmatpush1.msra.mxu0 0.0
    %1468 = vmatprep.subr.mxu0 0.0
    %1469 = vmatpush1.msra.mxu0 0.0
    %1470 = vmatprep.subr.mxu0 0.0
    %1471 = vmatpush1.msra.mxu0 0.0
    %1472 = vmatprep.subr.mxu0 0.0
    %1473 = vmatpush1.msra.mxu0 0.0
    %1474 = vmatprep.subr.mxu0 0.0
    %1475 = vmatpush1.msra.mxu0 0.0
    %1476 = vmatprep.subr.mxu0 0.0
    %1477 = vmatpush1.msra.mxu0 0.0
    %1478 = vmatprep.subr.mxu0 0.0
    %1479 = vmatpush1.msra.mxu0 0.0
    %1480 = vmatprep.subr.mxu0 0.0
    %1481 = vmatpush1.msra.mxu0 0.0
    %1482 = vmatprep.subr.mxu0 0.0
    %1483 = vmatpush1.msra.mxu0 0.0
    %1484 = vmatprep.subr.mxu0 0.0
    %1485 = vmatpush1.msra.mxu0 0.0
    %1486 = vmatprep.subr.mxu0 0.0
    %1487 = vmatpush1.msra.mxu0 0.0
    %1488 = vmatprep.subr.mxu0 0.0
    %1489 = vmatpush1.msra.mxu0 0.0
    %1490 = vmatprep.subr.mxu0 0.0
    %1491 = vmatpush1.msra.mxu0 0.0
    %1492 = vmatprep.subr.mxu0 0.0
    %1493 = vmatpush1.msra.mxu0 0.0
    %1494 = vmatprep.subr.mxu0 0.0
    %1495 = vmatpush1.msra.mxu0 0.0
    %1496 = vmatprep.subr.mxu0 0.0
    %1497 = vmatpush1.msra.mxu0 0.0
    %1498 = vmatprep.subr.mxu0 0.0
    %1499 = vmatpush1.msra.mxu0 0.0
    %1500 = vmatprep.subr.mxu0 0.0
    %1501 = vmatpush1.msra.mxu0 0.0
    %1502 = vmatprep.subr.mxu0 0.0
    %1503 = vmatpush1.msra.mxu0 0.0
    %1504 = vmatprep.mubr.f32.mxu0 0.0
    %1505 = vmatmul.mubr.f32.gmra.mrb[0].mxu0 %v1438
    %v1506 = vpop.f32.mrb[0].mxu0
    %v1507 = vadd.f32 %v903, %v1506
    %v1508 = vpop.f32.mrb[0].mxu0
    %1509 = vdwg.mxu0
    %s1510 = scalar_lea.vmem [#allocation3], 14
    %1511 = vst.msk [vmem:[%s1510] sm:$0x3] %vm978, %v1507
    %v1512 = vld [vmem:[%s3] sm:$0xff]
    %v1513 = vld [vmem:[%s3 + $0x8] sm:$0xff]
    %v1514 = vld [vmem:[%s3 + $0x10] sm:$0xff]
    %v1515 = vld [vmem:[%s3 + $0x18] sm:$0xff]
    %v1516 = vld [vmem:[%s4] sm:$0x1]
    %v1517 = vld [vmem:[#allocation3] sm:$0x3]
    %v1519 = vlaneseq
    %v1520 = vshrl.u32 %v1519, 7
    %v1521 = vsub.s32 0, %v1520
    %v1522 = vrot.slane %v1516, %v1521
    %1524 = vmatprep.subr.mxu0 0.0
    %1525 = vmatpush1.msra.mxu0 %v1512
    %1526 = vmatprep.subr.mxu0 0.0
    %1527 = vmatpush1.msra.mxu0 %v1513
    %1528 = vmatprep.subr.mxu0 0.0
    %1529 = vmatpush1.msra.mxu0 %v1514
    %1530 = vmatprep.subr.mxu0 0.0
    %1531 = vmatpush1.msra.mxu0 %v1515
    %1532 = vmatprep.subr.mxu0 0.0
    %1533 = vmatpush1.msra.mxu0 0.0
    %1534 = vmatprep.subr.mxu0 0.0
    %1535 = vmatpush1.msra.mxu0 0.0
    %1536 = vmatprep.subr.mxu0 0.0
    %1537 = vmatpush1.msra.mxu0 0.0
    %1538 = vmatprep.subr.mxu0 0.0
    %1539 = vmatpush1.msra.mxu0 0.0
    %1540 = vmatprep.subr.mxu0 0.0
    %1541 = vmatpush1.msra.mxu0 0.0
    %1542 = vmatprep.subr.mxu0 0.0
    %1543 = vmatpush1.msra.mxu0 0.0
    %1544 = vmatprep.subr.mxu0 0.0
    %1545 = vmatpush1.msra.mxu0 0.0
    %1546 = vmatprep.subr.mxu0 0.0
    %1547 = vmatpush1.msra.mxu0 0.0
    %1548 = vmatprep.subr.mxu0 0.0
    %1549 = vmatpush1.msra.mxu0 0.0
    %1550 = vmatprep.subr.mxu0 0.0
    %1551 = vmatpush1.msra.mxu0 0.0
    %1552 = vmatprep.subr.mxu0 0.0
    %1553 = vmatpush1.msra.mxu0 0.0
    %1554 = vmatprep.subr.mxu0 0.0
    %1555 = vmatpush1.msra.mxu0 0.0
    %1556 = vmatprep.subr.mxu0 0.0
    %1557 = vmatpush1.msra.mxu0 0.0
    %1558 = vmatprep.subr.mxu0 0.0
    %1559 = vmatpush1.msra.mxu0 0.0
    %1560 = vmatprep.subr.mxu0 0.0
    %1561 = vmatpush1.msra.mxu0 0.0
    %1562 = vmatprep.subr.mxu0 0.0
    %1563 = vmatpush1.msra.mxu0 0.0
    %1564 = vmatprep.subr.mxu0 0.0
    %1565 = vmatpush1.msra.mxu0 0.0
    %1566 = vmatprep.subr.mxu0 0.0
    %1567 = vmatpush1.msra.mxu0 0.0
    %1568 = vmatprep.subr.mxu0 0.0
    %1569 = vmatpush1.msra.mxu0 0.0
    %1570 = vmatprep.subr.mxu0 0.0
    %1571 = vmatpush1.msra.mxu0 0.0
    %1572 = vmatprep.subr.mxu0 0.0
    %1573 = vmatpush1.msra.mxu0 0.0
    %1574 = vmatprep.subr.mxu0 0.0
    %1575 = vmatpush1.msra.mxu0 0.0
    %1576 = vmatprep.subr.mxu0 0.0
    %1577 = vmatpush1.msra.mxu0 0.0
    %1578 = vmatprep.subr.mxu0 0.0
    %1579 = vmatpush1.msra.mxu0 0.0
    %1580 = vmatprep.subr.mxu0 0.0
    %1581 = vmatpush1.msra.mxu0 0.0
    %1582 = vmatprep.subr.mxu0 0.0
    %1583 = vmatpush1.msra.mxu0 0.0
    %1584 = vmatprep.subr.mxu0 0.0
    %1585 = vmatpush1.msra.mxu0 0.0
    %1586 = vmatprep.subr.mxu0 0.0
    %1587 = vmatpush1.msra.mxu0 0.0
    %1588 = vmatprep.mubr.f32.mxu0 0.0
    %1589 = vmatmul.mubr.f32.gmra.mrb[0].mxu0 %v47
    %v1590 = vpop.f32.mrb[0].mxu0
    %v1591 = vadd.f32 %v1522, %v1590
    %v1592 = vpop.f32.mrb[0].mxu0
    %1593 = vdwg.mxu0
    %v1594 = vadd.f32 %v1517, %v1591
    %v1595 = vxor.u32 %v1594, 2147483648
    %v1596 = vmul.f32 %v1595, 1.442695
    %v1597 = vpow.pop %v1596
    %v1598 = vadd.f32 %v1597, 1.0
    %v1599 = vrcp.pop %v1598
    %v1600 = vmul.f32 1.0, %v1599
    %1602 = vrot.lane.b32.xlu0 %v1591, 64
    %v1603 = vpop.permute.xlu0 %1602
    %v1605 = vmul.f32 %v1600, %v1603
    %1607 = vrot.lane.b32.xlu0 %v1605, 64
    %v1608 = vpop.permute.xlu0 %1607
    %v1610 = vadd.f32 %v1517, %v1608
    %v1611 = vtanh.pop %v1610
    %v1612 = vsub.f32 1.0, %v1600
    %1614 = vrot.lane.b32.xlu0 %v1611, 96
    %v1615 = vpop.permute.xlu0 %1614
    %v1617 = vmul.f32 %v1612, %v1615
    %v1618 = vmul.f32 %v1600, 0.0
    %v1619 = vadd.f32 %v1617, %v1618
    %v1620 = vld [vmem:[%s1054] sm:$0x3]
    %1622 = vrot.lane.b32.xlu0 %v1619, 96
    %v1623 = vpop.permute.xlu0 %1622
    %v1624 = vsel %vm45, %v1623, 0
    %1626 = vmatprep.subr.mxu0 0.0
    %1627 = vmatpush1.msra.mxu0 %v1512
    %1628 = vmatprep.subr.mxu0 0.0
    %1629 = vmatpush1.msra.mxu0 %v1513
    %1630 = vmatprep.subr.mxu0 0.0
    %1631 = vmatpush1.msra.mxu0 %v1514
    %1632 = vmatprep.subr.mxu0 0.0
    %1633 = vmatpush1.msra.mxu0 %v1515
    %1634 = vmatprep.subr.mxu0 0.0
    %1635 = vmatpush1.msra.mxu0 0.0
    %1636 = vmatprep.subr.mxu0 0.0
    %1637 = vmatpush1.msra.mxu0 0.0
    %1638 = vmatprep.subr.mxu0 0.0
    %1639 = vmatpush1.msra.mxu0 0.0
    %1640 = vmatprep.subr.mxu0 0.0
    %1641 = vmatpush1.msra.mxu0 0.0
    %1642 = vmatprep.subr.mxu0 0.0
    %1643 = vmatpush1.msra.mxu0 0.0
    %1644 = vmatprep.subr.mxu0 0.0
    %1645 = vmatpush1.msra.mxu0 0.0
    %1646 = vmatprep.subr.mxu0 0.0
    %1647 = vmatpush1.msra.mxu0 0.0
    %1648 = vmatprep.subr.mxu0 0.0
    %1649 = vmatpush1.msra.mxu0 0.0
    %1650 = vmatprep.subr.mxu0 0.0
    %1651 = vmatpush1.msra.mxu0 0.0
    %1652 = vmatprep.subr.mxu0 0.0
    %1653 = vmatpush1.msra.mxu0 0.0
    %1654 = vmatprep.subr.mxu0 0.0
    %1655 = vmatpush1.msra.mxu0 0.0
    %1656 = vmatprep.subr.mxu0 0.0
    %1657 = vmatpush1.msra.mxu0 0.0
    %1658 = vmatprep.subr.mxu0 0.0
    %1659 = vmatpush1.msra.mxu0 0.0
    %1660 = vmatprep.subr.mxu0 0.0
    %1661 = vmatpush1.msra.mxu0 0.0
    %1662 = vmatprep.subr.mxu0 0.0
    %1663 = vmatpush1.msra.mxu0 0.0
    %1664 = vmatprep.subr.mxu0 0.0
    %1665 = vmatpush1.msra.mxu0 0.0
    %1666 = vmatprep.subr.mxu0 0.0
    %1667 = vmatpush1.msra.mxu0 0.0
    %1668 = vmatprep.subr.mxu0 0.0
    %1669 = vmatpush1.msra.mxu0 0.0
    %1670 = vmatprep.subr.mxu0 0.0
    %1671 = vmatpush1.msra.mxu0 0.0
    %1672 = vmatprep.subr.mxu0 0.0
    %1673 = vmatpush1.msra.mxu0 0.0
    %1674 = vmatprep.subr.mxu0 0.0
    %1675 = vmatpush1.msra.mxu0 0.0
    %1676 = vmatprep.subr.mxu0 0.0
    %1677 = vmatpush1.msra.mxu0 0.0
    %1678 = vmatprep.subr.mxu0 0.0
    %1679 = vmatpush1.msra.mxu0 0.0
    %1680 = vmatprep.subr.mxu0 0.0
    %1681 = vmatpush1.msra.mxu0 0.0
    %1682 = vmatprep.subr.mxu0 0.0
    %1683 = vmatpush1.msra.mxu0 0.0
    %1684 = vmatprep.subr.mxu0 0.0
    %1685 = vmatpush1.msra.mxu0 0.0
    %1686 = vmatprep.subr.mxu0 0.0
    %1687 = vmatpush1.msra.mxu0 0.0
    %1688 = vmatprep.subr.mxu0 0.0
    %1689 = vmatpush1.msra.mxu0 0.0
    %1690 = vmatprep.mubr.f32.mxu0 0.0
    %1691 = vmatmul.mubr.f32.gmra.mrb[0].mxu0 %v1624
    %v1692 = vpop.f32.mrb[0].mxu0
    %v1693 = vadd.f32 %v1522, %v1692
    %v1694 = vpop.f32.mrb[0].mxu0
    %1695 = vdwg.mxu0
    %v1696 = vadd.f32 %v1620, %v1693
    %v1697 = vxor.u32 %v1696, 2147483648
    %v1698 = vmul.f32 %v1697, 1.442695
    %v1699 = vpow.pop %v1698
    %v1700 = vadd.f32 %v1699, 1.0
    %v1701 = vrcp.pop %v1700
    %v1702 = vmul.f32 1.0, %v1701
    %1704 = vrot.lane.b32.xlu0 %v1693, 64
    %v1705 = vpop.permute.xlu0 %1704
    %v1707 = vmul.f32 %v1702, %v1705
    %1709 = vrot.lane.b32.xlu0 %v1707, 64
    %v1710 = vpop.permute.xlu0 %1709
    %v1712 = vadd.f32 %v1620, %v1710
    %v1713 = vtanh.pop %v1712
    %v1714 = vsub.f32 1.0, %v1702
    %1716 = vrot.lane.b32.xlu0 %v1713, 96
    %v1717 = vpop.permute.xlu0 %1716
    %v1719 = vmul.f32 %v1714, %v1717
    %v1720 = vmul.f32 %v1702, %v1619
    %v1721 = vadd.f32 %v1719, %v1720
    %v1722 = vld [vmem:[%s1130] sm:$0x3]
    %1724 = vrot.lane.b32.xlu0 %v1721, 96
    %v1725 = vpop.permute.xlu0 %1724
    %v1726 = vsel %vm45, %v1725, 0
    %1728 = vmatprep.subr.mxu0 0.0
    %1729 = vmatpush1.msra.mxu0 %v1512
    %1730 = vmatprep.subr.mxu0 0.0
    %1731 = vmatpush1.msra.mxu0 %v1513
    %1732 = vmatprep.subr.mxu0 0.0
    %1733 = vmatpush1.msra.mxu0 %v1514
    %1734 = vmatprep.subr.mxu0 0.0
    %1735 = vmatpush1.msra.mxu0 %v1515
    %1736 = vmatprep.subr.mxu0 0.0
    %1737 = vmatpush1.msra.mxu0 0.0
    %1738 = vmatprep.subr.mxu0 0.0
    %1739 = vmatpush1.msra.mxu0 0.0
    %1740 = vmatprep.subr.mxu0 0.0
    %1741 = vmatpush1.msra.mxu0 0.0
    %1742 = vmatprep.subr.mxu0 0.0
    %1743 = vmatpush1.msra.mxu0 0.0
    %1744 = vmatprep.subr.mxu0 0.0
    %1745 = vmatpush1.msra.mxu0 0.0
    %1746 = vmatprep.subr.mxu0 0.0
    %1747 = vmatpush1.msra.mxu0 0.0
    %1748 = vmatprep.subr.mxu0 0.0
    %1749 = vmatpush1.msra.mxu0 0.0
    %1750 = vmatprep.subr.mxu0 0.0
    %1751 = vmatpush1.msra.mxu0 0.0
    %1752 = vmatprep.subr.mxu0 0.0
    %1753 = vmatpush1.msra.mxu0 0.0
    %1754 = vmatprep.subr.mxu0 0.0
    %1755 = vmatpush1.msra.mxu0 0.0
    %1756 = vmatprep.subr.mxu0 0.0
    %1757 = vmatpush1.msra.mxu0 0.0
    %1758 = vmatprep.subr.mxu0 0.0
    %1759 = vmatpush1.msra.mxu0 0.0
    %1760 = vmatprep.subr.mxu0 0.0
    %1761 = vmatpush1.msra.mxu0 0.0
    %1762 = vmatprep.subr.mxu0 0.0
    %1763 = vmatpush1.msra.mxu0 0.0
    %1764 = vmatprep.subr.mxu0 0.0
    %1765 = vmatpush1.msra.mxu0 0.0
    %1766 = vmatprep.subr.mxu0 0.0
    %1767 = vmatpush1.msra.mxu0 0.0
    %1768 = vmatprep.subr.mxu0 0.0
    %1769 = vmatpush1.msra.mxu0 0.0
    %1770 = vmatprep.subr.mxu0 0.0
    %1771 = vmatpush1.msra.mxu0 0.0
    %1772 = vmatprep.subr.mxu0 0.0
    %1773 = vmatpush1.msra.mxu0 0.0
    %1774 = vmatprep.subr.mxu0 0.0
    %1775 = vmatpush1.msra.mxu0 0.0
    %1776 = vmatprep.subr.mxu0 0.0
    %1777 = vmatpush1.msra.mxu0 0.0
    %1778 = vmatprep.subr.mxu0 0.0
    %1779 = vmatpush1.msra.mxu0 0.0
    %1780 = vmatprep.subr.mxu0 0.0
    %1781 = vmatpush1.msra.mxu0 0.0
    %1782 = vmatprep.subr.mxu0 0.0
    %1783 = vmatpush1.msra.mxu0 0.0
    %1784 = vmatprep.subr.mxu0 0.0
    %1785 = vmatpush1.msra.mxu0 0.0
    %1786 = vmatprep.subr.mxu0 0.0
    %1787 = vmatpush1.msra.mxu0 0.0
    %1788 = vmatprep.subr.mxu0 0.0
    %1789 = vmatpush1.msra.mxu0 0.0
    %1790 = vmatprep.subr.mxu0 0.0
    %1791 = vmatpush1.msra.mxu0 0.0
    %1792 = vmatprep.mubr.f32.mxu0 0.0
    %1793 = vmatmul.mubr.f32.gmra.mrb[0].mxu0 %v1726
    %v1794 = vpop.f32.mrb[0].mxu0
    %v1795 = vadd.f32 %v1522, %v1794
    %v1796 = vpop.f32.mrb[0].mxu0
    %1797 = vdwg.mxu0
    %v1798 = vadd.f32 %v1722, %v1795
    %v1799 = vxor.u32 %v1798, 2147483648
    %v1800 = vmul.f32 %v1799, 1.442695
    %v1801 = vpow.pop %v1800
    %v1802 = vadd.f32 %v1801, 1.0
    %v1803 = vrcp.pop %v1802
    %v1804 = vmul.f32 1.0, %v1803
    %1806 = vrot.lane.b32.xlu0 %v1795, 64
    %v1807 = vpop.permute.xlu0 %1806
    %v1809 = vmul.f32 %v1804, %v1807
    %1811 = vrot.lane.b32.xlu0 %v1809, 64
    %v1812 = vpop.permute.xlu0 %1811
    %v1814 = vadd.f32 %v1722, %v1812
    %v1815 = vtanh.pop %v1814
    %v1816 = vsub.f32 1.0, %v1804
    %1818 = vrot.lane.b32.xlu0 %v1815, 96
    %v1819 = vpop.permute.xlu0 %1818
    %v1821 = vmul.f32 %v1816, %v1819
    %v1822 = vmul.f32 %v1804, %v1721
    %v1823 = vadd.f32 %v1821, %v1822
    %v1824 = vld [vmem:[%s1206] sm:$0x3]
    %1826 = vrot.lane.b32.xlu0 %v1823, 96
    %v1827 = vpop.permute.xlu0 %1826
    %v1828 = vsel %vm45, %v1827, 0
    %1830 = vmatprep.subr.mxu0 0.0
    %1831 = vmatpush1.msra.mxu0 %v1512
    %1832 = vmatprep.subr.mxu0 0.0
    %1833 = vmatpush1.msra.mxu0 %v1513
    %1834 = vmatprep.subr.mxu0 0.0
    %1835 = vmatpush1.msra.mxu0 %v1514
    %1836 = vmatprep.subr.mxu0 0.0
    %1837 = vmatpush1.msra.mxu0 %v1515
    %1838 = vmatprep.subr.mxu0 0.0
    %1839 = vmatpush1.msra.mxu0 0.0
    %1840 = vmatprep.subr.mxu0 0.0
    %1841 = vmatpush1.msra.mxu0 0.0
    %1842 = vmatprep.subr.mxu0 0.0
    %1843 = vmatpush1.msra.mxu0 0.0
    %1844 = vmatprep.subr.mxu0 0.0
    %1845 = vmatpush1.msra.mxu0 0.0
    %1846 = vmatprep.subr.mxu0 0.0
    %1847 = vmatpush1.msra.mxu0 0.0
    %1848 = vmatprep.subr.mxu0 0.0
    %1849 = vmatpush1.msra.mxu0 0.0
    %1850 = vmatprep.subr.mxu0 0.0
    %1851 = vmatpush1.msra.mxu0 0.0
    %1852 = vmatprep.subr.mxu0 0.0
    %1853 = vmatpush1.msra.mxu0 0.0
    %1854 = vmatprep.subr.mxu0 0.0
    %1855 = vmatpush1.msra.mxu0 0.0
    %1856 = vmatprep.subr.mxu0 0.0
    %1857 = vmatpush1.msra.mxu0 0.0
    %1858 = vmatprep.subr.mxu0 0.0
    %1859 = vmatpush1.msra.mxu0 0.0
    %1860 = vmatprep.subr.mxu0 0.0
    %1861 = vmatpush1.msra.mxu0 0.0
    %1862 = vmatprep.subr.mxu0 0.0
    %1863 = vmatpush1.msra.mxu0 0.0
    %1864 = vmatprep.subr.mxu0 0.0
    %1865 = vmatpush1.msra.mxu0 0.0
    %1866 = vmatprep.subr.mxu0 0.0
    %1867 = vmatpush1.msra.mxu0 0.0
    %1868 = vmatprep.subr.mxu0 0.0
    %1869 = vmatpush1.msra.mxu0 0.0
    %1870 = vmatprep.subr.mxu0 0.0
    %1871 = vmatpush1.msra.mxu0 0.0
    %1872 = vmatprep.subr.mxu0 0.0
    %1873 = vmatpush1.msra.mxu0 0.0
    %1874 = vmatprep.subr.mxu0 0.0
    %1875 = vmatpush1.msra.mxu0 0.0
    %1876 = vmatprep.subr.mxu0 0.0
    %1877 = vmatpush1.msra.mxu0 0.0
    %1878 = vmatprep.subr.mxu0 0.0
    %1879 = vmatpush1.msra.mxu0 0.0
    %1880 = vmatprep.subr.mxu0 0.0
    %1881 = vmatpush1.msra.mxu0 0.0
    %1882 = vmatprep.subr.mxu0 0.0
    %1883 = vmatpush1.msra.mxu0 0.0
    %1884 = vmatprep.subr.mxu0 0.0
    %1885 = vmatpush1.msra.mxu0 0.0
    %1886 = vmatprep.subr.mxu0 0.0
    %1887 = vmatpush1.msra.mxu0 0.0
    %1888 = vmatprep.subr.mxu0 0.0
    %1889 = vmatpush1.msra.mxu0 0.0
    %1890 = vmatprep.subr.mxu0 0.0
    %1891 = vmatpush1.msra.mxu0 0.0
    %1892 = vmatprep.subr.mxu0 0.0
    %1893 = vmatpush1.msra.mxu0 0.0
    %1894 = vmatprep.mubr.f32.mxu0 0.0
    %1895 = vmatmul.mubr.f32.gmra.mrb[0].mxu0 %v1828
    %v1896 = vpop.f32.mrb[0].mxu0
    %v1897 = vadd.f32 %v1522, %v1896
    %v1898 = vpop.f32.mrb[0].mxu0
    %1899 = vdwg.mxu0
    %v1900 = vadd.f32 %v1824, %v1897
    %v1901 = vxor.u32 %v1900, 2147483648
    %v1902 = vmul.f32 %v1901, 1.442695
    %v1903 = vpow.pop %v1902
    %v1904 = vadd.f32 %v1903, 1.0
    %v1905 = vrcp.pop %v1904
    %v1906 = vmul.f32 1.0, %v1905
    %1908 = vrot.lane.b32.xlu0 %v1897, 64
    %v1909 = vpop.permute.xlu0 %1908
    %v1911 = vmul.f32 %v1906, %v1909
    %1913 = vrot.lane.b32.xlu0 %v1911, 64
    %v1914 = vpop.permute.xlu0 %1913
    %v1916 = vadd.f32 %v1824, %v1914
    %v1917 = vtanh.pop %v1916
    %v1918 = vsub.f32 1.0, %v1906
    %1920 = vrot.lane.b32.xlu0 %v1917, 96
    %v1921 = vpop.permute.xlu0 %1920
    %v1923 = vmul.f32 %v1918, %v1921
    %v1924 = vmul.f32 %v1906, %v1823
    %v1925 = vadd.f32 %v1923, %v1924
    %v1926 = vld [vmem:[%s1282] sm:$0x3]
    %1928 = vrot.lane.b32.xlu0 %v1925, 96
    %v1929 = vpop.permute.xlu0 %1928
    %v1930 = vsel %vm45, %v1929, 0
    %1932 = vmatprep.subr.mxu0 0.0
    %1933 = vmatpush1.msra.mxu0 %v1512
    %1934 = vmatprep.subr.mxu0 0.0
    %1935 = vmatpush1.msra.mxu0 %v1513
    %1936 = vmatprep.subr.mxu0 0.0
    %1937 = vmatpush1.msra.mxu0 %v1514
    %1938 = vmatprep.subr.mxu0 0.0
    %1939 = vmatpush1.msra.mxu0 %v1515
    %1940 = vmatprep.subr.mxu0 0.0
    %1941 = vmatpush1.msra.mxu0 0.0
    %1942 = vmatprep.subr.mxu0 0.0
    %1943 = vmatpush1.msra.mxu0 0.0
    %1944 = vmatprep.subr.mxu0 0.0
    %1945 = vmatpush1.msra.mxu0 0.0
    %1946 = vmatprep.subr.mxu0 0.0
    %1947 = vmatpush1.msra.mxu0 0.0
    %1948 = vmatprep.subr.mxu0 0.0
    %1949 = vmatpush1.msra.mxu0 0.0
    %1950 = vmatprep.subr.mxu0 0.0
    %1951 = vmatpush1.msra.mxu0 0.0
    %1952 = vmatprep.subr.mxu0 0.0
    %1953 = vmatpush1.msra.mxu0 0.0
    %1954 = vmatprep.subr.mxu0 0.0
    %1955 = vmatpush1.msra.mxu0 0.0
    %1956 = vmatprep.subr.mxu0 0.0
    %1957 = vmatpush1.msra.mxu0 0.0
    %1958 = vmatprep.subr.mxu0 0.0
    %1959 = vmatpush1.msra.mxu0 0.0
    %1960 = vmatprep.subr.mxu0 0.0
    %1961 = vmatpush1.msra.mxu0 0.0
    %1962 = vmatprep.subr.mxu0 0.0
    %1963 = vmatpush1.msra.mxu0 0.0
    %1964 = vmatprep.subr.mxu0 0.0
    %1965 = vmatpush1.msra.mxu0 0.0
    %1966 = vmatprep.subr.mxu0 0.0
    %1967 = vmatpush1.msra.mxu0 0.0
    %1968 = vmatprep.subr.mxu0 0.0
    %1969 = vmatpush1.msra.mxu0 0.0
    %1970 = vmatprep.subr.mxu0 0.0
    %1971 = vmatpush1.msra.mxu0 0.0
    %1972 = vmatprep.subr.mxu0 0.0
    %1973 = vmatpush1.msra.mxu0 0.0
    %1974 = vmatprep.subr.mxu0 0.0
    %1975 = vmatpush1.msra.mxu0 0.0
    %1976 = vmatprep.subr.mxu0 0.0
    %1977 = vmatpush1.msra.mxu0 0.0
    %1978 = vmatprep.subr.mxu0 0.0
    %1979 = vmatpush1.msra.mxu0 0.0
    %1980 = vmatprep.subr.mxu0 0.0
    %1981 = vmatpush1.msra.mxu0 0.0
    %1982 = vmatprep.subr.mxu0 0.0
    %1983 = vmatpush1.msra.mxu0 0.0
    %1984 = vmatprep.subr.mxu0 0.0
    %1985 = vmatpush1.msra.mxu0 0.0
    %1986 = vmatprep.subr.mxu0 0.0
    %1987 = vmatpush1.msra.mxu0 0.0
    %1988 = vmatprep.subr.mxu0 0.0
    %1989 = vmatpush1.msra.mxu0 0.0
    %1990 = vmatprep.subr.mxu0 0.0
    %1991 = vmatpush1.msra.mxu0 0.0
    %1992 = vmatprep.subr.mxu0 0.0
    %1993 = vmatpush1.msra.mxu0 0.0
    %1994 = vmatprep.subr.mxu0 0.0
    %1995 = vmatpush1.msra.mxu0 0.0
    %1996 = vmatprep.mubr.f32.mxu0 0.0
    %1997 = vmatmul.mubr.f32.gmra.mrb[0].mxu0 %v1930
    %v1998 = vpop.f32.mrb[0].mxu0
    %v1999 = vadd.f32 %v1522, %v1998
    %v2000 = vpop.f32.mrb[0].mxu0
    %2001 = vdwg.mxu0
    %v2002 = vadd.f32 %v1926, %v1999
    %v2003 = vxor.u32 %v2002, 2147483648
    %v2004 = vmul.f32 %v2003, 1.442695
    %v2005 = vpow.pop %v2004
    %v2006 = vadd.f32 %v2005, 1.0
    %v2007 = vrcp.pop %v2006
    %v2008 = vmul.f32 1.0, %v2007
    %2010 = vrot.lane.b32.xlu0 %v1999, 64
    %v2011 = vpop.permute.xlu0 %2010
    %v2013 = vmul.f32 %v2008, %v2011
    %2015 = vrot.lane.b32.xlu0 %v2013, 64
    %v2016 = vpop.permute.xlu0 %2015
    %v2018 = vadd.f32 %v1926, %v2016
    %v2019 = vtanh.pop %v2018
    %v2020 = vsub.f32 1.0, %v2008
    %2022 = vrot.lane.b32.xlu0 %v2019, 96
    %v2023 = vpop.permute.xlu0 %2022
    %v2025 = vmul.f32 %v2020, %v2023
    %v2026 = vmul.f32 %v2008, %v1925
    %v2027 = vadd.f32 %v2025, %v2026
    %v2028 = vld [vmem:[%s1358] sm:$0x3]
    %2030 = vrot.lane.b32.xlu0 %v2027, 96
    %v2031 = vpop.permute.xlu0 %2030
    %v2032 = vsel %vm45, %v2031, 0
    %2034 = vmatprep.subr.mxu0 0.0
    %2035 = vmatpush1.msra.mxu0 %v1512
    %2036 = vmatprep.subr.mxu0 0.0
    %2037 = vmatpush1.msra.mxu0 %v1513
    %2038 = vmatprep.subr.mxu0 0.0
    %2039 = vmatpush1.msra.mxu0 %v1514
    %2040 = vmatprep.subr.mxu0 0.0
    %2041 = vmatpush1.msra.mxu0 %v1515
    %2042 = vmatprep.subr.mxu0 0.0
    %2043 = vmatpush1.msra.mxu0 0.0
    %2044 = vmatprep.subr.mxu0 0.0
    %2045 = vmatpush1.msra.mxu0 0.0
    %2046 = vmatprep.subr.mxu0 0.0
    %2047 = vmatpush1.msra.mxu0 0.0
    %2048 = vmatprep.subr.mxu0 0.0
    %2049 = vmatpush1.msra.mxu0 0.0
    %2050 = vmatprep.subr.mxu0 0.0
    %2051 = vmatpush1.msra.mxu0 0.0
    %2052 = vmatprep.subr.mxu0 0.0
    %2053 = vmatpush1.msra.mxu0 0.0
    %2054 = vmatprep.subr.mxu0 0.0
    %2055 = vmatpush1.msra.mxu0 0.0
    %2056 = vmatprep.subr.mxu0 0.0
    %2057 = vmatpush1.msra.mxu0 0.0
    %2058 = vmatprep.subr.mxu0 0.0
    %2059 = vmatpush1.msra.mxu0 0.0
    %2060 = vmatprep.subr.mxu0 0.0
    %2061 = vmatpush1.msra.mxu0 0.0
    %2062 = vmatprep.subr.mxu0 0.0
    %2063 = vmatpush1.msra.mxu0 0.0
    %2064 = vmatprep.subr.mxu0 0.0
    %2065 = vmatpush1.msra.mxu0 0.0
    %2066 = vmatprep.subr.mxu0 0.0
    %2067 = vmatpush1.msra.mxu0 0.0
    %2068 = vmatprep.subr.mxu0 0.0
    %2069 = vmatpush1.msra.mxu0 0.0
    %2070 = vmatprep.subr.mxu0 0.0
    %2071 = vmatpush1.msra.mxu0 0.0
    %2072 = vmatprep.subr.mxu0 0.0
    %2073 = vmatpush1.msra.mxu0 0.0
    %2074 = vmatprep.subr.mxu0 0.0
    %2075 = vmatpush1.msra.mxu0 0.0
    %2076 = vmatprep.subr.mxu0 0.0
    %2077 = vmatpush1.msra.mxu0 0.0
    %2078 = vmatprep.subr.mxu0 0.0
    %2079 = vmatpush1.msra.mxu0 0.0
    %2080 = vmatprep.subr.mxu0 0.0
    %2081 = vmatpush1.msra.mxu0 0.0
    %2082 = vmatprep.subr.mxu0 0.0
    %2083 = vmatpush1.msra.mxu0 0.0
    %2084 = vmatprep.subr.mxu0 0.0
    %2085 = vmatpush1.msra.mxu0 0.0
    %2086 = vmatprep.subr.mxu0 0.0
    %2087 = vmatpush1.msra.mxu0 0.0
    %2088 = vmatprep.subr.mxu0 0.0
    %2089 = vmatpush1.msra.mxu0 0.0
    %2090 = vmatprep.subr.mxu0 0.0
    %2091 = vmatpush1.msra.mxu0 0.0
    %2092 = vmatprep.subr.mxu0 0.0
    %2093 = vmatpush1.msra.mxu0 0.0
    %2094 = vmatprep.subr.mxu0 0.0
    %2095 = vmatpush1.msra.mxu0 0.0
    %2096 = vmatprep.subr.mxu0 0.0
    %2097 = vmatpush1.msra.mxu0 0.0
    %2098 = vmatprep.mubr.f32.mxu0 0.0
    %2099 = vmatmul.mubr.f32.gmra.mrb[0].mxu0 %v2032
    %v2100 = vpop.f32.mrb[0].mxu0
    %v2101 = vadd.f32 %v1522, %v2100
    %v2102 = vpop.f32.mrb[0].mxu0
    %2103 = vdwg.mxu0
    %v2104 = vadd.f32 %v2028, %v2101
    %v2105 = vxor.u32 %v2104, 2147483648
    %v2106 = vmul.f32 %v2105, 1.442695
    %v2107 = vpow.pop %v2106
    %v2108 = vadd.f32 %v2107, 1.0
    %v2109 = vrcp.pop %v2108
    %v2110 = vmul.f32 1.0, %v2109
    %2112 = vrot.lane.b32.xlu0 %v2101, 64
    %v2113 = vpop.permute.xlu0 %2112
    %v2115 = vmul.f32 %v2110, %v2113
    %2117 = vrot.lane.b32.xlu0 %v2115, 64
    %v2118 = vpop.permute.xlu0 %2117
    %v2120 = vadd.f32 %v2028, %v2118
    %v2121 = vtanh.pop %v2120
    %v2122 = vsub.f32 1.0, %v2110
    %2124 = vrot.lane.b32.xlu0 %v2121, 96
    %v2125 = vpop.permute.xlu0 %2124
    %v2127 = vmul.f32 %v2122, %v2125
    %v2128 = vmul.f32 %v2110, %v2027
    %v2129 = vadd.f32 %v2127, %v2128
    %v2130 = vld [vmem:[%s1434] sm:$0x3]
    %2132 = vrot.lane.b32.xlu0 %v2129, 96
    %v2133 = vpop.permute.xlu0 %2132
    %v2134 = vsel %vm45, %v2133, 0
    %2136 = vmatprep.subr.mxu0 0.0
    %2137 = vmatpush1.msra.mxu0 %v1512
    %2138 = vmatprep.subr.mxu0 0.0
    %2139 = vmatpush1.msra.mxu0 %v1513
    %2140 = vmatprep.subr.mxu0 0.0
    %2141 = vmatpush1.msra.mxu0 %v1514
    %2142 = vmatprep.subr.mxu0 0.0
    %2143 = vmatpush1.msra.mxu0 %v1515
    %2144 = vmatprep.subr.mxu0 0.0
    %2145 = vmatpush1.msra.mxu0 0.0
    %2146 = vmatprep.subr.mxu0 0.0
    %2147 = vmatpush1.msra.mxu0 0.0
    %2148 = vmatprep.subr.mxu0 0.0
    %2149 = vmatpush1.msra.mxu0 0.0
    %2150 = vmatprep.subr.mxu0 0.0
    %2151 = vmatpush1.msra.mxu0 0.0
    %2152 = vmatprep.subr.mxu0 0.0
    %2153 = vmatpush1.msra.mxu0 0.0
    %2154 = vmatprep.subr.mxu0 0.0
    %2155 = vmatpush1.msra.mxu0 0.0
    %2156 = vmatprep.subr.mxu0 0.0
    %2157 = vmatpush1.msra.mxu0 0.0
    %2158 = vmatprep.subr.mxu0 0.0
    %2159 = vmatpush1.msra.mxu0 0.0
    %2160 = vmatprep.subr.mxu0 0.0
    %2161 = vmatpush1.msra.mxu0 0.0
    %2162 = vmatprep.subr.mxu0 0.0
    %2163 = vmatpush1.msra.mxu0 0.0
    %2164 = vmatprep.subr.mxu0 0.0
    %2165 = vmatpush1.msra.mxu0 0.0
    %2166 = vmatprep.subr.mxu0 0.0
    %2167 = vmatpush1.msra.mxu0 0.0
    %2168 = vmatprep.subr.mxu0 0.0
    %2169 = vmatpush1.msra.mxu0 0.0
    %2170 = vmatprep.subr.mxu0 0.0
    %2171 = vmatpush1.msra.mxu0 0.0
    %2172 = vmatprep.subr.mxu0 0.0
    %2173 = vmatpush1.msra.mxu0 0.0
    %2174 = vmatprep.subr.mxu0 0.0
    %2175 = vmatpush1.msra.mxu0 0.0
    %2176 = vmatprep.subr.mxu0 0.0
    %2177 = vmatpush1.msra.mxu0 0.0
    %2178 = vmatprep.subr.mxu0 0.0
    %2179 = vmatpush1.msra.mxu0 0.0
    %2180 = vmatprep.subr.mxu0 0.0
    %2181 = vmatpush1.msra.mxu0 0.0
    %2182 = vmatprep.subr.mxu0 0.0
    %2183 = vmatpush1.msra.mxu0 0.0
    %2184 = vmatprep.subr.mxu0 0.0
    %2185 = vmatpush1.msra.mxu0 0.0
    %2186 = vmatprep.subr.mxu0 0.0
    %2187 = vmatpush1.msra.mxu0 0.0
    %2188 = vmatprep.subr.mxu0 0.0
    %2189 = vmatpush1.msra.mxu0 0.0
    %2190 = vmatprep.subr.mxu0 0.0
    %2191 = vmatpush1.msra.mxu0 0.0
    %2192 = vmatprep.subr.mxu0 0.0
    %2193 = vmatpush1.msra.mxu0 0.0
    %2194 = vmatprep.subr.mxu0 0.0
    %2195 = vmatpush1.msra.mxu0 0.0
    %2196 = vmatprep.subr.mxu0 0.0
    %2197 = vmatpush1.msra.mxu0 0.0
    %2198 = vmatprep.subr.mxu0 0.0
    %2199 = vmatpush1.msra.mxu0 0.0
    %2200 = vmatprep.mubr.f32.mxu0 0.0
    %2201 = vmatmul.mubr.f32.gmra.mrb[0].mxu0 %v2134
    %v2202 = vpop.f32.mrb[0].mxu0
    %v2203 = vadd.f32 %v1522, %v2202
    %v2204 = vpop.f32.mrb[0].mxu0
    %2205 = vdwg.mxu0
    %v2206 = vadd.f32 %v2130, %v2203
    %v2207 = vxor.u32 %v2206, 2147483648
    %v2208 = vmul.f32 %v2207, 1.442695
    %v2209 = vpow.pop %v2208
    %v2210 = vadd.f32 %v2209, 1.0
    %v2211 = vrcp.pop %v2210
    %v2212 = vmul.f32 1.0, %v2211
    %2214 = vrot.lane.b32.xlu0 %v2203, 64
    %v2215 = vpop.permute.xlu0 %2214
    %v2217 = vmul.f32 %v2212, %v2215
    %2219 = vrot.lane.b32.xlu0 %v2217, 64
    %v2220 = vpop.permute.xlu0 %2219
    %v2222 = vadd.f32 %v2130, %v2220
    %v2223 = vtanh.pop %v2222
    %v2224 = vsub.f32 1.0, %v2212
    %2226 = vrot.lane.b32.xlu0 %v2223, 96
    %v2227 = vpop.permute.xlu0 %2226
    %v2229 = vmul.f32 %v2224, %v2227
    %v2230 = vmul.f32 %v2212, %v2129
    %v2231 = vadd.f32 %v2229, %v2230
    %v2232 = vld [vmem:[%s1510] sm:$0x3]
    %2234 = vrot.lane.b32.xlu0 %v2231, 96
    %v2235 = vpop.permute.xlu0 %2234
    %v2236 = vsel %vm45, %v2235, 0
    %2238 = vmatprep.subr.mxu0 0.0
    %2239 = vmatpush1.msra.mxu0 %v1512
    %2240 = vmatprep.subr.mxu0 0.0
    %2241 = vmatpush1.msra.mxu0 %v1513
    %2242 = vmatprep.subr.mxu0 0.0
    %2243 = vmatpush1.msra.mxu0 %v1514
    %2244 = vmatprep.subr.mxu0 0.0
    %2245 = vmatpush1.msra.mxu0 %v1515
    %2246 = vmatprep.subr.mxu0 0.0
    %2247 = vmatpush1.msra.mxu0 0.0
    %2248 = vmatprep.subr.mxu0 0.0
    %2249 = vmatpush1.msra.mxu0 0.0
    %2250 = vmatprep.subr.mxu0 0.0
    %2251 = vmatpush1.msra.mxu0 0.0
    %2252 = vmatprep.subr.mxu0 0.0
    %2253 = vmatpush1.msra.mxu0 0.0
    %2254 = vmatprep.subr.mxu0 0.0
    %2255 = vmatpush1.msra.mxu0 0.0
    %2256 = vmatprep.subr.mxu0 0.0
    %2257 = vmatpush1.msra.mxu0 0.0
    %2258 = vmatprep.subr.mxu0 0.0
    %2259 = vmatpush1.msra.mxu0 0.0
    %2260 = vmatprep.subr.mxu0 0.0
    %2261 = vmatpush1.msra.mxu0 0.0
    %2262 = vmatprep.subr.mxu0 0.0
    %2263 = vmatpush1.msra.mxu0 0.0
    %2264 = vmatprep.subr.mxu0 0.0
    %2265 = vmatpush1.msra.mxu0 0.0
    %2266 = vmatprep.subr.mxu0 0.0
    %2267 = vmatpush1.msra.mxu0 0.0
    %2268 = vmatprep.subr.mxu0 0.0
    %2269 = vmatpush1.msra.mxu0 0.0
    %2270 = vmatprep.subr.mxu0 0.0
    %2271 = vmatpush1.msra.mxu0 0.0
    %2272 = vmatprep.subr.mxu0 0.0
    %2273 = vmatpush1.msra.mxu0 0.0
    %2274 = vmatprep.subr.mxu0 0.0
    %2275 = vmatpush1.msra.mxu0 0.0
    %2276 = vmatprep.subr.mxu0 0.0
    %2277 = vmatpush1.msra.mxu0 0.0
    %2278 = vmatprep.subr.mxu0 0.0
    %2279 = vmatpush1.msra.mxu0 0.0
    %2280 = vmatprep.subr.mxu0 0.0
    %2281 = vmatpush1.msra.mxu0 0.0
    %2282 = vmatprep.subr.mxu0 0.0
    %2283 = vmatpush1.msra.mxu0 0.0
    %2284 = vmatprep.subr.mxu0 0.0
    %2285 = vmatpush1.msra.mxu0 0.0
    %2286 = vmatprep.subr.mxu0 0.0
    %2287 = vmatpush1.msra.mxu0 0.0
    %2288 = vmatprep.subr.mxu0 0.0
    %2289 = vmatpush1.msra.mxu0 0.0
    %2290 = vmatprep.subr.mxu0 0.0
    %2291 = vmatpush1.msra.mxu0 0.0
    %2292 = vmatprep.subr.mxu0 0.0
    %2293 = vmatpush1.msra.mxu0 0.0
    %2294 = vmatprep.subr.mxu0 0.0
    %2295 = vmatpush1.msra.mxu0 0.0
    %2296 = vmatprep.subr.mxu0 0.0
    %2297 = vmatpush1.msra.mxu0 0.0
    %2298 = vmatprep.subr.mxu0 0.0
    %2299 = vmatpush1.msra.mxu0 0.0
    %2300 = vmatprep.subr.mxu0 0.0
    %2301 = vmatpush1.msra.mxu0 0.0
    %2302 = vmatprep.mubr.f32.mxu0 0.0
    %2303 = vmatmul.mubr.f32.gmra.mrb[0].mxu0 %v2236
    %v2304 = vpop.f32.mrb[0].mxu0
    %v2305 = vadd.f32 %v1522, %v2304
    %v2306 = vpop.f32.mrb[0].mxu0
    %2307 = vdwg.mxu0
    %v2308 = vadd.f32 %v2232, %v2305
    %v2309 = vxor.u32 %v2308, 2147483648
    %v2310 = vmul.f32 %v2309, 1.442695
    %v2311 = vpow.pop %v2310
    %v2312 = vadd.f32 %v2311, 1.0
    %v2313 = vrcp.pop %v2312
    %v2314 = vmul.f32 1.0, %v2313
    %2316 = vrot.lane.b32.xlu0 %v2305, 64
    %v2317 = vpop.permute.xlu0 %2316
    %v2319 = vmul.f32 %v2314, %v2317
    %2321 = vrot.lane.b32.xlu0 %v2319, 64
    %v2322 = vpop.permute.xlu0 %2321
    %v2324 = vadd.f32 %v2232, %v2322
    %v2325 = vtanh.pop %v2324
    %v2326 = vsub.f32 1.0, %v2314
    %2328 = vrot.lane.b32.xlu0 %v2325, 96
    %v2329 = vpop.permute.xlu0 %2328
    %v2331 = vmul.f32 %v2326, %v2329
    %v2332 = vmul.f32 %v2314, %v2231
    %v2333 = vadd.f32 %v2331, %v2332
    %v2334 = vld [vmem:[%s7] sm:$0xff]
    %v2335 = vld [vmem:[%s7 + $0x8] sm:$0xff]
    %v2336 = vld [vmem:[%s7 + $0x10] sm:$0xff]
    %v2337 = vld [vmem:[%s7 + $0x18] sm:$0xff]
    %v2338 = vld [vmem:[%s8] sm:$0x1]
    %v2340 = vlaneseq
    %v2341 = vshrl.u32 %v2340, 7
    %v2342 = vsub.s32 0, %v2341
    %v2343 = vrot.slane %v2338, %v2342
    %2346 = vrot.lane.b32.xlu0 %v2333, 96
    %v2347 = vpop.permute.xlu0 %2346
    %v2348 = vsel %vm45, %v2347, 0
    %2350 = vmatprep.subr.mxu0 0.0
    %2351 = vmatpush1.msra.mxu0 %v2334
    %2352 = vmatprep.subr.mxu0 0.0
    %2353 = vmatpush1.msra.mxu0 %v2335
    %2354 = vmatprep.subr.mxu0 0.0
    %2355 = vmatpush1.msra.mxu0 %v2336
    %2356 = vmatprep.subr.mxu0 0.0
    %2357 = vmatpush1.msra.mxu0 %v2337
    %2358 = vmatprep.subr.mxu0 0.0
    %2359 = vmatpush1.msra.mxu0 0.0
    %2360 = vmatprep.subr.mxu0 0.0
    %2361 = vmatpush1.msra.mxu0 0.0
    %2362 = vmatprep.subr.mxu0 0.0
    %2363 = vmatpush1.msra.mxu0 0.0
    %2364 = vmatprep.subr.mxu0 0.0
    %2365 = vmatpush1.msra.mxu0 0.0
    %2366 = vmatprep.subr.mxu0 0.0
    %2367 = vmatpush1.msra.mxu0 0.0
    %2368 = vmatprep.subr.mxu0 0.0
    %2369 = vmatpush1.msra.mxu0 0.0
    %2370 = vmatprep.subr.mxu0 0.0
    %2371 = vmatpush1.msra.mxu0 0.0
    %2372 = vmatprep.subr.mxu0 0.0
    %2373 = vmatpush1.msra.mxu0 0.0
    %2374 = vmatprep.subr.mxu0 0.0
    %2375 = vmatpush1.msra.mxu0 0.0
    %2376 = vmatprep.subr.mxu0 0.0
    %2377 = vmatpush1.msra.mxu0 0.0
    %2378 = vmatprep.subr.mxu0 0.0
    %2379 = vmatpush1.msra.mxu0 0.0
    %2380 = vmatprep.subr.mxu0 0.0
    %2381 = vmatpush1.msra.mxu0 0.0
    %2382 = vmatprep.subr.mxu0 0.0
    %2383 = vmatpush1.msra.mxu0 0.0
    %2384 = vmatprep.subr.mxu0 0.0
    %2385 = vmatpush1.msra.mxu0 0.0
    %2386 = vmatprep.subr.mxu0 0.0
    %2387 = vmatpush1.msra.mxu0 0.0
    %2388 = vmatprep.subr.mxu0 0.0
    %2389 = vmatpush1.msra.mxu0 0.0
    %2390 = vmatprep.subr.mxu0 0.0
    %2391 = vmatpush1.msra.mxu0 0.0
    %2392 = vmatprep.subr.mxu0 0.0
    %2393 = vmatpush1.msra.mxu0 0.0
    %2394 = vmatprep.subr.mxu0 0.0
    %2395 = vmatpush1.msra.mxu0 0.0
    %2396 = vmatprep.subr.mxu0 0.0
    %2397 = vmatpush1.msra.mxu0 0.0
    %2398 = vmatprep.subr.mxu0 0.0
    %2399 = vmatpush1.msra.mxu0 0.0
    %2400 = vmatprep.subr.mxu0 0.0
    %2401 = vmatpush1.msra.mxu0 0.0
    %2402 = vmatprep.subr.mxu0 0.0
    %2403 = vmatpush1.msra.mxu0 0.0
    %2404 = vmatprep.subr.mxu0 0.0
    %2405 = vmatpush1.msra.mxu0 0.0
    %2406 = vmatprep.subr.mxu0 0.0
    %2407 = vmatpush1.msra.mxu0 0.0
    %2408 = vmatprep.subr.mxu0 0.0
    %2409 = vmatpush1.msra.mxu0 0.0
    %2410 = vmatprep.subr.mxu0 0.0
    %2411 = vmatpush1.msra.mxu0 0.0
    %2412 = vmatprep.subr.mxu0 0.0
    %2413 = vmatpush1.msra.mxu0 0.0
    %2414 = vmatprep.mubr.f32.mxu0 0.0
    %2415 = vmatmul.mubr.f32.gmra.mrb[0].mxu0 %v2348
    %v2416 = vpop.f32.mrb[0].mxu0
    %v2417 = vadd.f32 %v2343, %v2416
    %v2418 = vpop.f32.mrb[0].mxu0
    %2419 = vdwg.mxu0
    %vm2420 = vcmask 25600
    %2421 = vst.msk [vmem:[#allocation4] sm:$0x3] %vm2420, %v2417
    // Predicated region
    $region38: #{lag_gru_forward.1} parent=1 // pred_check
      _
    $region39: #{lag_gru_forward.1} parent=1 // pred_check_branch
      %2423 = sbr.rel (0) target = $region41
    $region40: #{lag_gru_forward.1} parent=1 // pred_region
      %s2425 = ssub.s32 32, 32
      %2426 = vsyncadd [#allocation5], %s2425
      %s2428 = sshll.u32 [#allocation4], 4
      %s2429 = int_to_ptr.vmem [resolvable:$true] %s2428
      %2431 = dma.vmem_to_hbm [thread:$0]  %s2429, 32, %s9, [#allocation5]
    $region41: #{lag_gru_forward.1} parent=1 // pred_fallthru
      _
    // Predicated region
    $region42: #{lag_gru_forward.1} parent=1 // pred_check
      _
    $region43: #{lag_gru_forward.1} parent=1 // pred_check_branch
      %2433 = sbr.rel (0) target = $region45
    $region44: #{lag_gru_forward.1} parent=1 // pred_region
      %2434 = dma.done [#allocation5], 32
    $region45: #{lag_gru_forward.1} parent=1 // pred_fallthru
      _
    %2435 = vsyncpa [#allocation5], 1

</llo_original>
